<compile_context>
chip_gen: v6e
topology: v6e:2x2x1
jax: 0.10.0
libtpu: 0.0.40
codegen_flags: <defaults>
</compile_context>

<pallas_src>
import functools

import numpy as np
import jax
import jax.numpy as jnp
from jax import lax
from jax.experimental import pallas as pl
from jax.experimental.pallas import tpu as pltpu

# ----------------------------- model config ---------------------------------
VOCAB = 50
D_BERT = 32
FILTER_SIZES = (2, 3)
FILTER_NUM = 8
KMAX = max(FILTER_SIZES)
D_CNN = 16
D_GRAPH = 16            # hidden_size of GraphNetwork
N_SPEAKERS = 2
N_RELATIONS = N_SPEAKERS ** 2
GRAPH_CLASS_NUM = 2
NUM_BASES = 30

SPEAKER_TYPE_MAP = [[0, 1], [2, 3]]


def _r8(n):
    return ((n + 7) // 8) * 8


EMB_ROWS = _r8(VOCAB + 2)                         # token + type table, 8-aligned
D16_W = max(len(FILTER_SIZES) * FILTER_NUM, D_CNN, D_GRAPH)   # = 16 lanes

# Row layout of the 16-lane parameter pack (all segment sizes are multiples
# of 8, so every static slice below is a tile-aligned view).
_D16_SEGS = (
    ("conv",      KMAX * D_BERT),                         # fused conv weight
    ("fc_cnn",    len(FILTER_SIZES) * FILTER_NUM),
    ("att",       D_CNN),
    ("gc_root",   D_CNN),
    ("gc_rel",    D_CNN),
    ("wrel",      N_RELATIONS * D_GRAPH),                 # RGCN bases pre-combined
    ("rgcn_root", D_GRAPH),
    ("lin",       2 * (D_CNN + D_GRAPH)),
    ("smax",      D_GRAPH),                               # (D_GRAPH, 2) zero-padded
)

_BIAS_ROW = {"enc": 0, "conv": 1, "fc_cnn": 2, "gc": 3, "rgcn": 4,
             "lin": 5, "smax": 6}


def _d16_layout():
    off, lay = 0, {}
    for name, rows in _D16_SEGS:
        lay[name] = (off, rows)
        off += rows
    return lay, off


def _topo_layout(b, s, n_pad):
    """Row layout of the packed topology buffer (all offsets 8-aligned)."""
    n_utt = b * s
    off_mask = 0
    off_sel = _r8(n_utt)
    off_arel = off_sel + _r8(n_pad)
    off_oh = off_arel + N_RELATIONS * n_pad
    rows = _r8(off_oh + b)
    return dict(mask=off_mask, sel=off_sel, arel=off_arel, oh=off_oh,
                rows=rows, width=max(n_utt, n_pad))


# ------------------------------ Pallas kernel --------------------------------
def err_miner_kernel(ids_ref, d32_ref, d16_ref, bias_ref, topo_ref, pneg_ref,
                     out_ref, *, b, s, w, n_pad):
    """Single fused launch: one-hot embed -> tanh dense -> masked word output
    -> fused multi-size Conv1d (+ReLU, max-pool) -> fc_cnn -> EdgeAttention
    masked softmax -> weighted adjacency -> GraphConv -> RGCN -> add/max pool
    -> MLP -> log_softmax. Everything stays in VMEM/vregs."""
    n_utt = b * s
    n_rows = n_utt * w
    fn_all = len(FILTER_SIZES) * FILTER_NUM
    lay, _ = _d16_layout()
    tl = _topo_layout(b, s, n_pad)

    def w16(name):
        o, r = lay[name]
        return d16_ref[o:o + r, :]

    def bias(name, width):
        r = _BIAS_ROW[name]
        return bias_ref[r:r + 1, 0:width]

    # ---- BERT stand-in: one-hot (token + type) embed -> tanh dense -> mask --
    ids = ids_ref[...]                                        # (n_rows, 3) int32
    lanes = lax.broadcasted_iota(jnp.int32, (n_rows, EMB_ROWS), 1)
    oh = jnp.logical_or(lanes == ids[:, 0:1],
                        lanes == ids[:, 1:2] + VOCAB).astype(jnp.float32)
    emb = jnp.dot(oh, d32_ref[0:EMB_ROWS, :],
                  preferred_element_type=jnp.float32)         # (n_rows, D_bert)
    word = jnp.tanh(jnp.dot(emb, d32_ref[EMB_ROWS:EMB_ROWS + D_BERT, :],
                            preferred_element_type=jnp.float32)
                    + bias("enc", D_BERT))
    word = jnp.where(ids[:, 2:3] > 0, word, 0.0)              # masked_fill(mask==0, 0)

    # ---- fused multi-size Conv1d via shift(XLU roll)-and-accumulate ----------
    # acc[p] = sum_o word[p + o] @ W_o ; conv2 columns have a zero o=2 slice.
    wc_off, _ = lay["conv"]
    acc = jnp.dot(word, d16_ref[wc_off:wc_off + D_BERT, :],
                  preferred_element_type=jnp.float32)
    for o in range(1, KMAX):
        # pltpu.roll follows jnp.roll semantics; shift = n_rows - o puts
        # word[p + o] at row p (wrapped rows fall only on masked positions).
        shifted = pltpu.roll(word, n_rows - o, 0)
        acc = acc + jnp.dot(
            shifted, d16_ref[wc_off + o * D_BERT:wc_off + (o + 1) * D_BERT, :],
            preferred_element_type=jnp.float32)
    conv = jnp.maximum(acc + bias("conv", fn_all), 0.0)       # (n_rows, 2*FN)
    conv = conv.reshape(n_utt, w, fn_all)

    # Zero positions whose receptive field crosses the utterance boundary
    # (per-column valid length). Safe: post-ReLU values are >= 0, so 0 never
    # wins the max-pool.
    pos = lax.broadcasted_iota(jnp.int32, (n_utt, w, fn_all), 1)
    col = lax.broadcasted_iota(jnp.int32, (n_utt, w, fn_all), 2)
    out_len = jnp.zeros_like(col)
    for idx, ksz in enumerate(FILTER_SIZES):
        in_band = (col >= idx * FILTER_NUM) & (col < (idx + 1) * FILTER_NUM)
        out_len = jnp.where(in_band, w - ksz + 1, out_len)
    conv = jnp.where(pos < out_len, conv, 0.0)
    concated = jnp.max(conv, axis=1)                          # (n_utt, 2*FN)

    # ---- fc_cnn + ReLU -------------------------------------------------------
    feats = jnp.maximum(jnp.dot(concated, w16("fc_cnn"),
                                preferred_element_type=jnp.float32)
                        + bias("fc_cnn", D_CNN), 0.0)         # (n_utt, D_cnn)

    # ---- EdgeAttention: one (n_utt, n_utt) block, masked softmax over src ----
    fw = jnp.dot(feats, w16("att"), preferred_element_type=jnp.float32)
    sc = lax.dot_general(fw, feats, (((1,), (1,)), ((), ())),
                         preferred_element_type=jnp.float32)  # sc[src, tgt]
    emask = topo_ref[tl["mask"]:tl["mask"] + n_utt, 0:n_utt]  # block-diag edges
    sc = jnp.where(emask > 0, sc, -1e30)    # finite fill: no NaN for empty cols
    cmax = jnp.max(sc, axis=0, keepdims=True)                 # softmax over src
    p = jnp.where(emask > 0, jnp.exp(sc - cmax), 0.0)
    denom = jnp.sum(p, axis=0, keepdims=True)
    scores = p / jnp.where(denom > 0, denom, 1.0)             # exact divide

    # ---- graph construction: node gather + weighted adjacency ---------------
    sel = topo_ref[tl["sel"]:tl["sel"] + n_pad, 0:n_utt]      # (n_pad, n_utt)
    arel = topo_ref[tl["arel"]:tl["arel"] + N_RELATIONS * n_pad, 0:n_pad]
    oh2 = topo_ref[tl["oh"]:tl["oh"] + b, 0:n_pad]            # (b, n_pad)

    x = jnp.dot(sel, feats, preferred_element_type=jnp.float32)   # (n_pad, D_cnn)
    # A[tgt_g, src_g] = scores[src, tgt], built with two MXU pushes.
    t1 = lax.dot_general(sel, scores, (((1,), (1,)), ((), ())),
                         preferred_element_type=jnp.float32)       # (n_pad, n_utt)
    A = lax.dot_general(t1, sel, (((1,), (1,)), ((), ())),
                        preferred_element_type=jnp.float32)        # (n_pad, n_pad)

    # ---- GraphConv + ReLU ----------------------------------------------------
    agg = jnp.dot(A, x, preferred_element_type=jnp.float32)
    h1 = jnp.maximum(
        jnp.dot(x, w16("gc_root"), preferred_element_type=jnp.float32)
        + jnp.dot(agg, w16("gc_rel"), preferred_element_type=jnp.float32)
        + bias("gc", D_GRAPH), 0.0)

    # ---- RGCNConv (mean aggr, bases pre-combined), relations batched ---------
    ah = jnp.dot(arel, h1, preferred_element_type=jnp.float32)     # (R*n_pad, D)
    ah_cols = jnp.concatenate(
        [ah[r * n_pad:(r + 1) * n_pad, :] for r in range(N_RELATIONS)], axis=1)
    h2 = jnp.maximum(
        jnp.dot(h1, w16("rgcn_root"), preferred_element_type=jnp.float32)
        + jnp.dot(ah_cols, w16("wrel"), preferred_element_type=jnp.float32)
        + bias("rgcn", D_GRAPH), 0.0)

    # ---- readout: concat -> global add/max pool -> MLP -> log_softmax --------
    fcat = jnp.concatenate([x, h2], axis=-1)                  # (n_pad, D_cnn+D_g)
    summ = jnp.dot(oh2, fcat, preferred_element_type=jnp.float32)        # add-pool
    maxx = jnp.max(fcat[None, :, :] + pneg_ref[...], axis=1)             # max-pool
    has_node = jnp.sum(oh2, axis=1, keepdims=True) > 0
    maxx = jnp.where(has_node, maxx, 0.0)                     # guard empty graphs
    cat = jnp.concatenate([summ, maxx], axis=-1)              # (b, 2*(D_cnn+D_g))

    hid = jnp.maximum(jnp.dot(cat, w16("lin"), preferred_element_type=jnp.float32)
                      + bias("lin", D_GRAPH), 0.0)
    logits = jnp.dot(hid, w16("smax"),
                     preferred_element_type=jnp.float32)[:, 0:GRAPH_CLASS_NUM]
    logits = logits + bias("smax", GRAPH_CLASS_NUM)
    lmax = jnp.max(logits, axis=-1, keepdims=True)
    lse = jnp.log(jnp.sum(jnp.exp(logits - lmax), axis=-1, keepdims=True)) + lmax
    out_ref[...] = logits - lse                               # log_softmax


# ---------------------- host-side (one-time) packing -------------------------
def pack_params(params):
    """Pack all small weights/biases into 3 lane-dense buffers (done once)."""
    g = lambda k: np.asarray(params[k], np.float32)

    # 32-lane pack: combined token+type embedding table + encoder weight.
    emb = np.zeros((EMB_ROWS, D_BERT), np.float32)
    emb[:VOCAB] = g("tok_emb")
    emb[VOCAB:VOCAB + 2] = g("type_emb")
    d32 = np.concatenate([emb, g("enc_w")], axis=0)           # (88, 32)

    # 16-lane pack: all small weight matrices.
    lay, rows = _d16_layout()
    d16 = np.zeros((rows, D16_W), np.float32)

    def put(name, mat):
        o, r = lay[name]
        d16[o:o + mat.shape[0], :mat.shape[1]] = mat

    wconv = np.zeros((KMAX * D_BERT, len(FILTER_SIZES) * FILTER_NUM), np.float32)
    for idx, k in enumerate(FILTER_SIZES):
        wconv[:k * D_BERT, idx * FILTER_NUM:(idx + 1) * FILTER_NUM] = \
            g(f"conv{k}_w").reshape(k * D_BERT, FILTER_NUM)
    put("conv", wconv)
    put("fc_cnn", g("fc_cnn_w"))
    put("att", g("att_w"))
    put("gc_root", g("gc_root"))
    put("gc_rel", g("gc_rel"))
    # RGCN basis decomposition folded here (removes the per-call einsum HLO).
    wrel = np.einsum("rb,bio->rio", g("rgcn_comp"), g("rgcn_bases")).reshape(
        N_RELATIONS * D_GRAPH, D_GRAPH)
    put("wrel", wrel)
    put("rgcn_root", g("rgcn_root"))
    put("lin", g("lin_w"))
    put("smax", g("smax_w"))                                  # (16, 2) zero-padded

    # Bias pack: one row per bias vector.
    bias = np.zeros((8, D_BERT), np.float32)
    bias[_BIAS_ROW["enc"], :D_BERT] = g("enc_b")
    for idx, k in enumerate(FILTER_SIZES):
        bias[_BIAS_ROW["conv"], idx * FILTER_NUM:(idx + 1) * FILTER_NUM] = \
            g(f"conv{k}_b")
    bias[_BIAS_ROW["fc_cnn"], :D_CNN] = g("fc_cnn_b")
    bias[_BIAS_ROW["gc"], :D_GRAPH] = g("gc_b")
    bias[_BIAS_ROW["rgcn"], :D_GRAPH] = g("rgcn_b")
    bias[_BIAS_ROW["lin"], :D_GRAPH] = g("lin_b")
    bias[_BIAS_ROW["smax"], :GRAPH_CLASS_NUM] = g("smax_b")

    return {"d32": jnp.asarray(d32), "d16": jnp.asarray(d16),
            "bias": jnp.asarray(bias)}


def build_topology(role, seq_length, graph_edge, b, s):
    """Precompute graph topology, packed into one (rows, width) buffer plus a
    max-pool mask; node count padded to a multiple of 8 for tile alignment."""
    n_nodes = int(sum(seq_length))
    n_pad = _r8(max(n_nodes, 1))
    offsets = np.concatenate([[0], np.cumsum(seq_length)[:-1]]).astype(np.int64)

    tl = _topo_layout(b, s, n_pad)
    pack = np.zeros((tl["rows"], tl["width"]), np.float32)

    # Block-diagonal edge mask over utterances + per-relation normalized adj.
    a_rel = np.zeros((N_RELATIONS, n_pad, n_pad), np.float32)
    for i, edges in enumerate(graph_edge):
        for (src, tgt) in edges:
            pack[tl["mask"] + i * s + src, i * s + tgt] = 1.0
            r = SPEAKER_TYPE_MAP[role[i][src]][role[i][tgt]]
            a_rel[r, offsets[i] + tgt, offsets[i] + src] += 1.0
    deg = a_rel.sum(axis=2, keepdims=True)
    a_rel = np.where(deg > 0, a_rel / np.maximum(deg, 1e-12), 0.0)
    pack[tl["arel"]:tl["arel"] + N_RELATIONS * n_pad, :n_pad] = \
        a_rel.reshape(N_RELATIONS * n_pad, n_pad)

    # Node gather matrix, graph membership, and max-pool additive mask.
    feat_dim = D_CNN + D_GRAPH
    pool_neg = np.full((b, n_pad, feat_dim), -1e30, np.float32)
    for i in range(b):
        for l in range(int(seq_length[i])):
            n = int(offsets[i]) + l
            pack[tl["sel"] + n, i * s + l] = 1.0     # sel[node, utterance]
            pack[tl["oh"] + i, n] = 1.0              # membership one-hot
            pool_neg[i, n, :] = 0.0

    topo = {"pack": jnp.asarray(pack), "pool_neg": jnp.asarray(pool_neg)}
    return topo, n_pad


# ------------------------------- forward pass --------------------------------
def err_miner_forward(packed, topo, input_ids, token_type_ids, attention_mask,
                      *, n_pad):
    b_, s_, w_ = input_ids.shape
    ids = jnp.stack([input_ids.reshape(-1), token_type_ids.reshape(-1),
                     attention_mask.reshape(-1)], axis=-1).astype(jnp.int32)
    kernel = functools.partial(err_miner_kernel, b=b_, s=s_, w=w_, n_pad=n_pad)
    # Grid-less, single launch; every buffer is KB-scale and fully VMEM-resident.
    return pl.pallas_call(
        kernel,
        out_shape=jax.ShapeDtypeStruct((b_, GRAPH_CLASS_NUM), jnp.float32),
    )(ids, packed["d32"], packed["d16"], packed["bias"],
      topo["pack"], topo["pool_neg"])


# ------------------------------- parameters ----------------------------------
def init_params(key):
    ks = jax.random.split(key, 24)

    def nrm(k, shape, scale=0.1):
        return (jax.random.normal(k, shape) * scale).astype(jnp.float32)

    p = {
        "tok_emb": nrm(ks[0], (VOCAB, D_BERT), 0.5),
        "type_emb": nrm(ks[1], (2, D_BERT), 0.5),
        "enc_w": nrm(ks[2], (D_BERT, D_BERT)),
        "enc_b": nrm(ks[3], (D_BERT,)),
        "fc_cnn_w": nrm(ks[4], (len(FILTER_SIZES) * FILTER_NUM, D_CNN)),
        "fc_cnn_b": nrm(ks[5], (D_CNN,)),
        "att_w": nrm(ks[6], (D_CNN, D_CNN)),
        "gc_root": nrm(ks[7], (D_CNN, D_GRAPH)),
        "gc_rel": nrm(ks[8], (D_CNN, D_GRAPH)),
        "gc_b": nrm(ks[9], (D_GRAPH,)),
        "rgcn_bases": nrm(ks[10], (NUM_BASES, D_GRAPH, D_GRAPH)),
        "rgcn_comp": nrm(ks[11], (N_RELATIONS, NUM_BASES)),
        "rgcn_root": nrm(ks[12], (D_GRAPH, D_GRAPH)),
        "rgcn_b": nrm(ks[13], (D_GRAPH,)),
        "lin_w": nrm(ks[14], (2 * (D_CNN + D_GRAPH), D_GRAPH)),
        "lin_b": nrm(ks[15], (D_GRAPH,)),
        "smax_w": nrm(ks[16], (D_GRAPH, GRAPH_CLASS_NUM)),
        "smax_b": nrm(ks[17], (GRAPH_CLASS_NUM,)),
    }
    for idx, k in enumerate(FILTER_SIZES):
        p[f"conv{k}_w"] = nrm(ks[18 + 2 * idx], (k, D_BERT, FILTER_NUM))
        p[f"conv{k}_b"] = nrm(ks[19 + 2 * idx], (FILTER_NUM,))
    return p


# ---------------------------------- main --------------------------------------
if __name__ == "__main__":
    key = jax.random.PRNGKey(0)
    pkey, dkey = jax.random.split(key)
    params = init_params(pkey)
    packed = pack_params(params)          # one-time host-side parameter packing

    b_, s_, w_ = 2, 4, 16
    input_ids = jax.random.randint(dkey, (b_, s_, w_), 0, VOCAB, dtype=jnp.int32)
    token_type_ids = jnp.zeros((b_, s_, w_), jnp.int32)
    attention_mask = jnp.ones((b_, s_, w_), jnp.int32).at[..., 12:].set(0)

    role = [[0, 1, 0, 1], [1, 0, 1, 0]]
    seq_length = [4, 3]
    graph_edge = [[(0, 1), (1, 2), (2, 3), (0, 3)],
                  [(0, 1), (1, 2), (0, 2)]]

    topo, n_pad = build_topology(role, seq_length, graph_edge, b_, s_)
    fwd = jax.jit(functools.partial(err_miner_forward, n_pad=n_pad))

    out = fwd(packed, topo, input_ids, token_type_ids, attention_mask)
    out = jax.block_until_ready(out)
    assert out.shape == (b_, GRAPH_CLASS_NUM)
    assert bool(jnp.all(jnp.isfinite(out)))
    print("KERNEL_OK")
</pallas_src>

<mosaic_0001>
module attributes {stable_mosaic.version = 11 : i64} {
  func.func @err_miner_kernel(%arg0: memref<128x3xi32, #tpu.memory_space<vmem>>, %arg1: memref<88x32xf32, #tpu.memory_space<vmem>>, %arg2: memref<320x16xf32, #tpu.memory_space<vmem>>, %arg3: memref<8x32xf32, #tpu.memory_space<vmem>>, %arg4: memref<56x8xf32, #tpu.memory_space<vmem>>, %arg5: memref<2x8x32xf32, #tpu.memory_space<vmem>>, %arg6: memref<2x2xf32, #tpu.memory_space<vmem>>) attributes {dimension_semantics = [], scalar_prefetch = 0 : i64, scratch_operands = 0 : i64, tpu.core_type = #tpu.core_type<tc>} {
    %c0 = arith.constant 0 : index
    %c0_0 = arith.constant 0 : index
    %0 = vector.load %arg0[%c0, %c0_0] : memref<128x3xi32, #tpu.memory_space<vmem>>, vector<128x3xi32>
    %1 = tpu.iota {dimensions = array<i32: 1>} : vector<128x56xi32>
    %2 = vector.extract_strided_slice %0 {offsets = [0, 0], sizes = [128, 1], strides = [1, 1]} : vector<128x3xi32> to vector<128x1xi32>
    %3 = vector.broadcast %2 : vector<128x1xi32> to vector<128x56xi32>
    %4 = arith.cmpi eq, %1, %3 : vector<128x56xi32>
    %5 = vector.extract_strided_slice %0 {offsets = [0, 1], sizes = [128, 1], strides = [1, 1]} : vector<128x3xi32> to vector<128x1xi32>
    %c50_i32 = arith.constant 50 : i32
    %6 = vector.broadcast %c50_i32 : i32 to vector<128x1xi32>
    %7 = arith.addi %5, %6 : vector<128x1xi32>
    %8 = vector.broadcast %7 : vector<128x1xi32> to vector<128x56xi32>
    %9 = arith.cmpi eq, %1, %8 : vector<128x56xi32>
    %10 = arith.ori %4, %9 : vector<128x56xi1>
    %11 = arith.extui %10 : vector<128x56xi1> to vector<128x56xi32>
    %12 = arith.sitofp %11 : vector<128x56xi32> to vector<128x56xf32>
    %c0_1 = arith.constant 0 : index
    %c0_2 = arith.constant 0 : index
    %13 = vector.load %arg1[%c0_1, %c0_2] : memref<88x32xf32, #tpu.memory_space<vmem>>, vector<56x32xf32>
    %cst = arith.constant dense<0.000000e+00> : vector<128x32xf32>
    %14 = tpu.matmul %12, %13, %cst {dimension_numbers = #tpu.dot_dimension_numbers<[1], [0], [0], [1], [0, 0, 1, 1], [], []>} : vector<128x56xf32>, vector<56x32xf32>, vector<128x32xf32> -> vector<128x32xf32>
    %c56 = arith.constant 56 : index
    %c0_3 = arith.constant 0 : index
    %15 = vector.load %arg1[%c56, %c0_3] : memref<88x32xf32, #tpu.memory_space<vmem>>, vector<32x32xf32>
    %cst_4 = arith.constant dense<0.000000e+00> : vector<128x32xf32>
    %16 = tpu.matmul %14, %15, %cst_4 {dimension_numbers = #tpu.dot_dimension_numbers<[1], [0], [0], [1], [0, 0, 1, 1], [], []>} : vector<128x32xf32>, vector<32x32xf32>, vector<128x32xf32> -> vector<128x32xf32>
    %c0_5 = arith.constant 0 : index
    %c0_6 = arith.constant 0 : index
    %17 = vector.load %arg3[%c0_5, %c0_6] : memref<8x32xf32, #tpu.memory_space<vmem>>, vector<1x32xf32>
    %18 = vector.broadcast %17 : vector<1x32xf32> to vector<128x32xf32>
    %19 = arith.addf %16, %18 : vector<128x32xf32>
    %20 = math.tanh %19 : vector<128x32xf32>
    %21 = vector.extract_strided_slice %0 {offsets = [0, 2], sizes = [128, 1], strides = [1, 1]} : vector<128x3xi32> to vector<128x1xi32>
    %c0_i32 = arith.constant 0 : i32
    %22 = vector.broadcast %c0_i32 : i32 to vector<128x1xi32>
    %23 = arith.cmpi sgt, %21, %22 : vector<128x1xi32>
    %cst_7 = arith.constant 0.000000e+00 : f32
    %24 = vector.shape_cast %23 : vector<128x1xi1> to vector<128x1xi1>
    %25 = vector.broadcast %24 : vector<128x1xi1> to vector<128x32xi1>
    %26 = vector.broadcast %cst_7 : f32 to vector<128x32xf32>
    %27 = arith.select %25, %20, %26 : vector<128x32xi1>, vector<128x32xf32>
    %c0_8 = arith.constant 0 : index
    %c0_9 = arith.constant 0 : index
    %28 = vector.load %arg2[%c0_8, %c0_9] : memref<320x16xf32, #tpu.memory_space<vmem>>, vector<32x16xf32>
    %cst_10 = arith.constant dense<0.000000e+00> : vector<128x16xf32>
    %29 = tpu.matmul %27, %28, %cst_10 {dimension_numbers = #tpu.dot_dimension_numbers<[1], [0], [0], [1], [0, 0, 1, 1], [], []>} : vector<128x32xf32>, vector<32x16xf32>, vector<128x16xf32> -> vector<128x16xf32>
    %c127_i32 = arith.constant 127 : i32
    %30 = tpu.dynamic_rotate %27 by %c127_i32 dim 0 : vector<128x32xf32>, i32 -> vector<128x32xf32>
    %c32 = arith.constant 32 : index
    %c0_11 = arith.constant 0 : index
    %31 = vector.load %arg2[%c32, %c0_11] : memref<320x16xf32, #tpu.memory_space<vmem>>, vector<32x16xf32>
    %cst_12 = arith.constant dense<0.000000e+00> : vector<128x16xf32>
    %32 = tpu.matmul %30, %31, %cst_12 {dimension_numbers = #tpu.dot_dimension_numbers<[1], [0], [0], [1], [0, 0, 1, 1], [], []>} : vector<128x32xf32>, vector<32x16xf32>, vector<128x16xf32> -> vector<128x16xf32>
    %33 = arith.addf %29, %32 : vector<128x16xf32>
    %c126_i32 = arith.constant 126 : i32
    %34 = tpu.dynamic_rotate %27 by %c126_i32 dim 0 : vector<128x32xf32>, i32 -> vector<128x32xf32>
    %c64 = arith.constant 64 : index
    %c0_13 = arith.constant 0 : index
    %35 = vector.load %arg2[%c64, %c0_13] : memref<320x16xf32, #tpu.memory_space<vmem>>, vector<32x16xf32>
    %cst_14 = arith.constant dense<0.000000e+00> : vector<128x16xf32>
    %36 = tpu.matmul %34, %35, %cst_14 {dimension_numbers = #tpu.dot_dimension_numbers<[1], [0], [0], [1], [0, 0, 1, 1], [], []>} : vector<128x32xf32>, vector<32x16xf32>, vector<128x16xf32> -> vector<128x16xf32>
    %37 = arith.addf %33, %36 : vector<128x16xf32>
    %c1 = arith.constant 1 : index
    %c0_15 = arith.constant 0 : index
    %38 = vector.load %arg3[%c1, %c0_15] : memref<8x32xf32, #tpu.memory_space<vmem>>, vector<1x16xf32>
    %39 = vector.broadcast %38 : vector<1x16xf32> to vector<128x16xf32>
    %40 = arith.addf %37, %39 : vector<128x16xf32>
    %cst_16 = arith.constant 0.000000e+00 : f32
    %41 = vector.broadcast %cst_16 : f32 to vector<128x16xf32>
    %42 = arith.maximumf %40, %41 : vector<128x16xf32>
    %43 = vector.shape_cast %42 : vector<128x16xf32> to vector<8x16x16xf32>
    %44 = tpu.iota {dimensions = array<i32: 1>} : vector<8x16x16xi32>
    %45 = tpu.iota {dimensions = array<i32: 2>} : vector<8x16x16xi32>
    %c0_i32_17 = arith.constant 0 : i32
    %46 = vector.broadcast %c0_i32_17 : i32 to vector<8x16x16xi32>
    %c0_i32_18 = arith.constant 0 : i32
    %47 = vector.broadcast %c0_i32_18 : i32 to vector<8x16x16xi32>
    %48 = arith.cmpi sge, %45, %47 : vector<8x16x16xi32>
    %c8_i32 = arith.constant 8 : i32
    %49 = vector.broadcast %c8_i32 : i32 to vector<8x16x16xi32>
    %50 = arith.cmpi slt, %45, %49 : vector<8x16x16xi32>
    %51 = arith.andi %48, %50 : vector<8x16x16xi1>
    %c15_i32 = arith.constant 15 : i32
    %52 = vector.broadcast %c15_i32 : i32 to vector<8x16x16xi32>
    %53 = arith.select %51, %52, %46 : vector<8x16x16xi1>, vector<8x16x16xi32>
    %c8_i32_19 = arith.constant 8 : i32
    %54 = vector.broadcast %c8_i32_19 : i32 to vector<8x16x16xi32>
    %55 = arith.cmpi sge, %45, %54 : vector<8x16x16xi32>
    %c16_i32 = arith.constant 16 : i32
    %56 = vector.broadcast %c16_i32 : i32 to vector<8x16x16xi32>
    %57 = arith.cmpi slt, %45, %56 : vector<8x16x16xi32>
    %58 = arith.andi %55, %57 : vector<8x16x16xi1>
    %c14_i32 = arith.constant 14 : i32
    %59 = vector.broadcast %c14_i32 : i32 to vector<8x16x16xi32>
    %60 = arith.select %58, %59, %53 : vector<8x16x16xi1>, vector<8x16x16xi32>
    %61 = arith.cmpi slt, %44, %60 : vector<8x16x16xi32>
    %cst_20 = arith.constant 0.000000e+00 : f32
    %62 = vector.broadcast %cst_20 : f32 to vector<8x16x16xf32>
    %63 = arith.select %61, %43, %62 : vector<8x16x16xi1>, vector<8x16x16xf32>
    %cst_21 = arith.constant dense<0xFF800000> : vector<8x16xf32>
    %64 = vector.multi_reduction <maximumf>, %63, %cst_21 [1] : vector<8x16x16xf32> to vector<8x16xf32>
    %c96 = arith.constant 96 : index
    %c0_22 = arith.constant 0 : index
    %65 = vector.load %arg2[%c96, %c0_22] : memref<320x16xf32, #tpu.memory_space<vmem>>, vector<16x16xf32>
    %cst_23 = arith.constant dense<0.000000e+00> : vector<8x16xf32>
    %66 = tpu.matmul %64, %65, %cst_23 {dimension_numbers = #tpu.dot_dimension_numbers<[1], [0], [0], [1], [0, 0, 1, 1], [], []>} : vector<8x16xf32>, vector<16x16xf32>, vector<8x16xf32> -> vector<8x16xf32>
    %c2 = arith.constant 2 : index
    %c0_24 = arith.constant 0 : index
    %67 = vector.load %arg3[%c2, %c0_24] : memref<8x32xf32, #tpu.memory_space<vmem>>, vector<1x16xf32>
    %68 = vector.broadcast %67 : vector<1x16xf32> to vector<8x16xf32>
    %69 = arith.addf %66, %68 : vector<8x16xf32>
    %cst_25 = arith.constant 0.000000e+00 : f32
    %70 = vector.broadcast %cst_25 : f32 to vector<8x16xf32>
    %71 = arith.maximumf %69, %70 : vector<8x16xf32>
    %c112 = arith.constant 112 : index
    %c0_26 = arith.constant 0 : index
    %72 = vector.load %arg2[%c112, %c0_26] : memref<320x16xf32, #tpu.memory_space<vmem>>, vector<16x16xf32>
    %cst_27 = arith.constant dense<0.000000e+00> : vector<8x16xf32>
    %73 = tpu.matmul %71, %72, %cst_27 {dimension_numbers = #tpu.dot_dimension_numbers<[1], [0], [0], [1], [0, 0, 1, 1], [], []>} : vector<8x16xf32>, vector<16x16xf32>, vector<8x16xf32> -> vector<8x16xf32>
    %cst_28 = arith.constant dense<0.000000e+00> : vector<8x8xf32>
    %74 = tpu.matmul %73, %71, %cst_28 {dimension_numbers = #tpu.dot_dimension_numbers<[1], [1], [0], [0], [0, 0, 1, 0], [], []>} : vector<8x16xf32>, vector<8x16xf32>, vector<8x8xf32> -> vector<8x8xf32>
    %c0_29 = arith.constant 0 : index
    %c0_30 = arith.constant 0 : index
    %75 = vector.load %arg4[%c0_29, %c0_30] : memref<56x8xf32, #tpu.memory_space<vmem>>, vector<8x8xf32>
    %cst_31 = arith.constant 0.000000e+00 : f32
    %76 = vector.broadcast %cst_31 : f32 to vector<8x8xf32>
    %77 = arith.cmpf ogt, %75, %76 : vector<8x8xf32>
    %cst_32 = arith.constant -1.000000e+30 : f32
    %78 = vector.broadcast %cst_32 : f32 to vector<8x8xf32>
    %79 = arith.select %77, %74, %78 : vector<8x8xi1>, vector<8x8xf32>
    %cst_33 = arith.constant dense<0xFF800000> : vector<8xf32>
    %80 = vector.multi_reduction <maximumf>, %79, %cst_33 [0] : vector<8x8xf32> to vector<8xf32>
    %81 = vector.shape_cast %80 : vector<8xf32> to vector<1x8xf32>
    %cst_34 = arith.constant 0.000000e+00 : f32
    %82 = vector.broadcast %cst_34 : f32 to vector<8x8xf32>
    %83 = arith.cmpf ogt, %75, %82 : vector<8x8xf32>
    %84 = vector.broadcast %81 : vector<1x8xf32> to vector<8x8xf32>
    %85 = arith.subf %79, %84 : vector<8x8xf32>
    %86 = math.exp %85 : vector<8x8xf32>
    %cst_35 = arith.constant 0.000000e+00 : f32
    %87 = vector.broadcast %cst_35 : f32 to vector<8x8xf32>
    %88 = arith.select %83, %86, %87 : vector<8x8xi1>, vector<8x8xf32>
    %cst_36 = arith.constant dense<0.000000e+00> : vector<8xf32>
    %89 = vector.multi_reduction <add>, %88, %cst_36 [0] : vector<8x8xf32> to vector<8xf32>
    %90 = vector.shape_cast %89 : vector<8xf32> to vector<1x8xf32>
    %cst_37 = arith.constant 0.000000e+00 : f32
    %91 = vector.broadcast %cst_37 : f32 to vector<1x8xf32>
    %92 = arith.cmpf ogt, %90, %91 : vector<1x8xf32>
    %cst_38 = arith.constant 1.000000e+00 : f32
    %93 = vector.broadcast %cst_38 : f32 to vector<1x8xf32>
    %94 = arith.select %92, %90, %93 : vector<1x8xi1>, vector<1x8xf32>
    %95 = vector.broadcast %94 : vector<1x8xf32> to vector<8x8xf32>
    %96 = arith.divf %88, %95 : vector<8x8xf32>
    %c8 = arith.constant 8 : index
    %c0_39 = arith.constant 0 : index
    %97 = vector.load %arg4[%c8, %c0_39] : memref<56x8xf32, #tpu.memory_space<vmem>>, vector<8x8xf32>
    %c16 = arith.constant 16 : index
    %c0_40 = arith.constant 0 : index
    %98 = vector.load %arg4[%c16, %c0_40] : memref<56x8xf32, #tpu.memory_space<vmem>>, vector<32x8xf32>
    %c48 = arith.constant 48 : index
    %c0_41 = arith.constant 0 : index
    %99 = vector.load %arg4[%c48, %c0_41] : memref<56x8xf32, #tpu.memory_space<vmem>>, vector<2x8xf32>
    %cst_42 = arith.constant dense<0.000000e+00> : vector<8x16xf32>
    %100 = tpu.matmul %97, %71, %cst_42 {dimension_numbers = #tpu.dot_dimension_numbers<[1], [0], [0], [1], [0, 0, 1, 1], [], []>} : vector<8x8xf32>, vector<8x16xf32>, vector<8x16xf32> -> vector<8x16xf32>
    %cst_43 = arith.constant dense<0.000000e+00> : vector<8x8xf32>
    %101 = tpu.matmul %97, %96, %cst_43 {dimension_numbers = #tpu.dot_dimension_numbers<[1], [1], [0], [0], [0, 0, 1, 0], [], []>} : vector<8x8xf32>, vector<8x8xf32>, vector<8x8xf32> -> vector<8x8xf32>
    %cst_44 = arith.constant dense<0.000000e+00> : vector<8x8xf32>
    %102 = tpu.matmul %101, %97, %cst_44 {dimension_numbers = #tpu.dot_dimension_numbers<[1], [1], [0], [0], [0, 0, 1, 0], [], []>} : vector<8x8xf32>, vector<8x8xf32>, vector<8x8xf32> -> vector<8x8xf32>
    %cst_45 = arith.constant dense<0.000000e+00> : vector<8x16xf32>
    %103 = tpu.matmul %102, %100, %cst_45 {dimension_numbers = #tpu.dot_dimension_numbers<[1], [0], [0], [1], [0, 0, 1, 1], [], []>} : vector<8x8xf32>, vector<8x16xf32>, vector<8x16xf32> -> vector<8x16xf32>
    %c128 = arith.constant 128 : index
    %c0_46 = arith.constant 0 : index
    %104 = vector.load %arg2[%c128, %c0_46] : memref<320x16xf32, #tpu.memory_space<vmem>>, vector<16x16xf32>
    %cst_47 = arith.constant dense<0.000000e+00> : vector<8x16xf32>
    %105 = tpu.matmul %100, %104, %cst_47 {dimension_numbers = #tpu.dot_dimension_numbers<[1], [0], [0], [1], [0, 0, 1, 1], [], []>} : vector<8x16xf32>, vector<16x16xf32>, vector<8x16xf32> -> vector<8x16xf32>
    %c144 = arith.constant 144 : index
    %c0_48 = arith.constant 0 : index
    %106 = vector.load %arg2[%c144, %c0_48] : memref<320x16xf32, #tpu.memory_space<vmem>>, vector<16x16xf32>
    %cst_49 = arith.constant dense<0.000000e+00> : vector<8x16xf32>
    %107 = tpu.matmul %103, %106, %cst_49 {dimension_numbers = #tpu.dot_dimension_numbers<[1], [0], [0], [1], [0, 0, 1, 1], [], []>} : vector<8x16xf32>, vector<16x16xf32>, vector<8x16xf32> -> vector<8x16xf32>
    %108 = arith.addf %105, %107 : vector<8x16xf32>
    %c3 = arith.constant 3 : index
    %c0_50 = arith.constant 0 : index
    %109 = vector.load %arg3[%c3, %c0_50] : memref<8x32xf32, #tpu.memory_space<vmem>>, vector<1x16xf32>
    %110 = vector.broadcast %109 : vector<1x16xf32> to vector<8x16xf32>
    %111 = arith.addf %108, %110 : vector<8x16xf32>
    %cst_51 = arith.constant 0.000000e+00 : f32
    %112 = vector.broadcast %cst_51 : f32 to vector<8x16xf32>
    %113 = arith.maximumf %111, %112 : vector<8x16xf32>
    %cst_52 = arith.constant dense<0.000000e+00> : vector<32x16xf32>
    %114 = tpu.matmul %98, %113, %cst_52 {dimension_numbers = #tpu.dot_dimension_numbers<[1], [0], [0], [1], [0, 0, 1, 1], [], []>} : vector<32x8xf32>, vector<8x16xf32>, vector<32x16xf32> -> vector<32x16xf32>
    %115 = vector.extract_strided_slice %114 {offsets = [0, 0], sizes = [8, 16], strides = [1, 1]} : vector<32x16xf32> to vector<8x16xf32>
    %116 = vector.extract_strided_slice %114 {offsets = [8, 0], sizes = [8, 16], strides = [1, 1]} : vector<32x16xf32> to vector<8x16xf32>
    %117 = vector.extract_strided_slice %114 {offsets = [16, 0], sizes = [8, 16], strides = [1, 1]} : vector<32x16xf32> to vector<8x16xf32>
    %118 = vector.extract_strided_slice %114 {offsets = [24, 0], sizes = [8, 16], strides = [1, 1]} : vector<32x16xf32> to vector<8x16xf32>
    %119 = tpu.concatenate %115, %116, %117, %118 in 1 : vector<8x16xf32>, vector<8x16xf32>, vector<8x16xf32>, vector<8x16xf32> -> vector<8x64xf32>
    %c224 = arith.constant 224 : index
    %c0_53 = arith.constant 0 : index
    %120 = vector.load %arg2[%c224, %c0_53] : memref<320x16xf32, #tpu.memory_space<vmem>>, vector<16x16xf32>
    %cst_54 = arith.constant dense<0.000000e+00> : vector<8x16xf32>
    %121 = tpu.matmul %113, %120, %cst_54 {dimension_numbers = #tpu.dot_dimension_numbers<[1], [0], [0], [1], [0, 0, 1, 1], [], []>} : vector<8x16xf32>, vector<16x16xf32>, vector<8x16xf32> -> vector<8x16xf32>
    %c160 = arith.constant 160 : index
    %c0_55 = arith.constant 0 : index
    %122 = vector.load %arg2[%c160, %c0_55] : memref<320x16xf32, #tpu.memory_space<vmem>>, vector<64x16xf32>
    %cst_56 = arith.constant dense<0.000000e+00> : vector<8x16xf32>
    %123 = tpu.matmul %119, %122, %cst_56 {dimension_numbers = #tpu.dot_dimension_numbers<[1], [0], [0], [1], [0, 0, 1, 1], [], []>} : vector<8x64xf32>, vector<64x16xf32>, vector<8x16xf32> -> vector<8x16xf32>
    %124 = arith.addf %121, %123 : vector<8x16xf32>
    %c4 = arith.constant 4 : index
    %c0_57 = arith.constant 0 : index
    %125 = vector.load %arg3[%c4, %c0_57] : memref<8x32xf32, #tpu.memory_space<vmem>>, vector<1x16xf32>
    %126 = vector.broadcast %125 : vector<1x16xf32> to vector<8x16xf32>
    %127 = arith.addf %124, %126 : vector<8x16xf32>
    %cst_58 = arith.constant 0.000000e+00 : f32
    %128 = vector.broadcast %cst_58 : f32 to vector<8x16xf32>
    %129 = arith.maximumf %127, %128 : vector<8x16xf32>
    %130 = tpu.concatenate %100, %129 in 1 : vector<8x16xf32>, vector<8x16xf32> -> vector<8x32xf32>
    %cst_59 = arith.constant dense<0.000000e+00> : vector<2x32xf32>
    %131 = tpu.matmul %99, %130, %cst_59 {dimension_numbers = #tpu.dot_dimension_numbers<[1], [0], [0], [1], [0, 0, 1, 1], [], []>} : vector<2x8xf32>, vector<8x32xf32>, vector<2x32xf32> -> vector<2x32xf32>
    %132 = vector.shape_cast %130 : vector<8x32xf32> to vector<1x8x32xf32>
    %c0_60 = arith.constant 0 : index
    %c0_61 = arith.constant 0 : index
    %c0_62 = arith.constant 0 : index
    %133 = vector.load %arg5[%c0_60, %c0_61, %c0_62] : memref<2x8x32xf32, #tpu.memory_space<vmem>>, vector<2x8x32xf32>
    %134 = vector.broadcast %132 : vector<1x8x32xf32> to vector<2x8x32xf32>
    %135 = arith.addf %134, %133 : vector<2x8x32xf32>
    %cst_63 = arith.constant dense<0xFF800000> : vector<2x32xf32>
    %136 = vector.multi_reduction <maximumf>, %135, %cst_63 [1] : vector<2x8x32xf32> to vector<2x32xf32>
    %cst_64 = arith.constant dense<0.000000e+00> : vector<2xf32>
    %137 = vector.multi_reduction <add>, %99, %cst_64 [1] : vector<2x8xf32> to vector<2xf32>
    %138 = vector.shape_cast %137 : vector<2xf32> to vector<2x1xf32>
    %cst_65 = arith.constant 0.000000e+00 : f32
    %139 = vector.broadcast %cst_65 : f32 to vector<2x1xf32>
    %140 = arith.cmpf ogt, %138, %139 : vector<2x1xf32>
    %cst_66 = arith.constant 0.000000e+00 : f32
    %141 = vector.shape_cast %140 : vector<2x1xi1> to vector<2x1xi1>
    %142 = vector.broadcast %141 : vector<2x1xi1> to vector<2x32xi1>
    %143 = vector.broadcast %cst_66 : f32 to vector<2x32xf32>
    %144 = arith.select %142, %136, %143 : vector<2x32xi1>, vector<2x32xf32>
    %145 = tpu.concatenate %131, %144 in 1 : vector<2x32xf32>, vector<2x32xf32> -> vector<2x64xf32>
    %c240 = arith.constant 240 : index
    %c0_67 = arith.constant 0 : index
    %146 = vector.load %arg2[%c240, %c0_67] : memref<320x16xf32, #tpu.memory_space<vmem>>, vector<64x16xf32>
    %cst_68 = arith.constant dense<0.000000e+00> : vector<2x16xf32>
    %147 = tpu.matmul %145, %146, %cst_68 {dimension_numbers = #tpu.dot_dimension_numbers<[1], [0], [0], [1], [0, 0, 1, 1], [], []>} : vector<2x64xf32>, vector<64x16xf32>, vector<2x16xf32> -> vector<2x16xf32>
    %c5 = arith.constant 5 : index
    %c0_69 = arith.constant 0 : index
    %148 = vector.load %arg3[%c5, %c0_69] : memref<8x32xf32, #tpu.memory_space<vmem>>, vector<1x16xf32>
    %149 = vector.broadcast %148 : vector<1x16xf32> to vector<2x16xf32>
    %150 = arith.addf %147, %149 : vector<2x16xf32>
    %cst_70 = arith.constant 0.000000e+00 : f32
    %151 = vector.broadcast %cst_70 : f32 to vector<2x16xf32>
    %152 = arith.maximumf %150, %151 : vector<2x16xf32>
    %c304 = arith.constant 304 : index
    %c0_71 = arith.constant 0 : index
    %153 = vector.load %arg2[%c304, %c0_71] : memref<320x16xf32, #tpu.memory_space<vmem>>, vector<16x16xf32>
    %cst_72 = arith.constant dense<0.000000e+00> : vector<2x16xf32>
    %154 = tpu.matmul %152, %153, %cst_72 {dimension_numbers = #tpu.dot_dimension_numbers<[1], [0], [0], [1], [0, 0, 1, 1], [], []>} : vector<2x16xf32>, vector<16x16xf32>, vector<2x16xf32> -> vector<2x16xf32>
    %155 = vector.extract_strided_slice %154 {offsets = [0, 0], sizes = [2, 2], strides = [1, 1]} : vector<2x16xf32> to vector<2x2xf32>
    %c6 = arith.constant 6 : index
    %c0_73 = arith.constant 0 : index
    %156 = vector.load %arg3[%c6, %c0_73] : memref<8x32xf32, #tpu.memory_space<vmem>>, vector<1x2xf32>
    %157 = vector.broadcast %156 : vector<1x2xf32> to vector<2x2xf32>
    %158 = arith.addf %155, %157 : vector<2x2xf32>
    %cst_74 = arith.constant dense<0xFF800000> : vector<2xf32>
    %159 = vector.multi_reduction <maximumf>, %158, %cst_74 [1] : vector<2x2xf32> to vector<2xf32>
    %160 = vector.shape_cast %159 : vector<2xf32> to vector<2x1xf32>
    %161 = vector.broadcast %160 : vector<2x1xf32> to vector<2x2xf32>
    %162 = arith.subf %158, %161 : vector<2x2xf32>
    %163 = math.exp %162 : vector<2x2xf32>
    %cst_75 = arith.constant dense<0.000000e+00> : vector<2xf32>
    %164 = vector.multi_reduction <add>, %163, %cst_75 [1] : vector<2x2xf32> to vector<2xf32>
    %165 = vector.shape_cast %164 : vector<2xf32> to vector<2x1xf32>
    %166 = math.log %165 : vector<2x1xf32>
    %167 = arith.addf %166, %160 : vector<2x1xf32>
    %168 = vector.broadcast %167 : vector<2x1xf32> to vector<2x2xf32>
    %169 = arith.subf %158, %168 : vector<2x2xf32>
    %c0_76 = arith.constant 0 : index
    %c0_77 = arith.constant 0 : index
    %170 = vector.load %arg6[%c0_76, %c0_77] : memref<2x2xf32, #tpu.memory_space<vmem>>, vector<2x2xf32>
    tpu.vector_store %arg6[%c0_76, %c0_77], %169 {strides = array<i32>} : memref<2x2xf32, #tpu.memory_space<vmem>>, vector<2x2xf32>,
    return
  }
}

</mosaic_0001>

<llo_original>
// kernel: err_miner_forward.1
$region0: #{err_miner_forward.1}
  #allocation0 [shape = 'u32[]', space=smem, size = 0x4, offset = 0x4, fixed_abs, tag = 'smem constant byte address 0x4 - core index']
  #allocation1 [shape = 'u32[144,128]{1,0:T(1,128)}', space=vmem, size = 0x12000, scoped, tag = 'internal scratch']
  %s0 = inlined_call_operand.vmem [shape: s32[128,3], index: 0, kind: input, shape index: {}]
  %s1 = inlined_call_operand.vmem [shape: f32[88,32], index: 1, kind: input, shape index: {}]
  %s2 = inlined_call_operand.vmem [shape: f32[320,16], index: 2, kind: input, shape index: {}]
  %s3 = inlined_call_operand.vmem [shape: f32[8,32], index: 3, kind: input, shape index: {}]
  %s4 = inlined_call_operand.vmem [shape: f32[56,8], index: 4, kind: input, shape index: {}]
  %s5 = inlined_call_operand.vmem [shape: f32[2,8,32], index: 5, kind: input, shape index: {}]
  %s6 = inlined_call_operand.hbm [shape: f32[2,2], index: 6, kind: output, shape index: {}]
  %s7 = sld [smem:[#allocation0]]
  $region34: #{err_miner_forward.1} parent=0
    _
  %s9 = ssub.s32 1, %s7
  %s10 = scalar_select 0, %s9, %s7
  $region1: #{err_miner_forward.1} parent=0
    #allocation2 [shape = 'u8[1024]{0}', space=vmem, size = 0x400, scoped, tag = 'output window, operand 0, single buffered']
    #allocation3 [shape = 's32[1]{0}', space=sflag, size = 0x4, scoped, tag = 'scoped memory for err_miner_forward.1']
    %11 = vsyncpa [#allocation3], 0
    // Predicated region
    $region2: #{err_miner_forward.1} parent=1 // pred_check
      _
    $region3: #{err_miner_forward.1} parent=1 // pred_check_branch
      %13 = sbr.rel (0) target = $region5
    $region4: #{err_miner_forward.1} parent=1 // pred_region
      _
    $region5: #{err_miner_forward.1} parent=1 // pred_fallthru
      _
    // Predicated region
    $region6: #{err_miner_forward.1} parent=1 // pred_check
      _
    $region7: #{err_miner_forward.1} parent=1 // pred_check_branch
      %15 = sbr.rel (0) target = $region9
    $region8: #{err_miner_forward.1} parent=1 // pred_region
      _
    $region9: #{err_miner_forward.1} parent=1 // pred_fallthru
      _
    // Predicated region
    $region10: #{err_miner_forward.1} parent=1 // pred_check
      _
    $region11: #{err_miner_forward.1} parent=1 // pred_check_branch
      %17 = sbr.rel (0) target = $region13
    $region12: #{err_miner_forward.1} parent=1 // pred_region
      _
    $region13: #{err_miner_forward.1} parent=1 // pred_fallthru
      _
    // Predicated region
    $region14: #{err_miner_forward.1} parent=1 // pred_check
      _
    $region15: #{err_miner_forward.1} parent=1 // pred_check_branch
      %19 = sbr.rel (0) target = $region17
    $region16: #{err_miner_forward.1} parent=1 // pred_region
      _
    $region17: #{err_miner_forward.1} parent=1 // pred_fallthru
      _
    // Predicated region
    $region18: #{err_miner_forward.1} parent=1 // pred_check
      _
    $region19: #{err_miner_forward.1} parent=1 // pred_check_branch
      %21 = sbr.rel (0) target = $region21
    $region20: #{err_miner_forward.1} parent=1 // pred_region
      _
    $region21: #{err_miner_forward.1} parent=1 // pred_fallthru
      _
    // Predicated region
    $region22: #{err_miner_forward.1} parent=1 // pred_check
      _
    $region23: #{err_miner_forward.1} parent=1 // pred_check_branch
      %23 = sbr.rel (0) target = $region25
    $region24: #{err_miner_forward.1} parent=1 // pred_region
      _
    $region25: #{err_miner_forward.1} parent=1 // pred_fallthru
      _
    %v24 = vld [vmem:[%s0] sm:$0xff]
    %v25 = vld [vmem:[%s0 + $0x8] sm:$0xff]
    %v26 = vld [vmem:[%s0 + $0x10] sm:$0xff]
    %v27 = vld [vmem:[%s0 + $0x18] sm:$0xff]
    %v28 = vld [vmem:[%s0 + $0x20] sm:$0xff]
    %v29 = vld [vmem:[%s0 + $0x28] sm:$0xff]
    %v30 = vld [vmem:[%s0 + $0x30] sm:$0xff]
    %v31 = vld [vmem:[%s0 + $0x38] sm:$0xff]
    %v32 = vld [vmem:[%s0 + $0x40] sm:$0xff]
    %v33 = vld [vmem:[%s0 + $0x48] sm:$0xff]
    %v34 = vld [vmem:[%s0 + $0x50] sm:$0xff]
    %v35 = vld [vmem:[%s0 + $0x58] sm:$0xff]
    %v36 = vld [vmem:[%s0 + $0x60] sm:$0xff]
    %v37 = vld [vmem:[%s0 + $0x68] sm:$0xff]
    %v38 = vld [vmem:[%s0 + $0x70] sm:$0xff]
    %v39 = vld [vmem:[%s0 + $0x78] sm:$0xff]
    %v40 = vlaneseq
    %v41 = vand.u32 %v40, 127
    %42 = vset.pattern.permute.xlu0 0
    %43 = vperm.xlu0 %42, %v24
    %v44 = vpop.permute.xlu0 %43
    %45 = vset.pattern.permute.xlu0 0
    %46 = vperm.xlu0 %45, %v25
    %v47 = vpop.permute.xlu0 %46
    %48 = vset.pattern.permute.xlu0 0
    %49 = vperm.xlu0 %48, %v26
    %v50 = vpop.permute.xlu0 %49
    %51 = vset.pattern.permute.xlu0 0
    %52 = vperm.xlu0 %51, %v27
    %v53 = vpop.permute.xlu0 %52
    %54 = vset.pattern.permute.xlu0 0
    %55 = vperm.xlu0 %54, %v28
    %v56 = vpop.permute.xlu0 %55
    %57 = vset.pattern.permute.xlu0 0
    %58 = vperm.xlu0 %57, %v29
    %v59 = vpop.permute.xlu0 %58
    %60 = vset.pattern.permute.xlu0 0
    %61 = vperm.xlu0 %60, %v30
    %v62 = vpop.permute.xlu0 %61
    %63 = vset.pattern.permute.xlu0 0
    %64 = vperm.xlu0 %63, %v31
    %v65 = vpop.permute.xlu0 %64
    %66 = vset.pattern.permute.xlu0 0
    %67 = vperm.xlu0 %66, %v32
    %v68 = vpop.permute.xlu0 %67
    %69 = vset.pattern.permute.xlu0 0
    %70 = vperm.xlu0 %69, %v33
    %v71 = vpop.permute.xlu0 %70
    %72 = vset.pattern.permute.xlu0 0
    %73 = vperm.xlu0 %72, %v34
    %v74 = vpop.permute.xlu0 %73
    %75 = vset.pattern.permute.xlu0 0
    %76 = vperm.xlu0 %75, %v35
    %v77 = vpop.permute.xlu0 %76
    %78 = vset.pattern.permute.xlu0 0
    %79 = vperm.xlu0 %78, %v36
    %v80 = vpop.permute.xlu0 %79
    %81 = vset.pattern.permute.xlu0 0
    %82 = vperm.xlu0 %81, %v37
    %v83 = vpop.permute.xlu0 %82
    %84 = vset.pattern.permute.xlu0 0
    %85 = vperm.xlu0 %84, %v38
    %v86 = vpop.permute.xlu0 %85
    %87 = vset.pattern.permute.xlu0 0
    %88 = vperm.xlu0 %87, %v39
    %v89 = vpop.permute.xlu0 %88
    %vm90 = vcmp.eq.s32.totalorder %v41, %v44
    %vm91 = vcmp.eq.s32.totalorder %v41, %v47
    %vm92 = vcmp.eq.s32.totalorder %v41, %v50
    %vm93 = vcmp.eq.s32.totalorder %v41, %v53
    %vm94 = vcmp.eq.s32.totalorder %v41, %v56
    %vm95 = vcmp.eq.s32.totalorder %v41, %v59
    %vm96 = vcmp.eq.s32.totalorder %v41, %v62
    %vm97 = vcmp.eq.s32.totalorder %v41, %v65
    %vm98 = vcmp.eq.s32.totalorder %v41, %v68
    %vm99 = vcmp.eq.s32.totalorder %v41, %v71
    %vm100 = vcmp.eq.s32.totalorder %v41, %v74
    %vm101 = vcmp.eq.s32.totalorder %v41, %v77
    %vm102 = vcmp.eq.s32.totalorder %v41, %v80
    %vm103 = vcmp.eq.s32.totalorder %v41, %v83
    %vm104 = vcmp.eq.s32.totalorder %v41, %v86
    %vm105 = vcmp.eq.s32.totalorder %v41, %v89
    %v106 = vadd.s32 %v24, 50
    %v107 = vadd.s32 %v25, 50
    %v108 = vadd.s32 %v26, 50
    %v109 = vadd.s32 %v27, 50
    %v110 = vadd.s32 %v28, 50
    %v111 = vadd.s32 %v29, 50
    %v112 = vadd.s32 %v30, 50
    %v113 = vadd.s32 %v31, 50
    %v114 = vadd.s32 %v32, 50
    %v115 = vadd.s32 %v33, 50
    %v116 = vadd.s32 %v34, 50
    %v117 = vadd.s32 %v35, 50
    %v118 = vadd.s32 %v36, 50
    %v119 = vadd.s32 %v37, 50
    %v120 = vadd.s32 %v38, 50
    %v121 = vadd.s32 %v39, 50
    %122 = vset.pattern.permute.xlu0 1
    %123 = vperm.xlu0 %122, %v106
    %v124 = vpop.permute.xlu0 %123
    %125 = vset.pattern.permute.xlu0 1
    %126 = vperm.xlu0 %125, %v107
    %v127 = vpop.permute.xlu0 %126
    %128 = vset.pattern.permute.xlu0 1
    %129 = vperm.xlu0 %128, %v108
    %v130 = vpop.permute.xlu0 %129
    %131 = vset.pattern.permute.xlu0 1
    %132 = vperm.xlu0 %131, %v109
    %v133 = vpop.permute.xlu0 %132
    %134 = vset.pattern.permute.xlu0 1
    %135 = vperm.xlu0 %134, %v110
    %v136 = vpop.permute.xlu0 %135
    %137 = vset.pattern.permute.xlu0 1
    %138 = vperm.xlu0 %137, %v111
    %v139 = vpop.permute.xlu0 %138
    %140 = vset.pattern.permute.xlu0 1
    %141 = vperm.xlu0 %140, %v112
    %v142 = vpop.permute.xlu0 %141
    %143 = vset.pattern.permute.xlu0 1
    %144 = vperm.xlu0 %143, %v113
    %v145 = vpop.permute.xlu0 %144
    %146 = vset.pattern.permute.xlu0 1
    %147 = vperm.xlu0 %146, %v114
    %v148 = vpop.permute.xlu0 %147
    %149 = vset.pattern.permute.xlu0 1
    %150 = vperm.xlu0 %149, %v115
    %v151 = vpop.permute.xlu0 %150
    %152 = vset.pattern.permute.xlu0 1
    %153 = vperm.xlu0 %152, %v116
    %v154 = vpop.permute.xlu0 %153
    %155 = vset.pattern.permute.xlu0 1
    %156 = vperm.xlu0 %155, %v117
    %v157 = vpop.permute.xlu0 %156
    %158 = vset.pattern.permute.xlu0 1
    %159 = vperm.xlu0 %158, %v118
    %v160 = vpop.permute.xlu0 %159
    %161 = vset.pattern.permute.xlu0 1
    %162 = vperm.xlu0 %161, %v119
    %v163 = vpop.permute.xlu0 %162
    %164 = vset.pattern.permute.xlu0 1
    %165 = vperm.xlu0 %164, %v120
    %v166 = vpop.permute.xlu0 %165
    %167 = vset.pattern.permute.xlu0 1
    %168 = vperm.xlu0 %167, %v121
    %v169 = vpop.permute.xlu0 %168
    %vm170 = vcmp.eq.s32.totalorder %v41, %v124
    %vm171 = vcmp.eq.s32.totalorder %v41, %v127
    %vm172 = vcmp.eq.s32.totalorder %v41, %v130
    %vm173 = vcmp.eq.s32.totalorder %v41, %v133
    %vm174 = vcmp.eq.s32.totalorder %v41, %v136
    %vm175 = vcmp.eq.s32.totalorder %v41, %v139
    %vm176 = vcmp.eq.s32.totalorder %v41, %v142
    %vm177 = vcmp.eq.s32.totalorder %v41, %v145
    %vm178 = vcmp.eq.s32.totalorder %v41, %v148
    %vm179 = vcmp.eq.s32.totalorder %v41, %v151
    %vm180 = vcmp.eq.s32.totalorder %v41, %v154
    %vm181 = vcmp.eq.s32.totalorder %v41, %v157
    %vm182 = vcmp.eq.s32.totalorder %v41, %v160
    %vm183 = vcmp.eq.s32.totalorder %v41, %v163
    %vm184 = vcmp.eq.s32.totalorder %v41, %v166
    %vm185 = vcmp.eq.s32.totalorder %v41, %v169
    %vm186 = vmor %vm90, %vm170
    %vm187 = vmor %vm91, %vm171
    %vm188 = vmor %vm92, %vm172
    %vm189 = vmor %vm93, %vm173
    %vm190 = vmor %vm94, %vm174
    %vm191 = vmor %vm95, %vm175
    %vm192 = vmor %vm96, %vm176
    %vm193 = vmor %vm97, %vm177
    %vm194 = vmor %vm98, %vm178
    %vm195 = vmor %vm99, %vm179
    %vm196 = vmor %vm100, %vm180
    %vm197 = vmor %vm101, %vm181
    %vm198 = vmor %vm102, %vm182
    %vm199 = vmor %vm103, %vm183
    %vm200 = vmor %vm104, %vm184
    %vm201 = vmor %vm105, %vm185
    %v202 = vsel %vm186, 1, 0
    %v203 = vsel %vm187, 1, 0
    %v204 = vsel %vm188, 1, 0
    %v205 = vsel %vm189, 1, 0
    %v206 = vsel %vm190, 1, 0
    %v207 = vsel %vm191, 1, 0
    %v208 = vsel %vm192, 1, 0
    %v209 = vsel %vm193, 1, 0
    %v210 = vsel %vm194, 1, 0
    %v211 = vsel %vm195, 1, 0
    %v212 = vsel %vm196, 1, 0
    %v213 = vsel %vm197, 1, 0
    %v214 = vsel %vm198, 1, 0
    %v215 = vsel %vm199, 1, 0
    %v216 = vsel %vm200, 1, 0
    %v217 = vsel %vm201, 1, 0
    %v218 = vcvt.s32.f32 %v202
    %v219 = vcvt.s32.f32 %v203
    %v220 = vcvt.s32.f32 %v204
    %v221 = vcvt.s32.f32 %v205
    %v222 = vcvt.s32.f32 %v206
    %v223 = vcvt.s32.f32 %v207
    %v224 = vcvt.s32.f32 %v208
    %v225 = vcvt.s32.f32 %v209
    %v226 = vcvt.s32.f32 %v210
    %v227 = vcvt.s32.f32 %v211
    %v228 = vcvt.s32.f32 %v212
    %v229 = vcvt.s32.f32 %v213
    %v230 = vcvt.s32.f32 %v214
    %v231 = vcvt.s32.f32 %v215
    %v232 = vcvt.s32.f32 %v216
    %v233 = vcvt.s32.f32 %v217
    %v234 = vld [vmem:[%s1] sm:$0xff]
    %v235 = vld [vmem:[%s1 + $0x8] sm:$0xff]
    %v236 = vld [vmem:[%s1 + $0x10] sm:$0xff]
    %v237 = vld [vmem:[%s1 + $0x18] sm:$0xff]
    %v238 = vld [vmem:[%s1 + $0x20] sm:$0xff]
    %v239 = vld [vmem:[%s1 + $0x28] sm:$0xff]
    %v240 = vld [vmem:[%s1 + $0x30] sm:$0xff]
    %vm241 = vcmask 457728
    %v243 = vsel %vm241, %v218, 0
    %v246 = vsel %vm241, %v219, 0
    %v249 = vsel %vm241, %v220, 0
    %v252 = vsel %vm241, %v221, 0
    %v255 = vsel %vm241, %v222, 0
    %v258 = vsel %vm241, %v223, 0
    %v261 = vsel %vm241, %v224, 0
    %v264 = vsel %vm241, %v225, 0
    %v267 = vsel %vm241, %v226, 0
    %v270 = vsel %vm241, %v227, 0
    %v273 = vsel %vm241, %v228, 0
    %v276 = vsel %vm241, %v229, 0
    %v279 = vsel %vm241, %v230, 0
    %v282 = vsel %vm241, %v231, 0
    %v285 = vsel %vm241, %v232, 0
    %v288 = vsel %vm241, %v233, 0
    %290 = vmatprep.subr.mxu0 0.0
    %291 = vmatpush1.msra.mxu0 0.0
    %292 = vmatprep.subr.mxu0 0.0
    %293 = vmatpush1.msra.mxu0 0.0
    %294 = vmatprep.subr.mxu0 0.0
    %295 = vmatpush1.msra.mxu0 0.0
    %296 = vmatprep.subr.mxu0 0.0
    %297 = vmatpush1.msra.mxu0 0.0
    %298 = vmatprep.subr.mxu0 0.0
    %299 = vmatpush1.msra.mxu0 0.0
    %300 = vmatprep.subr.mxu0 0.0
    %301 = vmatpush1.msra.mxu0 0.0
    %302 = vmatprep.subr.mxu0 0.0
    %303 = vmatpush1.msra.mxu0 0.0
    %304 = vmatprep.subr.mxu0 0.0
    %305 = vmatpush1.msra.mxu0 0.0
    %306 = vmatprep.subr.mxu0 0.0
    %307 = vmatpush1.msra.mxu0 0.0
    %308 = vmatprep.subr.mxu0 0.0
    %309 = vmatpush1.msra.mxu0 %v240
    %310 = vmatprep.subr.mxu0 0.0
    %311 = vmatpush1.msra.mxu0 %v239
    %312 = vmatprep.subr.mxu0 0.0
    %313 = vmatpush1.msra.mxu0 %v238
    %314 = vmatprep.subr.mxu0 0.0
    %315 = vmatpush1.msra.mxu0 %v237
    %316 = vmatprep.subr.mxu0 0.0
    %317 = vmatpush1.msra.mxu0 %v236
    %318 = vmatprep.subr.mxu0 0.0
    %319 = vmatpush1.msra.mxu0 %v235
    %320 = vmatprep.subr.mxu0 0.0
    %321 = vmatpush1.msra.mxu0 %v234
    %322 = vmatprep.subr.mxu0 0.0
    %323 = vmatpush2.msra.mxu0 0.0
    %324 = vmatprep.subr.mxu0 0.0
    %325 = vmatpush2.msra.mxu0 0.0
    %326 = vmatprep.subr.mxu0 0.0
    %327 = vmatpush2.msra.mxu0 0.0
    %328 = vmatprep.subr.mxu0 0.0
    %329 = vmatpush2.msra.mxu0 0.0
    %330 = vmatprep.subr.mxu0 0.0
    %331 = vmatpush2.msra.mxu0 0.0
    %332 = vmatprep.subr.mxu0 0.0
    %333 = vmatpush2.msra.mxu0 0.0
    %334 = vmatprep.subr.mxu0 0.0
    %335 = vmatpush2.msra.mxu0 0.0
    %336 = vmatprep.subr.mxu0 0.0
    %337 = vmatpush2.msra.mxu0 0.0
    %338 = vmatprep.subr.mxu0 0.0
    %339 = vmatpush2.msra.mxu0 0.0
    %340 = vmatprep.subr.mxu0 0.0
    %341 = vmatpush2.msra.mxu0 0.0
    %342 = vmatprep.subr.mxu0 0.0
    %343 = vmatpush2.msra.mxu0 0.0
    %344 = vmatprep.subr.mxu0 0.0
    %345 = vmatpush2.msra.mxu0 0.0
    %346 = vmatprep.subr.mxu0 0.0
    %347 = vmatpush2.msra.mxu0 0.0
    %348 = vmatprep.subr.mxu0 0.0
    %349 = vmatpush2.msra.mxu0 0.0
    %350 = vmatprep.subr.mxu0 0.0
    %351 = vmatpush2.msra.mxu0 0.0
    %352 = vmatprep.subr.mxu0 0.0
    %353 = vmatpush2.msra.mxu0 0.0
    %354 = vmatprep.mubr.f32.mxu0 0.0
    %355 = vmatmul.mubr.f32.gmra.mxu0 %v243
    %v356 = vpop.f32.mrf.mxu0
    %v357 = vadd.f32 0.0, %v356
    %v358 = vpop.f32.mrf.mxu0
    %359 = vmatprep.mubr.f32.mxu0 0.0
    %360 = vmatmul.mubr.f32.gmra.mxu0 %v246
    %v361 = vpop.f32.mrf.mxu0
    %v362 = vadd.f32 0.0, %v361
    %v363 = vpop.f32.mrf.mxu0
    %364 = vmatprep.mubr.f32.mxu0 0.0
    %365 = vmatmul.mubr.f32.gmra.mxu0 %v249
    %v366 = vpop.f32.mrf.mxu0
    %v367 = vadd.f32 0.0, %v366
    %v368 = vpop.f32.mrf.mxu0
    %369 = vmatprep.mubr.f32.mxu0 0.0
    %370 = vmatmul.mubr.f32.gmra.mxu0 %v252
    %v371 = vpop.f32.mrf.mxu0
    %v372 = vadd.f32 0.0, %v371
    %v373 = vpop.f32.mrf.mxu0
    %374 = vmatprep.mubr.f32.mxu0 0.0
    %375 = vmatmul.mubr.f32.gmra.mxu0 %v255
    %v376 = vpop.f32.mrf.mxu0
    %v377 = vadd.f32 0.0, %v376
    %v378 = vpop.f32.mrf.mxu0
    %379 = vmatprep.mubr.f32.mxu0 0.0
    %380 = vmatmul.mubr.f32.gmra.mxu0 %v258
    %v381 = vpop.f32.mrf.mxu0
    %v382 = vadd.f32 0.0, %v381
    %v383 = vpop.f32.mrf.mxu0
    %384 = vmatprep.mubr.f32.mxu0 0.0
    %385 = vmatmul.mubr.f32.gmra.mxu0 %v261
    %v386 = vpop.f32.mrf.mxu0
    %v387 = vadd.f32 0.0, %v386
    %v388 = vpop.f32.mrf.mxu0
    %389 = vmatprep.mubr.f32.mxu0 0.0
    %390 = vmatmul.mubr.f32.gmra.mxu0 %v264
    %v391 = vpop.f32.mrf.mxu0
    %v392 = vadd.f32 0.0, %v391
    %v393 = vpop.f32.mrf.mxu0
    %394 = vmatprep.mubr.f32.mxu0 0.0
    %395 = vmatmul.mubr.f32.gmra.mxu0 %v267
    %v396 = vpop.f32.mrf.mxu0
    %v397 = vadd.f32 0.0, %v396
    %v398 = vpop.f32.mrf.mxu0
    %399 = vmatprep.mubr.f32.mxu0 0.0
    %400 = vmatmul.mubr.f32.gmra.mxu0 %v270
    %v401 = vpop.f32.mrf.mxu0
    %v402 = vadd.f32 0.0, %v401
    %v403 = vpop.f32.mrf.mxu0
    %404 = vmatprep.mubr.f32.mxu0 0.0
    %405 = vmatmul.mubr.f32.gmra.mxu0 %v273
    %v406 = vpop.f32.mrf.mxu0
    %v407 = vadd.f32 0.0, %v406
    %v408 = vpop.f32.mrf.mxu0
    %409 = vmatprep.mubr.f32.mxu0 0.0
    %410 = vmatmul.mubr.f32.gmra.mxu0 %v276
    %v411 = vpop.f32.mrf.mxu0
    %v412 = vadd.f32 0.0, %v411
    %v413 = vpop.f32.mrf.mxu0
    %414 = vmatprep.mubr.f32.mxu0 0.0
    %415 = vmatmul.mubr.f32.gmra.mxu0 %v279
    %v416 = vpop.f32.mrf.mxu0
    %v417 = vadd.f32 0.0, %v416
    %v418 = vpop.f32.mrf.mxu0
    %419 = vmatprep.mubr.f32.mxu0 0.0
    %420 = vmatmul.mubr.f32.gmra.mxu0 %v282
    %v421 = vpop.f32.mrf.mxu0
    %v422 = vadd.f32 0.0, %v421
    %v423 = vpop.f32.mrf.mxu0
    %424 = vmatprep.mubr.f32.mxu0 0.0
    %425 = vmatmul.mubr.f32.gmra.mxu0 %v285
    %v426 = vpop.f32.mrf.mxu0
    %v427 = vadd.f32 0.0, %v426
    %v428 = vpop.f32.mrf.mxu0
    %429 = vmatprep.mubr.f32.mxu0 0.0
    %430 = vmatmul.mubr.f32.gmra.mxu0 %v288
    %v431 = vpop.f32.mrf.mxu0
    %v432 = vadd.f32 0.0, %v431
    %v433 = vpop.f32.mrf.mxu0
    %434 = vdwg.mxu0
    %v435 = vld [vmem:[%s1 + $0x38] sm:$0xff]
    %v436 = vld [vmem:[%s1 + $0x40] sm:$0xff]
    %v437 = vld [vmem:[%s1 + $0x48] sm:$0xff]
    %v438 = vld [vmem:[%s1 + $0x50] sm:$0xff]
    %v439 = vld [vmem:[%s3] sm:$0x1]
    %v440 = vlaneseq
    %v441 = vshrl.u32 %v440, 7
    %v442 = vsub.s32 0, %v441
    %v443 = vrot.slane %v439, %v442
    %vm444 = vcmask 261120
    %v446 = vsel %vm444, %v357, 0
    %v449 = vsel %vm444, %v362, 0
    %v452 = vsel %vm444, %v367, 0
    %v455 = vsel %vm444, %v372, 0
    %v458 = vsel %vm444, %v377, 0
    %v461 = vsel %vm444, %v382, 0
    %v464 = vsel %vm444, %v387, 0
    %v467 = vsel %vm444, %v392, 0
    %v470 = vsel %vm444, %v397, 0
    %v473 = vsel %vm444, %v402, 0
    %v476 = vsel %vm444, %v407, 0
    %v479 = vsel %vm444, %v412, 0
    %v482 = vsel %vm444, %v417, 0
    %v485 = vsel %vm444, %v422, 0
    %v488 = vsel %vm444, %v427, 0
    %v491 = vsel %vm444, %v432, 0
    %493 = vmatprep.subr.mxu0 0.0
    %494 = vmatpush1.msra.mxu0 0.0
    %495 = vmatprep.subr.mxu0 0.0
    %496 = vmatpush1.msra.mxu0 0.0
    %497 = vmatprep.subr.mxu0 0.0
    %498 = vmatpush1.msra.mxu0 0.0
    %499 = vmatprep.subr.mxu0 0.0
    %500 = vmatpush1.msra.mxu0 0.0
    %501 = vmatprep.subr.mxu0 0.0
    %502 = vmatpush1.msra.mxu0 0.0
    %503 = vmatprep.subr.mxu0 0.0
    %504 = vmatpush1.msra.mxu0 0.0
    %505 = vmatprep.subr.mxu0 0.0
    %506 = vmatpush1.msra.mxu0 0.0
    %507 = vmatprep.subr.mxu0 0.0
    %508 = vmatpush1.msra.mxu0 0.0
    %509 = vmatprep.subr.mxu0 0.0
    %510 = vmatpush1.msra.mxu0 0.0
    %511 = vmatprep.subr.mxu0 0.0
    %512 = vmatpush1.msra.mxu0 0.0
    %513 = vmatprep.subr.mxu0 0.0
    %514 = vmatpush1.msra.mxu0 0.0
    %515 = vmatprep.subr.mxu0 0.0
    %516 = vmatpush1.msra.mxu0 0.0
    %517 = vmatprep.subr.mxu0 0.0
    %518 = vmatpush1.msra.mxu0 %v438
    %519 = vmatprep.subr.mxu0 0.0
    %520 = vmatpush1.msra.mxu0 %v437
    %521 = vmatprep.subr.mxu0 0.0
    %522 = vmatpush1.msra.mxu0 %v436
    %523 = vmatprep.subr.mxu0 0.0
    %524 = vmatpush1.msra.mxu0 %v435
    %525 = vmatprep.subr.mxu0 0.0
    %526 = vmatpush2.msra.mxu0 0.0
    %527 = vmatprep.subr.mxu0 0.0
    %528 = vmatpush2.msra.mxu0 0.0
    %529 = vmatprep.subr.mxu0 0.0
    %530 = vmatpush2.msra.mxu0 0.0
    %531 = vmatprep.subr.mxu0 0.0
    %532 = vmatpush2.msra.mxu0 0.0
    %533 = vmatprep.subr.mxu0 0.0
    %534 = vmatpush2.msra.mxu0 0.0
    %535 = vmatprep.subr.mxu0 0.0
    %536 = vmatpush2.msra.mxu0 0.0
    %537 = vmatprep.subr.mxu0 0.0
    %538 = vmatpush2.msra.mxu0 0.0
    %539 = vmatprep.subr.mxu0 0.0
    %540 = vmatpush2.msra.mxu0 0.0
    %541 = vmatprep.subr.mxu0 0.0
    %542 = vmatpush2.msra.mxu0 0.0
    %543 = vmatprep.subr.mxu0 0.0
    %544 = vmatpush2.msra.mxu0 0.0
    %545 = vmatprep.subr.mxu0 0.0
    %546 = vmatpush2.msra.mxu0 0.0
    %547 = vmatprep.subr.mxu0 0.0
    %548 = vmatpush2.msra.mxu0 0.0
    %549 = vmatprep.subr.mxu0 0.0
    %550 = vmatpush2.msra.mxu0 0.0
    %551 = vmatprep.subr.mxu0 0.0
    %552 = vmatpush2.msra.mxu0 0.0
    %553 = vmatprep.subr.mxu0 0.0
    %554 = vmatpush2.msra.mxu0 0.0
    %555 = vmatprep.subr.mxu0 0.0
    %556 = vmatpush2.msra.mxu0 0.0
    %557 = vmatprep.mubr.f32.mxu0 0.0
    %558 = vmatmul.mubr.f32.gmra.mxu0 %v446
    %v559 = vpop.f32.mrf.mxu0
    %v560 = vadd.f32 %v443, %v559
    %v561 = vpop.f32.mrf.mxu0
    %562 = vmatprep.mubr.f32.mxu0 0.0
    %563 = vmatmul.mubr.f32.gmra.mxu0 %v449
    %v564 = vpop.f32.mrf.mxu0
    %v565 = vadd.f32 %v443, %v564
    %v566 = vpop.f32.mrf.mxu0
    %567 = vmatprep.mubr.f32.mxu0 0.0
    %568 = vmatmul.mubr.f32.gmra.mxu0 %v452
    %v569 = vpop.f32.mrf.mxu0
    %v570 = vadd.f32 %v443, %v569
    %v571 = vpop.f32.mrf.mxu0
    %572 = vmatprep.mubr.f32.mxu0 0.0
    %573 = vmatmul.mubr.f32.gmra.mxu0 %v455
    %v574 = vpop.f32.mrf.mxu0
    %v575 = vadd.f32 %v443, %v574
    %v576 = vpop.f32.mrf.mxu0
    %577 = vmatprep.mubr.f32.mxu0 0.0
    %578 = vmatmul.mubr.f32.gmra.mxu0 %v458
    %v579 = vpop.f32.mrf.mxu0
    %v580 = vadd.f32 %v443, %v579
    %v581 = vpop.f32.mrf.mxu0
    %582 = vmatprep.mubr.f32.mxu0 0.0
    %583 = vmatmul.mubr.f32.gmra.mxu0 %v461
    %v584 = vpop.f32.mrf.mxu0
    %v585 = vadd.f32 %v443, %v584
    %v586 = vpop.f32.mrf.mxu0
    %587 = vmatprep.mubr.f32.mxu0 0.0
    %588 = vmatmul.mubr.f32.gmra.mxu0 %v464
    %v589 = vpop.f32.mrf.mxu0
    %v590 = vadd.f32 %v443, %v589
    %v591 = vpop.f32.mrf.mxu0
    %592 = vmatprep.mubr.f32.mxu0 0.0
    %593 = vmatmul.mubr.f32.gmra.mxu0 %v467
    %v594 = vpop.f32.mrf.mxu0
    %v595 = vadd.f32 %v443, %v594
    %v596 = vpop.f32.mrf.mxu0
    %597 = vmatprep.mubr.f32.mxu0 0.0
    %598 = vmatmul.mubr.f32.gmra.mxu0 %v470
    %v599 = vpop.f32.mrf.mxu0
    %v600 = vadd.f32 %v443, %v599
    %v601 = vpop.f32.mrf.mxu0
    %602 = vmatprep.mubr.f32.mxu0 0.0
    %603 = vmatmul.mubr.f32.gmra.mxu0 %v473
    %v604 = vpop.f32.mrf.mxu0
    %v605 = vadd.f32 %v443, %v604
    %v606 = vpop.f32.mrf.mxu0
    %607 = vmatprep.mubr.f32.mxu0 0.0
    %608 = vmatmul.mubr.f32.gmra.mxu0 %v476
    %v609 = vpop.f32.mrf.mxu0
    %v610 = vadd.f32 %v443, %v609
    %v611 = vpop.f32.mrf.mxu0
    %612 = vmatprep.mubr.f32.mxu0 0.0
    %613 = vmatmul.mubr.f32.gmra.mxu0 %v479
    %v614 = vpop.f32.mrf.mxu0
    %v615 = vadd.f32 %v443, %v614
    %v616 = vpop.f32.mrf.mxu0
    %617 = vmatprep.mubr.f32.mxu0 0.0
    %618 = vmatmul.mubr.f32.gmra.mxu0 %v482
    %v619 = vpop.f32.mrf.mxu0
    %v620 = vadd.f32 %v443, %v619
    %v621 = vpop.f32.mrf.mxu0
    %622 = vmatprep.mubr.f32.mxu0 0.0
    %623 = vmatmul.mubr.f32.gmra.mxu0 %v485
    %v624 = vpop.f32.mrf.mxu0
    %v625 = vadd.f32 %v443, %v624
    %v626 = vpop.f32.mrf.mxu0
    %627 = vmatprep.mubr.f32.mxu0 0.0
    %628 = vmatmul.mubr.f32.gmra.mxu0 %v488
    %v629 = vpop.f32.mrf.mxu0
    %v630 = vadd.f32 %v443, %v629
    %v631 = vpop.f32.mrf.mxu0
    %632 = vmatprep.mubr.f32.mxu0 0.0
    %633 = vmatmul.mubr.f32.gmra.mxu0 %v491
    %v634 = vpop.f32.mrf.mxu0
    %v635 = vadd.f32 %v443, %v634
    %v636 = vpop.f32.mrf.mxu0
    %637 = vdwg.mxu0
    %v638 = vtanh.pop %v560
    %v639 = vtanh.pop %v565
    %v640 = vtanh.pop %v570
    %v641 = vtanh.pop %v575
    %v642 = vtanh.pop %v580
    %v643 = vtanh.pop %v585
    %v644 = vtanh.pop %v590
    %v645 = vtanh.pop %v595
    %v646 = vtanh.pop %v600
    %v647 = vtanh.pop %v605
    %v648 = vtanh.pop %v610
    %v649 = vtanh.pop %v615
    %v650 = vtanh.pop %v620
    %v651 = vtanh.pop %v625
    %v652 = vtanh.pop %v630
    %v653 = vtanh.pop %v635
    %vm654 = vcmp.gt.s32.totalorder %v24, 0
    %vm655 = vcmp.gt.s32.totalorder %v25, 0
    %vm656 = vcmp.gt.s32.totalorder %v26, 0
    %vm657 = vcmp.gt.s32.totalorder %v27, 0
    %vm658 = vcmp.gt.s32.totalorder %v28, 0
    %vm659 = vcmp.gt.s32.totalorder %v29, 0
    %vm660 = vcmp.gt.s32.totalorder %v30, 0
    %vm661 = vcmp.gt.s32.totalorder %v31, 0
    %vm662 = vcmp.gt.s32.totalorder %v32, 0
    %vm663 = vcmp.gt.s32.totalorder %v33, 0
    %vm664 = vcmp.gt.s32.totalorder %v34, 0
    %vm665 = vcmp.gt.s32.totalorder %v35, 0
    %vm666 = vcmp.gt.s32.totalorder %v36, 0
    %vm667 = vcmp.gt.s32.totalorder %v37, 0
    %vm668 = vcmp.gt.s32.totalorder %v38, 0
    %vm669 = vcmp.gt.s32.totalorder %v39, 0
    %v670 = vsel %vm654, 1, 0
    %v671 = vsel %vm655, 1, 0
    %v672 = vsel %vm656, 1, 0
    %v673 = vsel %vm657, 1, 0
    %v674 = vsel %vm658, 1, 0
    %v675 = vsel %vm659, 1, 0
    %v676 = vsel %vm660, 1, 0
    %v677 = vsel %vm661, 1, 0
    %v678 = vsel %vm662, 1, 0
    %v679 = vsel %vm663, 1, 0
    %v680 = vsel %vm664, 1, 0
    %v681 = vsel %vm665, 1, 0
    %v682 = vsel %vm666, 1, 0
    %v683 = vsel %vm667, 1, 0
    %v684 = vsel %vm668, 1, 0
    %v685 = vsel %vm669, 1, 0
    %686 = vset.pattern.permute.xlu0 2
    %687 = vperm.xlu0 %686, %v670
    %v688 = vpop.permute.xlu0 %687
    %689 = vset.pattern.permute.xlu0 2
    %690 = vperm.xlu0 %689, %v671
    %v691 = vpop.permute.xlu0 %690
    %692 = vset.pattern.permute.xlu0 2
    %693 = vperm.xlu0 %692, %v672
    %v694 = vpop.permute.xlu0 %693
    %695 = vset.pattern.permute.xlu0 2
    %696 = vperm.xlu0 %695, %v673
    %v697 = vpop.permute.xlu0 %696
    %698 = vset.pattern.permute.xlu0 2
    %699 = vperm.xlu0 %698, %v674
    %v700 = vpop.permute.xlu0 %699
    %701 = vset.pattern.permute.xlu0 2
    %702 = vperm.xlu0 %701, %v675
    %v703 = vpop.permute.xlu0 %702
    %704 = vset.pattern.permute.xlu0 2
    %705 = vperm.xlu0 %704, %v676
    %v706 = vpop.permute.xlu0 %705
    %707 = vset.pattern.permute.xlu0 2
    %708 = vperm.xlu0 %707, %v677
    %v709 = vpop.permute.xlu0 %708
    %710 = vset.pattern.permute.xlu0 2
    %711 = vperm.xlu0 %710, %v678
    %v712 = vpop.permute.xlu0 %711
    %713 = vset.pattern.permute.xlu0 2
    %714 = vperm.xlu0 %713, %v679
    %v715 = vpop.permute.xlu0 %714
    %716 = vset.pattern.permute.xlu0 2
    %717 = vperm.xlu0 %716, %v680
    %v718 = vpop.permute.xlu0 %717
    %719 = vset.pattern.permute.xlu0 2
    %720 = vperm.xlu0 %719, %v681
    %v721 = vpop.permute.xlu0 %720
    %722 = vset.pattern.permute.xlu0 2
    %723 = vperm.xlu0 %722, %v682
    %v724 = vpop.permute.xlu0 %723
    %725 = vset.pattern.permute.xlu0 2
    %726 = vperm.xlu0 %725, %v683
    %v727 = vpop.permute.xlu0 %726
    %728 = vset.pattern.permute.xlu0 2
    %729 = vperm.xlu0 %728, %v684
    %v730 = vpop.permute.xlu0 %729
    %731 = vset.pattern.permute.xlu0 2
    %732 = vperm.xlu0 %731, %v685
    %v733 = vpop.permute.xlu0 %732
    %vm734 = vcmp.eq.s32.totalorder %v688, 1
    %vm735 = vcmp.eq.s32.totalorder %v691, 1
    %vm736 = vcmp.eq.s32.totalorder %v694, 1
    %vm737 = vcmp.eq.s32.totalorder %v697, 1
    %vm738 = vcmp.eq.s32.totalorder %v700, 1
    %vm739 = vcmp.eq.s32.totalorder %v703, 1
    %vm740 = vcmp.eq.s32.totalorder %v706, 1
    %vm741 = vcmp.eq.s32.totalorder %v709, 1
    %vm742 = vcmp.eq.s32.totalorder %v712, 1
    %vm743 = vcmp.eq.s32.totalorder %v715, 1
    %vm744 = vcmp.eq.s32.totalorder %v718, 1
    %vm745 = vcmp.eq.s32.totalorder %v721, 1
    %vm746 = vcmp.eq.s32.totalorder %v724, 1
    %vm747 = vcmp.eq.s32.totalorder %v727, 1
    %vm748 = vcmp.eq.s32.totalorder %v730, 1
    %vm749 = vcmp.eq.s32.totalorder %v733, 1
    %v750 = vsel %vm734, %v638, 0.0
    %v751 = vsel %vm735, %v639, 0.0
    %v752 = vsel %vm736, %v640, 0.0
    %v753 = vsel %vm737, %v641, 0.0
    %v754 = vsel %vm738, %v642, 0.0
    %v755 = vsel %vm739, %v643, 0.0
    %v756 = vsel %vm740, %v644, 0.0
    %v757 = vsel %vm741, %v645, 0.0
    %v758 = vsel %vm742, %v646, 0.0
    %v759 = vsel %vm743, %v647, 0.0
    %v760 = vsel %vm744, %v648, 0.0
    %v761 = vsel %vm745, %v649, 0.0
    %v762 = vsel %vm746, %v650, 0.0
    %v763 = vsel %vm747, %v651, 0.0
    %v764 = vsel %vm748, %v652, 0.0
    %v765 = vsel %vm749, %v653, 0.0
    %v766 = vld [vmem:[%s2] sm:$0xff]
    %v767 = vld [vmem:[%s2 + $0x8] sm:$0xff]
    %v768 = vld [vmem:[%s2 + $0x10] sm:$0xff]
    %v769 = vld [vmem:[%s2 + $0x18] sm:$0xff]
    %v770 = vrot.slane %v750, 1
    %v771 = vrot.slane %v751, 1
    %v772 = vrot.slane %v752, 1
    %v773 = vrot.slane %v753, 1
    %v774 = vrot.slane %v754, 1
    %v775 = vrot.slane %v755, 1
    %v776 = vrot.slane %v756, 1
    %v777 = vrot.slane %v757, 1
    %v778 = vrot.slane %v758, 1
    %v779 = vrot.slane %v759, 1
    %v780 = vrot.slane %v760, 1
    %v781 = vrot.slane %v761, 1
    %v782 = vrot.slane %v762, 1
    %v783 = vrot.slane %v763, 1
    %v784 = vrot.slane %v764, 1
    %v785 = vrot.slane %v765, 1
    %v786 = vlaneseq
    %v787 = vshrl.u32 %v786, 7
    %vm788 = vcmp.lt.s32.totalorder %v787, 7
    %v789 = vsel %vm788, %v784, %v785
    %v790 = vsel %vm788, %v783, %v784
    %v791 = vsel %vm788, %v782, %v783
    %v792 = vsel %vm788, %v781, %v782
    %v793 = vsel %vm788, %v780, %v781
    %v794 = vsel %vm788, %v779, %v780
    %v795 = vsel %vm788, %v778, %v779
    %v796 = vsel %vm788, %v777, %v778
    %v797 = vsel %vm788, %v776, %v777
    %v798 = vsel %vm788, %v775, %v776
    %v799 = vsel %vm788, %v774, %v775
    %v800 = vsel %vm788, %v773, %v774
    %v801 = vsel %vm788, %v772, %v773
    %v802 = vsel %vm788, %v771, %v772
    %v803 = vsel %vm788, %v770, %v771
    %v804 = vsel %vm788, %v785, %v770
    %v805 = vld [vmem:[%s2 + $0x20] sm:$0xff]
    %v806 = vld [vmem:[%s2 + $0x28] sm:$0xff]
    %v807 = vld [vmem:[%s2 + $0x30] sm:$0xff]
    %v808 = vld [vmem:[%s2 + $0x38] sm:$0xff]
    %v810 = vsel %vm444, %v803, 0
    %v813 = vsel %vm444, %v802, 0
    %v816 = vsel %vm444, %v801, 0
    %v819 = vsel %vm444, %v800, 0
    %v822 = vsel %vm444, %v799, 0
    %v825 = vsel %vm444, %v798, 0
    %v828 = vsel %vm444, %v797, 0
    %v831 = vsel %vm444, %v796, 0
    %v834 = vsel %vm444, %v795, 0
    %v837 = vsel %vm444, %v794, 0
    %v840 = vsel %vm444, %v793, 0
    %v843 = vsel %vm444, %v792, 0
    %v846 = vsel %vm444, %v791, 0
    %v849 = vsel %vm444, %v790, 0
    %v852 = vsel %vm444, %v789, 0
    %v855 = vsel %vm444, %v804, 0
    %857 = vmatprep.subr.mxu0 0.0
    %858 = vmatpush1.msra.mxu0 0.0
    %859 = vmatprep.subr.mxu0 0.0
    %860 = vmatpush1.msra.mxu0 0.0
    %861 = vmatprep.subr.mxu0 0.0
    %862 = vmatpush1.msra.mxu0 0.0
    %863 = vmatprep.subr.mxu0 0.0
    %864 = vmatpush1.msra.mxu0 0.0
    %865 = vmatprep.subr.mxu0 0.0
    %866 = vmatpush1.msra.mxu0 0.0
    %867 = vmatprep.subr.mxu0 0.0
    %868 = vmatpush1.msra.mxu0 0.0
    %869 = vmatprep.subr.mxu0 0.0
    %870 = vmatpush1.msra.mxu0 0.0
    %871 = vmatprep.subr.mxu0 0.0
    %872 = vmatpush1.msra.mxu0 0.0
    %873 = vmatprep.subr.mxu0 0.0
    %874 = vmatpush1.msra.mxu0 0.0
    %875 = vmatprep.subr.mxu0 0.0
    %876 = vmatpush1.msra.mxu0 0.0
    %877 = vmatprep.subr.mxu0 0.0
    %878 = vmatpush1.msra.mxu0 0.0
    %879 = vmatprep.subr.mxu0 0.0
    %880 = vmatpush1.msra.mxu0 0.0
    %881 = vmatprep.subr.mxu0 0.0
    %882 = vmatpush1.msra.mxu0 %v808
    %883 = vmatprep.subr.mxu0 0.0
    %884 = vmatpush1.msra.mxu0 %v807
    %885 = vmatprep.subr.mxu0 0.0
    %886 = vmatpush1.msra.mxu0 %v806
    %887 = vmatprep.subr.mxu0 0.0
    %888 = vmatpush1.msra.mxu0 %v805
    %889 = vmatprep.subr.mxu0 0.0
    %890 = vmatpush2.msra.mxu0 0.0
    %891 = vmatprep.subr.mxu0 0.0
    %892 = vmatpush2.msra.mxu0 0.0
    %893 = vmatprep.subr.mxu0 0.0
    %894 = vmatpush2.msra.mxu0 0.0
    %895 = vmatprep.subr.mxu0 0.0
    %896 = vmatpush2.msra.mxu0 0.0
    %897 = vmatprep.subr.mxu0 0.0
    %898 = vmatpush2.msra.mxu0 0.0
    %899 = vmatprep.subr.mxu0 0.0
    %900 = vmatpush2.msra.mxu0 0.0
    %901 = vmatprep.subr.mxu0 0.0
    %902 = vmatpush2.msra.mxu0 0.0
    %903 = vmatprep.subr.mxu0 0.0
    %904 = vmatpush2.msra.mxu0 0.0
    %905 = vmatprep.subr.mxu0 0.0
    %906 = vmatpush2.msra.mxu0 0.0
    %907 = vmatprep.subr.mxu0 0.0
    %908 = vmatpush2.msra.mxu0 0.0
    %909 = vmatprep.subr.mxu0 0.0
    %910 = vmatpush2.msra.mxu0 0.0
    %911 = vmatprep.subr.mxu0 0.0
    %912 = vmatpush2.msra.mxu0 0.0
    %913 = vmatprep.subr.mxu0 0.0
    %914 = vmatpush2.msra.mxu0 0.0
    %915 = vmatprep.subr.mxu0 0.0
    %916 = vmatpush2.msra.mxu0 0.0
    %917 = vmatprep.subr.mxu0 0.0
    %918 = vmatpush2.msra.mxu0 0.0
    %919 = vmatprep.subr.mxu0 0.0
    %920 = vmatpush2.msra.mxu0 0.0
    %921 = vmatprep.mubr.f32.mxu0 0.0
    %922 = vmatmul.mubr.f32.gmra.mxu0 %v810
    %v923 = vpop.f32.mrf.mxu0
    %v924 = vadd.f32 0.0, %v923
    %v925 = vpop.f32.mrf.mxu0
    %926 = vmatprep.mubr.f32.mxu0 0.0
    %927 = vmatmul.mubr.f32.gmra.mxu0 %v813
    %v928 = vpop.f32.mrf.mxu0
    %v929 = vadd.f32 0.0, %v928
    %v930 = vpop.f32.mrf.mxu0
    %931 = vmatprep.mubr.f32.mxu0 0.0
    %932 = vmatmul.mubr.f32.gmra.mxu0 %v816
    %v933 = vpop.f32.mrf.mxu0
    %v934 = vadd.f32 0.0, %v933
    %v935 = vpop.f32.mrf.mxu0
    %936 = vmatprep.mubr.f32.mxu0 0.0
    %937 = vmatmul.mubr.f32.gmra.mxu0 %v819
    %v938 = vpop.f32.mrf.mxu0
    %v939 = vadd.f32 0.0, %v938
    %v940 = vpop.f32.mrf.mxu0
    %941 = vmatprep.mubr.f32.mxu0 0.0
    %942 = vmatmul.mubr.f32.gmra.mxu0 %v822
    %v943 = vpop.f32.mrf.mxu0
    %v944 = vadd.f32 0.0, %v943
    %v945 = vpop.f32.mrf.mxu0
    %946 = vmatprep.mubr.f32.mxu0 0.0
    %947 = vmatmul.mubr.f32.gmra.mxu0 %v825
    %v948 = vpop.f32.mrf.mxu0
    %v949 = vadd.f32 0.0, %v948
    %v950 = vpop.f32.mrf.mxu0
    %951 = vmatprep.mubr.f32.mxu0 0.0
    %952 = vmatmul.mubr.f32.gmra.mxu0 %v828
    %v953 = vpop.f32.mrf.mxu0
    %v954 = vadd.f32 0.0, %v953
    %v955 = vpop.f32.mrf.mxu0
    %956 = vmatprep.mubr.f32.mxu0 0.0
    %957 = vmatmul.mubr.f32.gmra.mxu0 %v831
    %v958 = vpop.f32.mrf.mxu0
    %v959 = vadd.f32 0.0, %v958
    %v960 = vpop.f32.mrf.mxu0
    %961 = vmatprep.mubr.f32.mxu0 0.0
    %962 = vmatmul.mubr.f32.gmra.mxu0 %v834
    %v963 = vpop.f32.mrf.mxu0
    %v964 = vadd.f32 0.0, %v963
    %v965 = vpop.f32.mrf.mxu0
    %966 = vmatprep.mubr.f32.mxu0 0.0
    %967 = vmatmul.mubr.f32.gmra.mxu0 %v837
    %v968 = vpop.f32.mrf.mxu0
    %v969 = vadd.f32 0.0, %v968
    %v970 = vpop.f32.mrf.mxu0
    %971 = vmatprep.mubr.f32.mxu0 0.0
    %972 = vmatmul.mubr.f32.gmra.mxu0 %v840
    %v973 = vpop.f32.mrf.mxu0
    %v974 = vadd.f32 0.0, %v973
    %v975 = vpop.f32.mrf.mxu0
    %976 = vmatprep.mubr.f32.mxu0 0.0
    %977 = vmatmul.mubr.f32.gmra.mxu0 %v843
    %v978 = vpop.f32.mrf.mxu0
    %v979 = vadd.f32 0.0, %v978
    %v980 = vpop.f32.mrf.mxu0
    %981 = vmatprep.mubr.f32.mxu0 0.0
    %982 = vmatmul.mubr.f32.gmra.mxu0 %v846
    %v983 = vpop.f32.mrf.mxu0
    %v984 = vadd.f32 0.0, %v983
    %v985 = vpop.f32.mrf.mxu0
    %986 = vmatprep.mubr.f32.mxu0 0.0
    %987 = vmatmul.mubr.f32.gmra.mxu0 %v849
    %v988 = vpop.f32.mrf.mxu0
    %v989 = vadd.f32 0.0, %v988
    %v990 = vpop.f32.mrf.mxu0
    %991 = vmatprep.mubr.f32.mxu0 0.0
    %992 = vmatmul.mubr.f32.gmra.mxu0 %v852
    %v993 = vpop.f32.mrf.mxu0
    %v994 = vadd.f32 0.0, %v993
    %v995 = vpop.f32.mrf.mxu0
    %996 = vmatprep.mubr.f32.mxu0 0.0
    %997 = vmatmul.mubr.f32.gmra.mxu0 %v855
    %v998 = vpop.f32.mrf.mxu0
    %v999 = vadd.f32 0.0, %v998
    %v1000 = vpop.f32.mrf.mxu0
    %1001 = vdwg.mxu0
    %v1003 = vsel %vm444, %v750, 0
    %v1006 = vsel %vm444, %v751, 0
    %v1009 = vsel %vm444, %v752, 0
    %v1012 = vsel %vm444, %v753, 0
    %v1015 = vsel %vm444, %v754, 0
    %v1018 = vsel %vm444, %v755, 0
    %v1021 = vsel %vm444, %v756, 0
    %v1024 = vsel %vm444, %v757, 0
    %v1027 = vsel %vm444, %v758, 0
    %v1030 = vsel %vm444, %v759, 0
    %v1033 = vsel %vm444, %v760, 0
    %v1036 = vsel %vm444, %v761, 0
    %v1039 = vsel %vm444, %v762, 0
    %v1042 = vsel %vm444, %v763, 0
    %v1045 = vsel %vm444, %v764, 0
    %v1048 = vsel %vm444, %v765, 0
    %1050 = vmatprep.subr.mxu0 0.0
    %1051 = vmatpush1.msra.mxu0 0.0
    %1052 = vmatprep.subr.mxu0 0.0
    %1053 = vmatpush1.msra.mxu0 0.0
    %1054 = vmatprep.subr.mxu0 0.0
    %1055 = vmatpush1.msra.mxu0 0.0
    %1056 = vmatprep.subr.mxu0 0.0
    %1057 = vmatpush1.msra.mxu0 0.0
    %1058 = vmatprep.subr.mxu0 0.0
    %1059 = vmatpush1.msra.mxu0 0.0
    %1060 = vmatprep.subr.mxu0 0.0
    %1061 = vmatpush1.msra.mxu0 0.0
    %1062 = vmatprep.subr.mxu0 0.0
    %1063 = vmatpush1.msra.mxu0 0.0
    %1064 = vmatprep.subr.mxu0 0.0
    %1065 = vmatpush1.msra.mxu0 0.0
    %1066 = vmatprep.subr.mxu0 0.0
    %1067 = vmatpush1.msra.mxu0 0.0
    %1068 = vmatprep.subr.mxu0 0.0
    %1069 = vmatpush1.msra.mxu0 0.0
    %1070 = vmatprep.subr.mxu0 0.0
    %1071 = vmatpush1.msra.mxu0 0.0
    %1072 = vmatprep.subr.mxu0 0.0
    %1073 = vmatpush1.msra.mxu0 0.0
    %1074 = vmatprep.subr.mxu0 0.0
    %1075 = vmatpush1.msra.mxu0 %v769
    %1076 = vmatprep.subr.mxu0 0.0
    %1077 = vmatpush1.msra.mxu0 %v768
    %1078 = vmatprep.subr.mxu0 0.0
    %1079 = vmatpush1.msra.mxu0 %v767
    %1080 = vmatprep.subr.mxu0 0.0
    %1081 = vmatpush1.msra.mxu0 %v766
    %1082 = vmatprep.subr.mxu0 0.0
    %1083 = vmatpush2.msra.mxu0 0.0
    %1084 = vmatprep.subr.mxu0 0.0
    %1085 = vmatpush2.msra.mxu0 0.0
    %1086 = vmatprep.subr.mxu0 0.0
    %1087 = vmatpush2.msra.mxu0 0.0
    %1088 = vmatprep.subr.mxu0 0.0
    %1089 = vmatpush2.msra.mxu0 0.0
    %1090 = vmatprep.subr.mxu0 0.0
    %1091 = vmatpush2.msra.mxu0 0.0
    %1092 = vmatprep.subr.mxu0 0.0
    %1093 = vmatpush2.msra.mxu0 0.0
    %1094 = vmatprep.subr.mxu0 0.0
    %1095 = vmatpush2.msra.mxu0 0.0
    %1096 = vmatprep.subr.mxu0 0.0
    %1097 = vmatpush2.msra.mxu0 0.0
    %1098 = vmatprep.subr.mxu0 0.0
    %1099 = vmatpush2.msra.mxu0 0.0
    %1100 = vmatprep.subr.mxu0 0.0
    %1101 = vmatpush2.msra.mxu0 0.0
    %1102 = vmatprep.subr.mxu0 0.0
    %1103 = vmatpush2.msra.mxu0 0.0
    %1104 = vmatprep.subr.mxu0 0.0
    %1105 = vmatpush2.msra.mxu0 0.0
    %1106 = vmatprep.subr.mxu0 0.0
    %1107 = vmatpush2.msra.mxu0 0.0
    %1108 = vmatprep.subr.mxu0 0.0
    %1109 = vmatpush2.msra.mxu0 0.0
    %1110 = vmatprep.subr.mxu0 0.0
    %1111 = vmatpush2.msra.mxu0 0.0
    %1112 = vmatprep.subr.mxu0 0.0
    %1113 = vmatpush2.msra.mxu0 0.0
    %1114 = vmatprep.mubr.f32.mxu0 0.0
    %1115 = vmatmul.mubr.f32.gmra.mxu0 %v1003
    %v1116 = vpop.f32.mrf.mxu0
    %v1117 = vadd.f32 %v924, %v1116
    %v1118 = vpop.f32.mrf.mxu0
    %1119 = vmatprep.mubr.f32.mxu0 0.0
    %1120 = vmatmul.mubr.f32.gmra.mxu0 %v1006
    %v1121 = vpop.f32.mrf.mxu0
    %v1122 = vadd.f32 %v929, %v1121
    %v1123 = vpop.f32.mrf.mxu0
    %1124 = vmatprep.mubr.f32.mxu0 0.0
    %1125 = vmatmul.mubr.f32.gmra.mxu0 %v1009
    %v1126 = vpop.f32.mrf.mxu0
    %v1127 = vadd.f32 %v934, %v1126
    %v1128 = vpop.f32.mrf.mxu0
    %1129 = vmatprep.mubr.f32.mxu0 0.0
    %1130 = vmatmul.mubr.f32.gmra.mxu0 %v1012
    %v1131 = vpop.f32.mrf.mxu0
    %v1132 = vadd.f32 %v939, %v1131
    %v1133 = vpop.f32.mrf.mxu0
    %1134 = vmatprep.mubr.f32.mxu0 0.0
    %1135 = vmatmul.mubr.f32.gmra.mxu0 %v1015
    %v1136 = vpop.f32.mrf.mxu0
    %v1137 = vadd.f32 %v944, %v1136
    %v1138 = vpop.f32.mrf.mxu0
    %1139 = vmatprep.mubr.f32.mxu0 0.0
    %1140 = vmatmul.mubr.f32.gmra.mxu0 %v1018
    %v1141 = vpop.f32.mrf.mxu0
    %v1142 = vadd.f32 %v949, %v1141
    %v1143 = vpop.f32.mrf.mxu0
    %1144 = vmatprep.mubr.f32.mxu0 0.0
    %1145 = vmatmul.mubr.f32.gmra.mxu0 %v1021
    %v1146 = vpop.f32.mrf.mxu0
    %v1147 = vadd.f32 %v954, %v1146
    %v1148 = vpop.f32.mrf.mxu0
    %1149 = vmatprep.mubr.f32.mxu0 0.0
    %1150 = vmatmul.mubr.f32.gmra.mxu0 %v1024
    %v1151 = vpop.f32.mrf.mxu0
    %v1152 = vadd.f32 %v959, %v1151
    %v1153 = vpop.f32.mrf.mxu0
    %1154 = vmatprep.mubr.f32.mxu0 0.0
    %1155 = vmatmul.mubr.f32.gmra.mxu0 %v1027
    %v1156 = vpop.f32.mrf.mxu0
    %v1157 = vadd.f32 %v964, %v1156
    %v1158 = vpop.f32.mrf.mxu0
    %1159 = vmatprep.mubr.f32.mxu0 0.0
    %1160 = vmatmul.mubr.f32.gmra.mxu0 %v1030
    %v1161 = vpop.f32.mrf.mxu0
    %v1162 = vadd.f32 %v969, %v1161
    %v1163 = vpop.f32.mrf.mxu0
    %1164 = vmatprep.mubr.f32.mxu0 0.0
    %1165 = vmatmul.mubr.f32.gmra.mxu0 %v1033
    %v1166 = vpop.f32.mrf.mxu0
    %v1167 = vadd.f32 %v974, %v1166
    %v1168 = vpop.f32.mrf.mxu0
    %1169 = vmatprep.mubr.f32.mxu0 0.0
    %1170 = vmatmul.mubr.f32.gmra.mxu0 %v1036
    %v1171 = vpop.f32.mrf.mxu0
    %v1172 = vadd.f32 %v979, %v1171
    %v1173 = vpop.f32.mrf.mxu0
    %1174 = vmatprep.mubr.f32.mxu0 0.0
    %1175 = vmatmul.mubr.f32.gmra.mxu0 %v1039
    %v1176 = vpop.f32.mrf.mxu0
    %v1177 = vadd.f32 %v984, %v1176
    %v1178 = vpop.f32.mrf.mxu0
    %1179 = vmatprep.mubr.f32.mxu0 0.0
    %1180 = vmatmul.mubr.f32.gmra.mxu0 %v1042
    %v1181 = vpop.f32.mrf.mxu0
    %v1182 = vadd.f32 %v989, %v1181
    %v1183 = vpop.f32.mrf.mxu0
    %1184 = vmatprep.mubr.f32.mxu0 0.0
    %1185 = vmatmul.mubr.f32.gmra.mxu0 %v1045
    %v1186 = vpop.f32.mrf.mxu0
    %v1187 = vadd.f32 %v994, %v1186
    %v1188 = vpop.f32.mrf.mxu0
    %1189 = vmatprep.mubr.f32.mxu0 0.0
    %1190 = vmatmul.mubr.f32.gmra.mxu0 %v1048
    %v1191 = vpop.f32.mrf.mxu0
    %v1192 = vadd.f32 %v999, %v1191
    %v1193 = vpop.f32.mrf.mxu0
    %1194 = vdwg.mxu0
    %v1195 = vrot.slane %v750, 2
    %v1196 = vrot.slane %v751, 2
    %v1197 = vrot.slane %v752, 2
    %v1198 = vrot.slane %v753, 2
    %v1199 = vrot.slane %v754, 2
    %v1200 = vrot.slane %v755, 2
    %v1201 = vrot.slane %v756, 2
    %v1202 = vrot.slane %v757, 2
    %v1203 = vrot.slane %v758, 2
    %v1204 = vrot.slane %v759, 2
    %v1205 = vrot.slane %v760, 2
    %v1206 = vrot.slane %v761, 2
    %v1207 = vrot.slane %v762, 2
    %v1208 = vrot.slane %v763, 2
    %v1209 = vrot.slane %v764, 2
    %v1210 = vrot.slane %v765, 2
    %vm1211 = vcmp.lt.s32.totalorder %v787, 6
    %v1212 = vsel %vm1211, %v1209, %v1210
    %v1213 = vsel %vm1211, %v1208, %v1209
    %v1214 = vsel %vm1211, %v1207, %v1208
    %v1215 = vsel %vm1211, %v1206, %v1207
    %v1216 = vsel %vm1211, %v1205, %v1206
    %v1217 = vsel %vm1211, %v1204, %v1205
    %v1218 = vsel %vm1211, %v1203, %v1204
    %v1219 = vsel %vm1211, %v1202, %v1203
    %v1220 = vsel %vm1211, %v1201, %v1202
    %v1221 = vsel %vm1211, %v1200, %v1201
    %v1222 = vsel %vm1211, %v1199, %v1200
    %v1223 = vsel %vm1211, %v1198, %v1199
    %v1224 = vsel %vm1211, %v1197, %v1198
    %v1225 = vsel %vm1211, %v1196, %v1197
    %v1226 = vsel %vm1211, %v1195, %v1196
    %v1227 = vsel %vm1211, %v1210, %v1195
    %v1228 = vld [vmem:[%s2 + $0x40] sm:$0xff]
    %v1229 = vld [vmem:[%s2 + $0x48] sm:$0xff]
    %v1230 = vld [vmem:[%s2 + $0x50] sm:$0xff]
    %v1231 = vld [vmem:[%s2 + $0x58] sm:$0xff]
    %v1233 = vsel %vm444, %v1226, 0
    %v1236 = vsel %vm444, %v1225, 0
    %v1239 = vsel %vm444, %v1224, 0
    %v1242 = vsel %vm444, %v1223, 0
    %v1245 = vsel %vm444, %v1222, 0
    %v1248 = vsel %vm444, %v1221, 0
    %v1251 = vsel %vm444, %v1220, 0
    %v1254 = vsel %vm444, %v1219, 0
    %v1257 = vsel %vm444, %v1218, 0
    %v1260 = vsel %vm444, %v1217, 0
    %v1263 = vsel %vm444, %v1216, 0
    %v1266 = vsel %vm444, %v1215, 0
    %v1269 = vsel %vm444, %v1214, 0
    %v1272 = vsel %vm444, %v1213, 0
    %v1275 = vsel %vm444, %v1212, 0
    %v1278 = vsel %vm444, %v1227, 0
    %1280 = vmatprep.subr.mxu0 0.0
    %1281 = vmatpush1.msra.mxu0 0.0
    %1282 = vmatprep.subr.mxu0 0.0
    %1283 = vmatpush1.msra.mxu0 0.0
    %1284 = vmatprep.subr.mxu0 0.0
    %1285 = vmatpush1.msra.mxu0 0.0
    %1286 = vmatprep.subr.mxu0 0.0
    %1287 = vmatpush1.msra.mxu0 0.0
    %1288 = vmatprep.subr.mxu0 0.0
    %1289 = vmatpush1.msra.mxu0 0.0
    %1290 = vmatprep.subr.mxu0 0.0
    %1291 = vmatpush1.msra.mxu0 0.0
    %1292 = vmatprep.subr.mxu0 0.0
    %1293 = vmatpush1.msra.mxu0 0.0
    %1294 = vmatprep.subr.mxu0 0.0
    %1295 = vmatpush1.msra.mxu0 0.0
    %1296 = vmatprep.subr.mxu0 0.0
    %1297 = vmatpush1.msra.mxu0 0.0
    %1298 = vmatprep.subr.mxu0 0.0
    %1299 = vmatpush1.msra.mxu0 0.0
    %1300 = vmatprep.subr.mxu0 0.0
    %1301 = vmatpush1.msra.mxu0 0.0
    %1302 = vmatprep.subr.mxu0 0.0
    %1303 = vmatpush1.msra.mxu0 0.0
    %1304 = vmatprep.subr.mxu0 0.0
    %1305 = vmatpush1.msra.mxu0 %v1231
    %1306 = vmatprep.subr.mxu0 0.0
    %1307 = vmatpush1.msra.mxu0 %v1230
    %1308 = vmatprep.subr.mxu0 0.0
    %1309 = vmatpush1.msra.mxu0 %v1229
    %1310 = vmatprep.subr.mxu0 0.0
    %1311 = vmatpush1.msra.mxu0 %v1228
    %1312 = vmatprep.subr.mxu0 0.0
    %1313 = vmatpush2.msra.mxu0 0.0
    %1314 = vmatprep.subr.mxu0 0.0
    %1315 = vmatpush2.msra.mxu0 0.0
    %1316 = vmatprep.subr.mxu0 0.0
    %1317 = vmatpush2.msra.mxu0 0.0
    %1318 = vmatprep.subr.mxu0 0.0
    %1319 = vmatpush2.msra.mxu0 0.0
    %1320 = vmatprep.subr.mxu0 0.0
    %1321 = vmatpush2.msra.mxu0 0.0
    %1322 = vmatprep.subr.mxu0 0.0
    %1323 = vmatpush2.msra.mxu0 0.0
    %1324 = vmatprep.subr.mxu0 0.0
    %1325 = vmatpush2.msra.mxu0 0.0
    %1326 = vmatprep.subr.mxu0 0.0
    %1327 = vmatpush2.msra.mxu0 0.0
    %1328 = vmatprep.subr.mxu0 0.0
    %1329 = vmatpush2.msra.mxu0 0.0
    %1330 = vmatprep.subr.mxu0 0.0
    %1331 = vmatpush2.msra.mxu0 0.0
    %1332 = vmatprep.subr.mxu0 0.0
    %1333 = vmatpush2.msra.mxu0 0.0
    %1334 = vmatprep.subr.mxu0 0.0
    %1335 = vmatpush2.msra.mxu0 0.0
    %1336 = vmatprep.subr.mxu0 0.0
    %1337 = vmatpush2.msra.mxu0 0.0
    %1338 = vmatprep.subr.mxu0 0.0
    %1339 = vmatpush2.msra.mxu0 0.0
    %1340 = vmatprep.subr.mxu0 0.0
    %1341 = vmatpush2.msra.mxu0 0.0
    %1342 = vmatprep.subr.mxu0 0.0
    %1343 = vmatpush2.msra.mxu0 0.0
    %1344 = vmatprep.mubr.f32.mxu0 0.0
    %1345 = vmatmul.mubr.f32.gmra.mxu0 %v1233
    %v1346 = vpop.f32.mrf.mxu0
    %v1347 = vadd.f32 0.0, %v1346
    %v1348 = vpop.f32.mrf.mxu0
    %1349 = vmatprep.mubr.f32.mxu0 0.0
    %1350 = vmatmul.mubr.f32.gmra.mxu0 %v1236
    %v1351 = vpop.f32.mrf.mxu0
    %v1352 = vadd.f32 0.0, %v1351
    %v1353 = vpop.f32.mrf.mxu0
    %1354 = vmatprep.mubr.f32.mxu0 0.0
    %1355 = vmatmul.mubr.f32.gmra.mxu0 %v1239
    %v1356 = vpop.f32.mrf.mxu0
    %v1357 = vadd.f32 0.0, %v1356
    %v1358 = vpop.f32.mrf.mxu0
    %1359 = vmatprep.mubr.f32.mxu0 0.0
    %1360 = vmatmul.mubr.f32.gmra.mxu0 %v1242
    %v1361 = vpop.f32.mrf.mxu0
    %v1362 = vadd.f32 0.0, %v1361
    %v1363 = vpop.f32.mrf.mxu0
    %1364 = vmatprep.mubr.f32.mxu0 0.0
    %1365 = vmatmul.mubr.f32.gmra.mxu0 %v1245
    %v1366 = vpop.f32.mrf.mxu0
    %v1367 = vadd.f32 0.0, %v1366
    %v1368 = vpop.f32.mrf.mxu0
    %1369 = vmatprep.mubr.f32.mxu0 0.0
    %1370 = vmatmul.mubr.f32.gmra.mxu0 %v1248
    %v1371 = vpop.f32.mrf.mxu0
    %v1372 = vadd.f32 0.0, %v1371
    %v1373 = vpop.f32.mrf.mxu0
    %1374 = vmatprep.mubr.f32.mxu0 0.0
    %1375 = vmatmul.mubr.f32.gmra.mxu0 %v1251
    %v1376 = vpop.f32.mrf.mxu0
    %v1377 = vadd.f32 0.0, %v1376
    %v1378 = vpop.f32.mrf.mxu0
    %1379 = vmatprep.mubr.f32.mxu0 0.0
    %1380 = vmatmul.mubr.f32.gmra.mxu0 %v1254
    %v1381 = vpop.f32.mrf.mxu0
    %v1382 = vadd.f32 0.0, %v1381
    %v1383 = vpop.f32.mrf.mxu0
    %1384 = vmatprep.mubr.f32.mxu0 0.0
    %1385 = vmatmul.mubr.f32.gmra.mxu0 %v1257
    %v1386 = vpop.f32.mrf.mxu0
    %v1387 = vadd.f32 0.0, %v1386
    %v1388 = vpop.f32.mrf.mxu0
    %1389 = vmatprep.mubr.f32.mxu0 0.0
    %1390 = vmatmul.mubr.f32.gmra.mxu0 %v1260
    %v1391 = vpop.f32.mrf.mxu0
    %v1392 = vadd.f32 0.0, %v1391
    %v1393 = vpop.f32.mrf.mxu0
    %1394 = vmatprep.mubr.f32.mxu0 0.0
    %1395 = vmatmul.mubr.f32.gmra.mxu0 %v1263
    %v1396 = vpop.f32.mrf.mxu0
    %v1397 = vadd.f32 0.0, %v1396
    %v1398 = vpop.f32.mrf.mxu0
    %1399 = vmatprep.mubr.f32.mxu0 0.0
    %1400 = vmatmul.mubr.f32.gmra.mxu0 %v1266
    %v1401 = vpop.f32.mrf.mxu0
    %v1402 = vadd.f32 0.0, %v1401
    %v1403 = vpop.f32.mrf.mxu0
    %1404 = vmatprep.mubr.f32.mxu0 0.0
    %1405 = vmatmul.mubr.f32.gmra.mxu0 %v1269
    %v1406 = vpop.f32.mrf.mxu0
    %v1407 = vadd.f32 0.0, %v1406
    %v1408 = vpop.f32.mrf.mxu0
    %1409 = vmatprep.mubr.f32.mxu0 0.0
    %1410 = vmatmul.mubr.f32.gmra.mxu0 %v1272
    %v1411 = vpop.f32.mrf.mxu0
    %v1412 = vadd.f32 0.0, %v1411
    %v1413 = vpop.f32.mrf.mxu0
    %1414 = vmatprep.mubr.f32.mxu0 0.0
    %1415 = vmatmul.mubr.f32.gmra.mxu0 %v1275
    %v1416 = vpop.f32.mrf.mxu0
    %v1417 = vadd.f32 0.0, %v1416
    %v1418 = vpop.f32.mrf.mxu0
    %1419 = vmatprep.mubr.f32.mxu0 0.0
    %1420 = vmatmul.mubr.f32.gmra.mxu0 %v1278
    %v1421 = vpop.f32.mrf.mxu0
    %v1422 = vadd.f32 0.0, %v1421
    %v1423 = vpop.f32.mrf.mxu0
    %1424 = vdwg.mxu0
    %v1425 = vadd.f32 %v1117, %v1347
    %v1426 = vadd.f32 %v1122, %v1352
    %v1427 = vadd.f32 %v1127, %v1357
    %v1428 = vadd.f32 %v1132, %v1362
    %v1429 = vadd.f32 %v1137, %v1367
    %v1430 = vadd.f32 %v1142, %v1372
    %v1431 = vadd.f32 %v1147, %v1377
    %v1432 = vadd.f32 %v1152, %v1382
    %v1433 = vadd.f32 %v1157, %v1387
    %v1434 = vadd.f32 %v1162, %v1392
    %v1435 = vadd.f32 %v1167, %v1397
    %v1436 = vadd.f32 %v1172, %v1402
    %v1437 = vadd.f32 %v1177, %v1407
    %v1438 = vadd.f32 %v1182, %v1412
    %v1439 = vadd.f32 %v1187, %v1417
    %v1440 = vadd.f32 %v1192, %v1422
    %v1441 = vld [vmem:[%s3 + $0x1] sm:$0x1]
    %v1442 = vlaneseq
    %v1443 = vshrl.u32 %v1442, 7
    %v1444 = vsub.s32 0, %v1443
    %v1445 = vrot.slane %v1441, %v1444
    %v1446 = vadd.f32 %v1425, %v1445
    %v1447 = vadd.f32 %v1426, %v1445
    %v1448 = vadd.f32 %v1427, %v1445
    %v1449 = vadd.f32 %v1428, %v1445
    %v1450 = vadd.f32 %v1429, %v1445
    %v1451 = vadd.f32 %v1430, %v1445
    %v1452 = vadd.f32 %v1431, %v1445
    %v1453 = vadd.f32 %v1432, %v1445
    %v1454 = vadd.f32 %v1433, %v1445
    %v1455 = vadd.f32 %v1434, %v1445
    %v1456 = vadd.f32 %v1435, %v1445
    %v1457 = vadd.f32 %v1436, %v1445
    %v1458 = vadd.f32 %v1437, %v1445
    %v1459 = vadd.f32 %v1438, %v1445
    %v1460 = vadd.f32 %v1439, %v1445
    %v1461 = vadd.f32 %v1440, %v1445
    %v1462 = vmax.f32 %v1446, 0.0
    %v1463 = vmax.f32 %v1447, 0.0
    %v1464 = vmax.f32 %v1448, 0.0
    %v1465 = vmax.f32 %v1449, 0.0
    %v1466 = vmax.f32 %v1450, 0.0
    %v1467 = vmax.f32 %v1451, 0.0
    %v1468 = vmax.f32 %v1452, 0.0
    %v1469 = vmax.f32 %v1453, 0.0
    %v1470 = vmax.f32 %v1454, 0.0
    %v1471 = vmax.f32 %v1455, 0.0
    %v1472 = vmax.f32 %v1456, 0.0
    %v1473 = vmax.f32 %v1457, 0.0
    %v1474 = vmax.f32 %v1458, 0.0
    %v1475 = vmax.f32 %v1459, 0.0
    %v1476 = vmax.f32 %v1460, 0.0
    %v1477 = vmax.f32 %v1461, 0.0
    %v1478 = vadd.s32 %v787, 8
    %vm1479 = vcmp.ge.s32.totalorder %v41, 0
    %vm1480 = vcmp.lt.s32.totalorder %v41, 8
    %vm1481 = vmand %vm1479, %vm1480
    %v1482 = vsel %vm1481, 15, 0
    %vm1483 = vcmp.ge.s32.totalorder %v41, 8
    %vm1484 = vcmp.lt.s32.totalorder %v41, 16
    %vm1485 = vmand %vm1483, %vm1484
    %v1486 = vsel %vm1485, 14, %v1482
    %vm1487 = vcmp.lt.s32.totalorder %v787, %v1486
    %vm1488 = vcmp.lt.s32.totalorder %v1478, %v1486
    %v1489 = vsel %vm1487, %v1462, 0.0
    %v1490 = vsel %vm1488, %v1463, 0.0
    %v1491 = vsel %vm1487, %v1464, 0.0
    %v1492 = vsel %vm1488, %v1465, 0.0
    %v1493 = vsel %vm1487, %v1466, 0.0
    %v1494 = vsel %vm1488, %v1467, 0.0
    %v1495 = vsel %vm1487, %v1468, 0.0
    %v1496 = vsel %vm1488, %v1469, 0.0
    %v1497 = vsel %vm1487, %v1470, 0.0
    %v1498 = vsel %vm1488, %v1471, 0.0
    %v1499 = vsel %vm1487, %v1472, 0.0
    %v1500 = vsel %vm1488, %v1473, 0.0
    %v1501 = vsel %vm1487, %v1474, 0.0
    %v1502 = vsel %vm1488, %v1475, 0.0
    %v1503 = vsel %vm1487, %v1476, 0.0
    %v1504 = vsel %vm1488, %v1477, 0.0
    %vm1505 = vcmask 130048
    %v1506 = vsel %vm1505, %v1489, -inf
    %v1507 = vsel %vm1505, %v1490, -inf
    %v1508 = vmax.f32 %v1506, %v1507
    %v1509 = vrot.slane %v1508, 4
    %v1510 = vmax.f32 %v1508, %v1509
    %v1511 = vrot.slane %v1510, 2
    %v1512 = vmax.f32 %v1510, %v1511
    %v1513 = vrot.slane %v1512, 1
    %v1514 = vmax.f32 %v1512, %v1513
    %v1515 = vsel %vm1505, %v1491, -inf
    %v1516 = vsel %vm1505, %v1492, -inf
    %v1517 = vmax.f32 %v1515, %v1516
    %v1518 = vrot.slane %v1517, 4
    %v1519 = vmax.f32 %v1517, %v1518
    %v1520 = vrot.slane %v1519, 2
    %v1521 = vmax.f32 %v1519, %v1520
    %v1522 = vrot.slane %v1521, 1
    %v1523 = vmax.f32 %v1521, %v1522
    %v1524 = vsel %vm1505, %v1493, -inf
    %v1525 = vsel %vm1505, %v1494, -inf
    %v1526 = vmax.f32 %v1524, %v1525
    %v1527 = vrot.slane %v1526, 4
    %v1528 = vmax.f32 %v1526, %v1527
    %v1529 = vrot.slane %v1528, 2
    %v1530 = vmax.f32 %v1528, %v1529
    %v1531 = vrot.slane %v1530, 1
    %v1532 = vmax.f32 %v1530, %v1531
    %v1533 = vsel %vm1505, %v1495, -inf
    %v1534 = vsel %vm1505, %v1496, -inf
    %v1535 = vmax.f32 %v1533, %v1534
    %v1536 = vrot.slane %v1535, 4
    %v1537 = vmax.f32 %v1535, %v1536
    %v1538 = vrot.slane %v1537, 2
    %v1539 = vmax.f32 %v1537, %v1538
    %v1540 = vrot.slane %v1539, 1
    %v1541 = vmax.f32 %v1539, %v1540
    %v1542 = vsel %vm1505, %v1497, -inf
    %v1543 = vsel %vm1505, %v1498, -inf
    %v1544 = vmax.f32 %v1542, %v1543
    %v1545 = vrot.slane %v1544, 4
    %v1546 = vmax.f32 %v1544, %v1545
    %v1547 = vrot.slane %v1546, 2
    %v1548 = vmax.f32 %v1546, %v1547
    %v1549 = vrot.slane %v1548, 1
    %v1550 = vmax.f32 %v1548, %v1549
    %v1551 = vsel %vm1505, %v1499, -inf
    %v1552 = vsel %vm1505, %v1500, -inf
    %v1553 = vmax.f32 %v1551, %v1552
    %v1554 = vrot.slane %v1553, 4
    %v1555 = vmax.f32 %v1553, %v1554
    %v1556 = vrot.slane %v1555, 2
    %v1557 = vmax.f32 %v1555, %v1556
    %v1558 = vrot.slane %v1557, 1
    %v1559 = vmax.f32 %v1557, %v1558
    %v1560 = vsel %vm1505, %v1501, -inf
    %v1561 = vsel %vm1505, %v1502, -inf
    %v1562 = vmax.f32 %v1560, %v1561
    %v1563 = vrot.slane %v1562, 4
    %v1564 = vmax.f32 %v1562, %v1563
    %v1565 = vrot.slane %v1564, 2
    %v1566 = vmax.f32 %v1564, %v1565
    %v1567 = vrot.slane %v1566, 1
    %v1568 = vmax.f32 %v1566, %v1567
    %v1569 = vsel %vm1505, %v1503, -inf
    %v1570 = vsel %vm1505, %v1504, -inf
    %v1571 = vmax.f32 %v1569, %v1570
    %v1572 = vrot.slane %v1571, 4
    %v1573 = vmax.f32 %v1571, %v1572
    %v1574 = vrot.slane %v1573, 2
    %v1575 = vmax.f32 %v1573, %v1574
    %v1576 = vrot.slane %v1575, 1
    %v1577 = vmax.f32 %v1575, %v1576
    %v1578 = vld [vmem:[%s2 + $0x60] sm:$0xff]
    %v1579 = vld [vmem:[%s2 + $0x68] sm:$0xff]
    %v1580 = vld [vmem:[%s3 + $0x2] sm:$0x1]
    %v1581 = vlaneseq
    %v1582 = vshrl.u32 %v1581, 7
    %v1583 = vsub.s32 0, %v1582
    %v1584 = vrot.slane %v1580, %v1583
    %vm1593 = vcmask 1041409
    %v1594 = vsel %vm1593, %v1523, %v1514
    %vm1595 = vcmask 1042434
    %v1596 = vsel %vm1595, %v1532, %v1594
    %vm1597 = vcmask 1043459
    %v1598 = vsel %vm1597, %v1541, %v1596
    %vm1599 = vcmask 1044484
    %v1600 = vsel %vm1599, %v1550, %v1598
    %vm1601 = vcmask 1045509
    %v1602 = vsel %vm1601, %v1559, %v1600
    %vm1603 = vcmask 1046534
    %v1604 = vsel %vm1603, %v1568, %v1602
    %vm1605 = vcmask 1047559
    %v1606 = vsel %vm1605, %v1577, %v1604
    %v1607 = vsel %vm1505, %v1606, 0
    %1609 = vmatprep.subr.mxu0 0.0
    %1610 = vmatpush1.msra.mxu0 0.0
    %1611 = vmatprep.subr.mxu0 0.0
    %1612 = vmatpush1.msra.mxu0 0.0
    %1613 = vmatprep.subr.mxu0 0.0
    %1614 = vmatpush1.msra.mxu0 0.0
    %1615 = vmatprep.subr.mxu0 0.0
    %1616 = vmatpush1.msra.mxu0 0.0
    %1617 = vmatprep.subr.mxu0 0.0
    %1618 = vmatpush1.msra.mxu0 0.0
    %1619 = vmatprep.subr.mxu0 0.0
    %1620 = vmatpush1.msra.mxu0 0.0
    %1621 = vmatprep.subr.mxu0 0.0
    %1622 = vmatpush1.msra.mxu0 0.0
    %1623 = vmatprep.subr.mxu0 0.0
    %1624 = vmatpush1.msra.mxu0 0.0
    %1625 = vmatprep.subr.mxu0 0.0
    %1626 = vmatpush1.msra.mxu0 0.0
    %1627 = vmatprep.subr.mxu0 0.0
    %1628 = vmatpush1.msra.mxu0 0.0
    %1629 = vmatprep.subr.mxu0 0.0
    %1630 = vmatpush1.msra.mxu0 0.0
    %1631 = vmatprep.subr.mxu0 0.0
    %1632 = vmatpush1.msra.mxu0 0.0
    %1633 = vmatprep.subr.mxu0 0.0
    %1634 = vmatpush1.msra.mxu0 0.0
    %1635 = vmatprep.subr.mxu0 0.0
    %1636 = vmatpush1.msra.mxu0 0.0
    %1637 = vmatprep.subr.mxu0 0.0
    %1638 = vmatpush1.msra.mxu0 %v1579
    %1639 = vmatprep.subr.mxu0 0.0
    %1640 = vmatpush1.msra.mxu0 %v1578
    %1641 = vmatprep.subr.mxu0 0.0
    %1642 = vmatpush2.msra.mxu0 0.0
    %1643 = vmatprep.subr.mxu0 0.0
    %1644 = vmatpush2.msra.mxu0 0.0
    %1645 = vmatprep.subr.mxu0 0.0
    %1646 = vmatpush2.msra.mxu0 0.0
    %1647 = vmatprep.subr.mxu0 0.0
    %1648 = vmatpush2.msra.mxu0 0.0
    %1649 = vmatprep.subr.mxu0 0.0
    %1650 = vmatpush2.msra.mxu0 0.0
    %1651 = vmatprep.subr.mxu0 0.0
    %1652 = vmatpush2.msra.mxu0 0.0
    %1653 = vmatprep.subr.mxu0 0.0
    %1654 = vmatpush2.msra.mxu0 0.0
    %1655 = vmatprep.subr.mxu0 0.0
    %1656 = vmatpush2.msra.mxu0 0.0
    %1657 = vmatprep.subr.mxu0 0.0
    %1658 = vmatpush2.msra.mxu0 0.0
    %1659 = vmatprep.subr.mxu0 0.0
    %1660 = vmatpush2.msra.mxu0 0.0
    %1661 = vmatprep.subr.mxu0 0.0
    %1662 = vmatpush2.msra.mxu0 0.0
    %1663 = vmatprep.subr.mxu0 0.0
    %1664 = vmatpush2.msra.mxu0 0.0
    %1665 = vmatprep.subr.mxu0 0.0
    %1666 = vmatpush2.msra.mxu0 0.0
    %1667 = vmatprep.subr.mxu0 0.0
    %1668 = vmatpush2.msra.mxu0 0.0
    %1669 = vmatprep.subr.mxu0 0.0
    %1670 = vmatpush2.msra.mxu0 0.0
    %1671 = vmatprep.subr.mxu0 0.0
    %1672 = vmatpush2.msra.mxu0 0.0
    %1673 = vmatprep.mubr.f32.mxu0 0.0
    %1674 = vmatmul.mubr.f32.gmra.mxu0 %v1607
    %v1675 = vpop.f32.mrf.mxu0
    %v1676 = vadd.f32 %v1584, %v1675
    %v1677 = vpop.f32.mrf.mxu0
    %1678 = vdwg.mxu0
    %v1679 = vmax.f32 %v1676, 0.0
    %v1680 = vld [vmem:[%s2 + $0x70] sm:$0xff]
    %v1681 = vld [vmem:[%s2 + $0x78] sm:$0xff]
    %v1683 = vsel %vm1505, %v1679, 0
    %1685 = vmatprep.subr.mxu0 0.0
    %1686 = vmatpush1.msra.mxu0 0.0
    %1687 = vmatprep.subr.mxu0 0.0
    %1688 = vmatpush1.msra.mxu0 0.0
    %1689 = vmatprep.subr.mxu0 0.0
    %1690 = vmatpush1.msra.mxu0 0.0
    %1691 = vmatprep.subr.mxu0 0.0
    %1692 = vmatpush1.msra.mxu0 0.0
    %1693 = vmatprep.subr.mxu0 0.0
    %1694 = vmatpush1.msra.mxu0 0.0
    %1695 = vmatprep.subr.mxu0 0.0
    %1696 = vmatpush1.msra.mxu0 0.0
    %1697 = vmatprep.subr.mxu0 0.0
    %1698 = vmatpush1.msra.mxu0 0.0
    %1699 = vmatprep.subr.mxu0 0.0
    %1700 = vmatpush1.msra.mxu0 0.0
    %1701 = vmatprep.subr.mxu0 0.0
    %1702 = vmatpush1.msra.mxu0 0.0
    %1703 = vmatprep.subr.mxu0 0.0
    %1704 = vmatpush1.msra.mxu0 0.0
    %1705 = vmatprep.subr.mxu0 0.0
    %1706 = vmatpush1.msra.mxu0 0.0
    %1707 = vmatprep.subr.mxu0 0.0
    %1708 = vmatpush1.msra.mxu0 0.0
    %1709 = vmatprep.subr.mxu0 0.0
    %1710 = vmatpush1.msra.mxu0 0.0
    %1711 = vmatprep.subr.mxu0 0.0
    %1712 = vmatpush1.msra.mxu0 0.0
    %1713 = vmatprep.subr.mxu0 0.0
    %1714 = vmatpush1.msra.mxu0 %v1681
    %1715 = vmatprep.subr.mxu0 0.0
    %1716 = vmatpush1.msra.mxu0 %v1680
    %1717 = vmatprep.subr.mxu0 0.0
    %1718 = vmatpush2.msra.mxu0 0.0
    %1719 = vmatprep.subr.mxu0 0.0
    %1720 = vmatpush2.msra.mxu0 0.0
    %1721 = vmatprep.subr.mxu0 0.0
    %1722 = vmatpush2.msra.mxu0 0.0
    %1723 = vmatprep.subr.mxu0 0.0
    %1724 = vmatpush2.msra.mxu0 0.0
    %1725 = vmatprep.subr.mxu0 0.0
    %1726 = vmatpush2.msra.mxu0 0.0
    %1727 = vmatprep.subr.mxu0 0.0
    %1728 = vmatpush2.msra.mxu0 0.0
    %1729 = vmatprep.subr.mxu0 0.0
    %1730 = vmatpush2.msra.mxu0 0.0
    %1731 = vmatprep.subr.mxu0 0.0
    %1732 = vmatpush2.msra.mxu0 0.0
    %1733 = vmatprep.subr.mxu0 0.0
    %1734 = vmatpush2.msra.mxu0 0.0
    %1735 = vmatprep.subr.mxu0 0.0
    %1736 = vmatpush2.msra.mxu0 0.0
    %1737 = vmatprep.subr.mxu0 0.0
    %1738 = vmatpush2.msra.mxu0 0.0
    %1739 = vmatprep.subr.mxu0 0.0
    %1740 = vmatpush2.msra.mxu0 0.0
    %1741 = vmatprep.subr.mxu0 0.0
    %1742 = vmatpush2.msra.mxu0 0.0
    %1743 = vmatprep.subr.mxu0 0.0
    %1744 = vmatpush2.msra.mxu0 0.0
    %1745 = vmatprep.subr.mxu0 0.0
    %1746 = vmatpush2.msra.mxu0 0.0
    %1747 = vmatprep.subr.mxu0 0.0
    %1748 = vmatpush2.msra.mxu0 0.0
    %1749 = vmatprep.mubr.f32.mxu0 0.0
    %1750 = vmatmul.mubr.f32.gmra.mxu0 %v1683
    %v1751 = vpop.f32.mrf.mxu0
    %v1752 = vadd.f32 0.0, %v1751
    %v1753 = vpop.f32.mrf.mxu0
    %1754 = vdwg.mxu0
    %v1756 = vsel %vm1505, %v1752, 0
    %1758 = vmatprep.subr.mxu0 0.0
    %1759 = vmatpush1.xpose.msra.mxu0 0.0
    %1760 = vmatprep.subr.mxu0 0.0
    %1761 = vmatpush1.xpose.msra.mxu0 0.0
    %1762 = vmatprep.subr.mxu0 0.0
    %1763 = vmatpush1.xpose.msra.mxu0 0.0
    %1764 = vmatprep.subr.mxu0 0.0
    %1765 = vmatpush1.xpose.msra.mxu0 0.0
    %1766 = vmatprep.subr.mxu0 0.0
    %1767 = vmatpush1.xpose.msra.mxu0 0.0
    %1768 = vmatprep.subr.mxu0 0.0
    %1769 = vmatpush1.xpose.msra.mxu0 0.0
    %1770 = vmatprep.subr.mxu0 0.0
    %1771 = vmatpush1.xpose.msra.mxu0 0.0
    %1772 = vmatprep.subr.mxu0 0.0
    %1773 = vmatpush1.xpose.msra.mxu0 0.0
    %1774 = vmatprep.subr.mxu0 0.0
    %1775 = vmatpush1.xpose.msra.mxu0 0.0
    %1776 = vmatprep.subr.mxu0 0.0
    %1777 = vmatpush1.xpose.msra.mxu0 0.0
    %1778 = vmatprep.subr.mxu0 0.0
    %1779 = vmatpush1.xpose.msra.mxu0 0.0
    %1780 = vmatprep.subr.mxu0 0.0
    %1781 = vmatpush1.xpose.msra.mxu0 0.0
    %1782 = vmatprep.subr.mxu0 0.0
    %1783 = vmatpush1.xpose.msra.mxu0 0.0
    %1784 = vmatprep.subr.mxu0 0.0
    %1785 = vmatpush1.xpose.msra.mxu0 0.0
    %1786 = vmatprep.subr.mxu0 0.0
    %1787 = vmatpush1.xpose.msra.mxu0 0.0
    %1788 = vmatprep.subr.mxu0 0.0
    %1789 = vmatpush1.xpose.msra.mxu0 %v1683
    %1790 = vmatprep.subr.mxu0 0.0
    %1791 = vmatpush2.xpose.msra.mxu0 0.0
    %1792 = vmatprep.subr.mxu0 0.0
    %1793 = vmatpush2.xpose.msra.mxu0 0.0
    %1794 = vmatprep.subr.mxu0 0.0
    %1795 = vmatpush2.xpose.msra.mxu0 0.0
    %1796 = vmatprep.subr.mxu0 0.0
    %1797 = vmatpush2.xpose.msra.mxu0 0.0
    %1798 = vmatprep.subr.mxu0 0.0
    %1799 = vmatpush2.xpose.msra.mxu0 0.0
    %1800 = vmatprep.subr.mxu0 0.0
    %1801 = vmatpush2.xpose.msra.mxu0 0.0
    %1802 = vmatprep.subr.mxu0 0.0
    %1803 = vmatpush2.xpose.msra.mxu0 0.0
    %1804 = vmatprep.subr.mxu0 0.0
    %1805 = vmatpush2.xpose.msra.mxu0 0.0
    %1806 = vmatprep.subr.mxu0 0.0
    %1807 = vmatpush2.xpose.msra.mxu0 0.0
    %1808 = vmatprep.subr.mxu0 0.0
    %1809 = vmatpush2.xpose.msra.mxu0 0.0
    %1810 = vmatprep.subr.mxu0 0.0
    %1811 = vmatpush2.xpose.msra.mxu0 0.0
    %1812 = vmatprep.subr.mxu0 0.0
    %1813 = vmatpush2.xpose.msra.mxu0 0.0
    %1814 = vmatprep.subr.mxu0 0.0
    %1815 = vmatpush2.xpose.msra.mxu0 0.0
    %1816 = vmatprep.subr.mxu0 0.0
    %1817 = vmatpush2.xpose.msra.mxu0 0.0
    %1818 = vmatprep.subr.mxu0 0.0
    %1819 = vmatpush2.xpose.msra.mxu0 0.0
    %1820 = vmatprep.subr.mxu0 0.0
    %1821 = vmatpush2.xpose.msra.mxu0 0.0
    %1822 = vmatprep.mubr.f32.mxu0 0.0
    %1823 = vmatmul.mubr.f32.gmra.mxu0 %v1756
    %v1824 = vpop.f32.mrf.mxu0
    %v1825 = vadd.f32 0.0, %v1824
    %v1826 = vpop.f32.mrf.mxu0
    %1827 = vdwg.mxu0
    %v1828 = vld [vmem:[%s4] sm:$0xff]
    %vm1829 = vcmp.gt.f32.partialorder %v1828, 0.0
    %v1830 = vsel %vm1829, %v1825, -1e+30
    %vm1831 = vcmask 64512
    %v1832 = vsel %vm1831, %v1830, -inf
    %v1833 = vrot.slane %v1832, 4
    %v1834 = vmax.f32 %v1832, %v1833
    %v1835 = vrot.slane %v1834, 2
    %v1836 = vmax.f32 %v1834, %v1835
    %v1837 = vrot.slane %v1836, 1
    %v1838 = vmax.f32 %v1836, %v1837
    %v1839 = vsub.f32 %v1830, %v1838
    %v1840 = vmul.f32 %v1839, 1.442695
    %v1841 = vpow.pop %v1840
    %v1842 = vsel %vm1829, %v1841, 0.0
    %v1843 = vsel %vm1831, %v1842, 0.0
    %v1844 = vrot.slane %v1843, 4
    %v1845 = vadd.f32 %v1843, %v1844
    %v1846 = vrot.slane %v1845, 2
    %v1847 = vadd.f32 %v1845, %v1846
    %v1848 = vrot.slane %v1847, 1
    %v1849 = vadd.f32 %v1847, %v1848
    %vm1850 = vcmp.gt.f32.partialorder %v1849, 0.0
    %v1851 = vsel %vm1850, %v1849, 1.0
    %v1852 = vrcp.pop %v1851
    %v1853 = vmul.f32 %v1842, %v1852
    %v1854 = vld [vmem:[%s4 + $0x8] sm:$0xff]
    %v1855 = vld [vmem:[%s4 + $0x10] sm:$0xff]
    %v1856 = vld [vmem:[%s4 + $0x18] sm:$0xff]
    %v1857 = vld [vmem:[%s4 + $0x20] sm:$0xff]
    %v1858 = vld [vmem:[%s4 + $0x28] sm:$0xff]
    %v1859 = vld [vmem:[%s4 + $0x30] sm:$0x3]
    %v1861 = vsel %vm1831, %v1854, 0
    %1863 = vmatprep.subr.mxu0 0.0
    %1864 = vmatpush1.msra.mxu0 0.0
    %1865 = vmatprep.subr.mxu0 0.0
    %1866 = vmatpush1.msra.mxu0 0.0
    %1867 = vmatprep.subr.mxu0 0.0
    %1868 = vmatpush1.msra.mxu0 0.0
    %1869 = vmatprep.subr.mxu0 0.0
    %1870 = vmatpush1.msra.mxu0 0.0
    %1871 = vmatprep.subr.mxu0 0.0
    %1872 = vmatpush1.msra.mxu0 0.0
    %1873 = vmatprep.subr.mxu0 0.0
    %1874 = vmatpush1.msra.mxu0 0.0
    %1875 = vmatprep.subr.mxu0 0.0
    %1876 = vmatpush1.msra.mxu0 0.0
    %1877 = vmatprep.subr.mxu0 0.0
    %1878 = vmatpush1.msra.mxu0 0.0
    %1879 = vmatprep.subr.mxu0 0.0
    %1880 = vmatpush1.msra.mxu0 0.0
    %1881 = vmatprep.subr.mxu0 0.0
    %1882 = vmatpush1.msra.mxu0 0.0
    %1883 = vmatprep.subr.mxu0 0.0
    %1884 = vmatpush1.msra.mxu0 0.0
    %1885 = vmatprep.subr.mxu0 0.0
    %1886 = vmatpush1.msra.mxu0 0.0
    %1887 = vmatprep.subr.mxu0 0.0
    %1888 = vmatpush1.msra.mxu0 0.0
    %1889 = vmatprep.subr.mxu0 0.0
    %1890 = vmatpush1.msra.mxu0 0.0
    %1891 = vmatprep.subr.mxu0 0.0
    %1892 = vmatpush1.msra.mxu0 0.0
    %1893 = vmatprep.subr.mxu0 0.0
    %1894 = vmatpush1.msra.mxu0 %v1679
    %1895 = vmatprep.subr.mxu0 0.0
    %1896 = vmatpush2.msra.mxu0 0.0
    %1897 = vmatprep.subr.mxu0 0.0
    %1898 = vmatpush2.msra.mxu0 0.0
    %1899 = vmatprep.subr.mxu0 0.0
    %1900 = vmatpush2.msra.mxu0 0.0
    %1901 = vmatprep.subr.mxu0 0.0
    %1902 = vmatpush2.msra.mxu0 0.0
    %1903 = vmatprep.subr.mxu0 0.0
    %1904 = vmatpush2.msra.mxu0 0.0
    %1905 = vmatprep.subr.mxu0 0.0
    %1906 = vmatpush2.msra.mxu0 0.0
    %1907 = vmatprep.subr.mxu0 0.0
    %1908 = vmatpush2.msra.mxu0 0.0
    %1909 = vmatprep.subr.mxu0 0.0
    %1910 = vmatpush2.msra.mxu0 0.0
    %1911 = vmatprep.subr.mxu0 0.0
    %1912 = vmatpush2.msra.mxu0 0.0
    %1913 = vmatprep.subr.mxu0 0.0
    %1914 = vmatpush2.msra.mxu0 0.0
    %1915 = vmatprep.subr.mxu0 0.0
    %1916 = vmatpush2.msra.mxu0 0.0
    %1917 = vmatprep.subr.mxu0 0.0
    %1918 = vmatpush2.msra.mxu0 0.0
    %1919 = vmatprep.subr.mxu0 0.0
    %1920 = vmatpush2.msra.mxu0 0.0
    %1921 = vmatprep.subr.mxu0 0.0
    %1922 = vmatpush2.msra.mxu0 0.0
    %1923 = vmatprep.subr.mxu0 0.0
    %1924 = vmatpush2.msra.mxu0 0.0
    %1925 = vmatprep.subr.mxu0 0.0
    %1926 = vmatpush2.msra.mxu0 0.0
    %1927 = vmatprep.mubr.f32.mxu0 0.0
    %1928 = vmatmul.mubr.f32.gmra.mxu0 %v1861
    %v1929 = vpop.f32.mrf.mxu0
    %v1930 = vadd.f32 0.0, %v1929
    %v1931 = vpop.f32.mrf.mxu0
    %1932 = vdwg.mxu0
    %v1934 = vsel %vm1831, %v1853, 0
    %1936 = vmatprep.subr.mxu0 0.0
    %1937 = vmatpush1.xpose.msra.mxu0 0.0
    %1938 = vmatprep.subr.mxu0 0.0
    %1939 = vmatpush1.xpose.msra.mxu0 0.0
    %1940 = vmatprep.subr.mxu0 0.0
    %1941 = vmatpush1.xpose.msra.mxu0 0.0
    %1942 = vmatprep.subr.mxu0 0.0
    %1943 = vmatpush1.xpose.msra.mxu0 0.0
    %1944 = vmatprep.subr.mxu0 0.0
    %1945 = vmatpush1.xpose.msra.mxu0 0.0
    %1946 = vmatprep.subr.mxu0 0.0
    %1947 = vmatpush1.xpose.msra.mxu0 0.0
    %1948 = vmatprep.subr.mxu0 0.0
    %1949 = vmatpush1.xpose.msra.mxu0 0.0
    %1950 = vmatprep.subr.mxu0 0.0
    %1951 = vmatpush1.xpose.msra.mxu0 0.0
    %1952 = vmatprep.subr.mxu0 0.0
    %1953 = vmatpush1.xpose.msra.mxu0 0.0
    %1954 = vmatprep.subr.mxu0 0.0
    %1955 = vmatpush1.xpose.msra.mxu0 0.0
    %1956 = vmatprep.subr.mxu0 0.0
    %1957 = vmatpush1.xpose.msra.mxu0 0.0
    %1958 = vmatprep.subr.mxu0 0.0
    %1959 = vmatpush1.xpose.msra.mxu0 0.0
    %1960 = vmatprep.subr.mxu0 0.0
    %1961 = vmatpush1.xpose.msra.mxu0 0.0
    %1962 = vmatprep.subr.mxu0 0.0
    %1963 = vmatpush1.xpose.msra.mxu0 0.0
    %1964 = vmatprep.subr.mxu0 0.0
    %1965 = vmatpush1.xpose.msra.mxu0 0.0
    %1966 = vmatprep.subr.mxu0 0.0
    %1967 = vmatpush1.xpose.msra.mxu0 %v1934
    %1968 = vmatprep.subr.mxu0 0.0
    %1969 = vmatpush2.xpose.msra.mxu0 0.0
    %1970 = vmatprep.subr.mxu0 0.0
    %1971 = vmatpush2.xpose.msra.mxu0 0.0
    %1972 = vmatprep.subr.mxu0 0.0
    %1973 = vmatpush2.xpose.msra.mxu0 0.0
    %1974 = vmatprep.subr.mxu0 0.0
    %1975 = vmatpush2.xpose.msra.mxu0 0.0
    %1976 = vmatprep.subr.mxu0 0.0
    %1977 = vmatpush2.xpose.msra.mxu0 0.0
    %1978 = vmatprep.subr.mxu0 0.0
    %1979 = vmatpush2.xpose.msra.mxu0 0.0
    %1980 = vmatprep.subr.mxu0 0.0
    %1981 = vmatpush2.xpose.msra.mxu0 0.0
    %1982 = vmatprep.subr.mxu0 0.0
    %1983 = vmatpush2.xpose.msra.mxu0 0.0
    %1984 = vmatprep.subr.mxu0 0.0
    %1985 = vmatpush2.xpose.msra.mxu0 0.0
    %1986 = vmatprep.subr.mxu0 0.0
    %1987 = vmatpush2.xpose.msra.mxu0 0.0
    %1988 = vmatprep.subr.mxu0 0.0
    %1989 = vmatpush2.xpose.msra.mxu0 0.0
    %1990 = vmatprep.subr.mxu0 0.0
    %1991 = vmatpush2.xpose.msra.mxu0 0.0
    %1992 = vmatprep.subr.mxu0 0.0
    %1993 = vmatpush2.xpose.msra.mxu0 0.0
    %1994 = vmatprep.subr.mxu0 0.0
    %1995 = vmatpush2.xpose.msra.mxu0 0.0
    %1996 = vmatprep.subr.mxu0 0.0
    %1997 = vmatpush2.xpose.msra.mxu0 0.0
    %1998 = vmatprep.subr.mxu0 0.0
    %1999 = vmatpush2.xpose.msra.mxu0 0.0
    %2000 = vmatprep.mubr.f32.mxu0 0.0
    %2001 = vmatmul.mubr.f32.gmra.mxu0 %v1861
    %v2002 = vpop.f32.mrf.mxu0
    %v2003 = vadd.f32 0.0, %v2002
    %v2004 = vpop.f32.mrf.mxu0
    %2005 = vdwg.mxu0
    %v2007 = vsel %vm1831, %v2003, 0
    %2009 = vmatprep.subr.mxu0 0.0
    %2010 = vmatpush1.xpose.msra.mxu0 0.0
    %2011 = vmatprep.subr.mxu0 0.0
    %2012 = vmatpush1.xpose.msra.mxu0 0.0
    %2013 = vmatprep.subr.mxu0 0.0
    %2014 = vmatpush1.xpose.msra.mxu0 0.0
    %2015 = vmatprep.subr.mxu0 0.0
    %2016 = vmatpush1.xpose.msra.mxu0 0.0
    %2017 = vmatprep.subr.mxu0 0.0
    %2018 = vmatpush1.xpose.msra.mxu0 0.0
    %2019 = vmatprep.subr.mxu0 0.0
    %2020 = vmatpush1.xpose.msra.mxu0 0.0
    %2021 = vmatprep.subr.mxu0 0.0
    %2022 = vmatpush1.xpose.msra.mxu0 0.0
    %2023 = vmatprep.subr.mxu0 0.0
    %2024 = vmatpush1.xpose.msra.mxu0 0.0
    %2025 = vmatprep.subr.mxu0 0.0
    %2026 = vmatpush1.xpose.msra.mxu0 0.0
    %2027 = vmatprep.subr.mxu0 0.0
    %2028 = vmatpush1.xpose.msra.mxu0 0.0
    %2029 = vmatprep.subr.mxu0 0.0
    %2030 = vmatpush1.xpose.msra.mxu0 0.0
    %2031 = vmatprep.subr.mxu0 0.0
    %2032 = vmatpush1.xpose.msra.mxu0 0.0
    %2033 = vmatprep.subr.mxu0 0.0
    %2034 = vmatpush1.xpose.msra.mxu0 0.0
    %2035 = vmatprep.subr.mxu0 0.0
    %2036 = vmatpush1.xpose.msra.mxu0 0.0
    %2037 = vmatprep.subr.mxu0 0.0
    %2038 = vmatpush1.xpose.msra.mxu0 0.0
    %2039 = vmatprep.subr.mxu0 0.0
    %2040 = vmatpush1.xpose.msra.mxu0 %v1861
    %2041 = vmatprep.subr.mxu0 0.0
    %2042 = vmatpush2.xpose.msra.mxu0 0.0
    %2043 = vmatprep.subr.mxu0 0.0
    %2044 = vmatpush2.xpose.msra.mxu0 0.0
    %2045 = vmatprep.subr.mxu0 0.0
    %2046 = vmatpush2.xpose.msra.mxu0 0.0
    %2047 = vmatprep.subr.mxu0 0.0
    %2048 = vmatpush2.xpose.msra.mxu0 0.0
    %2049 = vmatprep.subr.mxu0 0.0
    %2050 = vmatpush2.xpose.msra.mxu0 0.0
    %2051 = vmatprep.subr.mxu0 0.0
    %2052 = vmatpush2.xpose.msra.mxu0 0.0
    %2053 = vmatprep.subr.mxu0 0.0
    %2054 = vmatpush2.xpose.msra.mxu0 0.0
    %2055 = vmatprep.subr.mxu0 0.0
    %2056 = vmatpush2.xpose.msra.mxu0 0.0
    %2057 = vmatprep.subr.mxu0 0.0
    %2058 = vmatpush2.xpose.msra.mxu0 0.0
    %2059 = vmatprep.subr.mxu0 0.0
    %2060 = vmatpush2.xpose.msra.mxu0 0.0
    %2061 = vmatprep.subr.mxu0 0.0
    %2062 = vmatpush2.xpose.msra.mxu0 0.0
    %2063 = vmatprep.subr.mxu0 0.0
    %2064 = vmatpush2.xpose.msra.mxu0 0.0
    %2065 = vmatprep.subr.mxu0 0.0
    %2066 = vmatpush2.xpose.msra.mxu0 0.0
    %2067 = vmatprep.subr.mxu0 0.0
    %2068 = vmatpush2.xpose.msra.mxu0 0.0
    %2069 = vmatprep.subr.mxu0 0.0
    %2070 = vmatpush2.xpose.msra.mxu0 0.0
    %2071 = vmatprep.subr.mxu0 0.0
    %2072 = vmatpush2.xpose.msra.mxu0 0.0
    %2073 = vmatprep.mubr.f32.mxu0 0.0
    %2074 = vmatmul.mubr.f32.gmra.mxu0 %v2007
    %v2075 = vpop.f32.mrf.mxu0
    %v2076 = vadd.f32 0.0, %v2075
    %v2077 = vpop.f32.mrf.mxu0
    %2078 = vdwg.mxu0
    %v2080 = vsel %vm1831, %v2076, 0
    %2082 = vmatprep.subr.mxu0 0.0
    %2083 = vmatpush1.msra.mxu0 0.0
    %2084 = vmatprep.subr.mxu0 0.0
    %2085 = vmatpush1.msra.mxu0 0.0
    %2086 = vmatprep.subr.mxu0 0.0
    %2087 = vmatpush1.msra.mxu0 0.0
    %2088 = vmatprep.subr.mxu0 0.0
    %2089 = vmatpush1.msra.mxu0 0.0
    %2090 = vmatprep.subr.mxu0 0.0
    %2091 = vmatpush1.msra.mxu0 0.0
    %2092 = vmatprep.subr.mxu0 0.0
    %2093 = vmatpush1.msra.mxu0 0.0
    %2094 = vmatprep.subr.mxu0 0.0
    %2095 = vmatpush1.msra.mxu0 0.0
    %2096 = vmatprep.subr.mxu0 0.0
    %2097 = vmatpush1.msra.mxu0 0.0
    %2098 = vmatprep.subr.mxu0 0.0
    %2099 = vmatpush1.msra.mxu0 0.0
    %2100 = vmatprep.subr.mxu0 0.0
    %2101 = vmatpush1.msra.mxu0 0.0
    %2102 = vmatprep.subr.mxu0 0.0
    %2103 = vmatpush1.msra.mxu0 0.0
    %2104 = vmatprep.subr.mxu0 0.0
    %2105 = vmatpush1.msra.mxu0 0.0
    %2106 = vmatprep.subr.mxu0 0.0
    %2107 = vmatpush1.msra.mxu0 0.0
    %2108 = vmatprep.subr.mxu0 0.0
    %2109 = vmatpush1.msra.mxu0 0.0
    %2110 = vmatprep.subr.mxu0 0.0
    %2111 = vmatpush1.msra.mxu0 0.0
    %2112 = vmatprep.subr.mxu0 0.0
    %2113 = vmatpush1.msra.mxu0 %v1930
    %2114 = vmatprep.subr.mxu0 0.0
    %2115 = vmatpush2.msra.mxu0 0.0
    %2116 = vmatprep.subr.mxu0 0.0
    %2117 = vmatpush2.msra.mxu0 0.0
    %2118 = vmatprep.subr.mxu0 0.0
    %2119 = vmatpush2.msra.mxu0 0.0
    %2120 = vmatprep.subr.mxu0 0.0
    %2121 = vmatpush2.msra.mxu0 0.0
    %2122 = vmatprep.subr.mxu0 0.0
    %2123 = vmatpush2.msra.mxu0 0.0
    %2124 = vmatprep.subr.mxu0 0.0
    %2125 = vmatpush2.msra.mxu0 0.0
    %2126 = vmatprep.subr.mxu0 0.0
    %2127 = vmatpush2.msra.mxu0 0.0
    %2128 = vmatprep.subr.mxu0 0.0
    %2129 = vmatpush2.msra.mxu0 0.0
    %2130 = vmatprep.subr.mxu0 0.0
    %2131 = vmatpush2.msra.mxu0 0.0
    %2132 = vmatprep.subr.mxu0 0.0
    %2133 = vmatpush2.msra.mxu0 0.0
    %2134 = vmatprep.subr.mxu0 0.0
    %2135 = vmatpush2.msra.mxu0 0.0
    %2136 = vmatprep.subr.mxu0 0.0
    %2137 = vmatpush2.msra.mxu0 0.0
    %2138 = vmatprep.subr.mxu0 0.0
    %2139 = vmatpush2.msra.mxu0 0.0
    %2140 = vmatprep.subr.mxu0 0.0
    %2141 = vmatpush2.msra.mxu0 0.0
    %2142 = vmatprep.subr.mxu0 0.0
    %2143 = vmatpush2.msra.mxu0 0.0
    %2144 = vmatprep.subr.mxu0 0.0
    %2145 = vmatpush2.msra.mxu0 0.0
    %2146 = vmatprep.mubr.f32.mxu0 0.0
    %2147 = vmatmul.mubr.f32.gmra.mxu0 %v2080
    %v2148 = vpop.f32.mrf.mxu0
    %v2149 = vadd.f32 0.0, %v2148
    %v2150 = vpop.f32.mrf.mxu0
    %2151 = vdwg.mxu0
    %v2152 = vld [vmem:[%s2 + $0x80] sm:$0xff]
    %v2153 = vld [vmem:[%s2 + $0x88] sm:$0xff]
    %v2154 = vld [vmem:[%s2 + $0x90] sm:$0xff]
    %v2155 = vld [vmem:[%s2 + $0x98] sm:$0xff]
    %v2157 = vsel %vm1505, %v2149, 0
    %2159 = vmatprep.subr.mxu0 0.0
    %2160 = vmatpush1.msra.mxu0 0.0
    %2161 = vmatprep.subr.mxu0 0.0
    %2162 = vmatpush1.msra.mxu0 0.0
    %2163 = vmatprep.subr.mxu0 0.0
    %2164 = vmatpush1.msra.mxu0 0.0
    %2165 = vmatprep.subr.mxu0 0.0
    %2166 = vmatpush1.msra.mxu0 0.0
    %2167 = vmatprep.subr.mxu0 0.0
    %2168 = vmatpush1.msra.mxu0 0.0
    %2169 = vmatprep.subr.mxu0 0.0
    %2170 = vmatpush1.msra.mxu0 0.0
    %2171 = vmatprep.subr.mxu0 0.0
    %2172 = vmatpush1.msra.mxu0 0.0
    %2173 = vmatprep.subr.mxu0 0.0
    %2174 = vmatpush1.msra.mxu0 0.0
    %2175 = vmatprep.subr.mxu0 0.0
    %2176 = vmatpush1.msra.mxu0 0.0
    %2177 = vmatprep.subr.mxu0 0.0
    %2178 = vmatpush1.msra.mxu0 0.0
    %2179 = vmatprep.subr.mxu0 0.0
    %2180 = vmatpush1.msra.mxu0 0.0
    %2181 = vmatprep.subr.mxu0 0.0
    %2182 = vmatpush1.msra.mxu0 0.0
    %2183 = vmatprep.subr.mxu0 0.0
    %2184 = vmatpush1.msra.mxu0 0.0
    %2185 = vmatprep.subr.mxu0 0.0
    %2186 = vmatpush1.msra.mxu0 0.0
    %2187 = vmatprep.subr.mxu0 0.0
    %2188 = vmatpush1.msra.mxu0 %v2155
    %2189 = vmatprep.subr.mxu0 0.0
    %2190 = vmatpush1.msra.mxu0 %v2154
    %2191 = vmatprep.subr.mxu0 0.0
    %2192 = vmatpush2.msra.mxu0 0.0
    %2193 = vmatprep.subr.mxu0 0.0
    %2194 = vmatpush2.msra.mxu0 0.0
    %2195 = vmatprep.subr.mxu0 0.0
    %2196 = vmatpush2.msra.mxu0 0.0
    %2197 = vmatprep.subr.mxu0 0.0
    %2198 = vmatpush2.msra.mxu0 0.0
    %2199 = vmatprep.subr.mxu0 0.0
    %2200 = vmatpush2.msra.mxu0 0.0
    %2201 = vmatprep.subr.mxu0 0.0
    %2202 = vmatpush2.msra.mxu0 0.0
    %2203 = vmatprep.subr.mxu0 0.0
    %2204 = vmatpush2.msra.mxu0 0.0
    %2205 = vmatprep.subr.mxu0 0.0
    %2206 = vmatpush2.msra.mxu0 0.0
    %2207 = vmatprep.subr.mxu0 0.0
    %2208 = vmatpush2.msra.mxu0 0.0
    %2209 = vmatprep.subr.mxu0 0.0
    %2210 = vmatpush2.msra.mxu0 0.0
    %2211 = vmatprep.subr.mxu0 0.0
    %2212 = vmatpush2.msra.mxu0 0.0
    %2213 = vmatprep.subr.mxu0 0.0
    %2214 = vmatpush2.msra.mxu0 0.0
    %2215 = vmatprep.subr.mxu0 0.0
    %2216 = vmatpush2.msra.mxu0 0.0
    %2217 = vmatprep.subr.mxu0 0.0
    %2218 = vmatpush2.msra.mxu0 0.0
    %2219 = vmatprep.subr.mxu0 0.0
    %2220 = vmatpush2.msra.mxu0 0.0
    %2221 = vmatprep.subr.mxu0 0.0
    %2222 = vmatpush2.msra.mxu0 0.0
    %2223 = vmatprep.mubr.f32.mxu0 0.0
    %2224 = vmatmul.mubr.f32.gmra.mxu0 %v2157
    %v2225 = vpop.f32.mrf.mxu0
    %v2226 = vadd.f32 0.0, %v2225
    %v2227 = vpop.f32.mrf.mxu0
    %2228 = vdwg.mxu0
    %v2230 = vsel %vm1505, %v1930, 0
    %2232 = vmatprep.subr.mxu0 0.0
    %2233 = vmatpush1.msra.mxu0 0.0
    %2234 = vmatprep.subr.mxu0 0.0
    %2235 = vmatpush1.msra.mxu0 0.0
    %2236 = vmatprep.subr.mxu0 0.0
    %2237 = vmatpush1.msra.mxu0 0.0
    %2238 = vmatprep.subr.mxu0 0.0
    %2239 = vmatpush1.msra.mxu0 0.0
    %2240 = vmatprep.subr.mxu0 0.0
    %2241 = vmatpush1.msra.mxu0 0.0
    %2242 = vmatprep.subr.mxu0 0.0
    %2243 = vmatpush1.msra.mxu0 0.0
    %2244 = vmatprep.subr.mxu0 0.0
    %2245 = vmatpush1.msra.mxu0 0.0
    %2246 = vmatprep.subr.mxu0 0.0
    %2247 = vmatpush1.msra.mxu0 0.0
    %2248 = vmatprep.subr.mxu0 0.0
    %2249 = vmatpush1.msra.mxu0 0.0
    %2250 = vmatprep.subr.mxu0 0.0
    %2251 = vmatpush1.msra.mxu0 0.0
    %2252 = vmatprep.subr.mxu0 0.0
    %2253 = vmatpush1.msra.mxu0 0.0
    %2254 = vmatprep.subr.mxu0 0.0
    %2255 = vmatpush1.msra.mxu0 0.0
    %2256 = vmatprep.subr.mxu0 0.0
    %2257 = vmatpush1.msra.mxu0 0.0
    %2258 = vmatprep.subr.mxu0 0.0
    %2259 = vmatpush1.msra.mxu0 0.0
    %2260 = vmatprep.subr.mxu0 0.0
    %2261 = vmatpush1.msra.mxu0 %v2153
    %2262 = vmatprep.subr.mxu0 0.0
    %2263 = vmatpush1.msra.mxu0 %v2152
    %2264 = vmatprep.subr.mxu0 0.0
    %2265 = vmatpush2.msra.mxu0 0.0
    %2266 = vmatprep.subr.mxu0 0.0
    %2267 = vmatpush2.msra.mxu0 0.0
    %2268 = vmatprep.subr.mxu0 0.0
    %2269 = vmatpush2.msra.mxu0 0.0
    %2270 = vmatprep.subr.mxu0 0.0
    %2271 = vmatpush2.msra.mxu0 0.0
    %2272 = vmatprep.subr.mxu0 0.0
    %2273 = vmatpush2.msra.mxu0 0.0
    %2274 = vmatprep.subr.mxu0 0.0
    %2275 = vmatpush2.msra.mxu0 0.0
    %2276 = vmatprep.subr.mxu0 0.0
    %2277 = vmatpush2.msra.mxu0 0.0
    %2278 = vmatprep.subr.mxu0 0.0
    %2279 = vmatpush2.msra.mxu0 0.0
    %2280 = vmatprep.subr.mxu0 0.0
    %2281 = vmatpush2.msra.mxu0 0.0
    %2282 = vmatprep.subr.mxu0 0.0
    %2283 = vmatpush2.msra.mxu0 0.0
    %2284 = vmatprep.subr.mxu0 0.0
    %2285 = vmatpush2.msra.mxu0 0.0
    %2286 = vmatprep.subr.mxu0 0.0
    %2287 = vmatpush2.msra.mxu0 0.0
    %2288 = vmatprep.subr.mxu0 0.0
    %2289 = vmatpush2.msra.mxu0 0.0
    %2290 = vmatprep.subr.mxu0 0.0
    %2291 = vmatpush2.msra.mxu0 0.0
    %2292 = vmatprep.subr.mxu0 0.0
    %2293 = vmatpush2.msra.mxu0 0.0
    %2294 = vmatprep.subr.mxu0 0.0
    %2295 = vmatpush2.msra.mxu0 0.0
    %2296 = vmatprep.mubr.f32.mxu0 0.0
    %2297 = vmatmul.mubr.f32.gmra.mxu0 %v2230
    %v2298 = vpop.f32.mrf.mxu0
    %v2299 = vadd.f32 %v2226, %v2298
    %v2300 = vpop.f32.mrf.mxu0
    %2301 = vdwg.mxu0
    %v2302 = vld [vmem:[%s3 + $0x3] sm:$0x1]
    %v2303 = vlaneseq
    %v2304 = vshrl.u32 %v2303, 7
    %v2305 = vsub.s32 0, %v2304
    %v2306 = vrot.slane %v2302, %v2305
    %v2307 = vadd.f32 %v2299, %v2306
    %v2308 = vmax.f32 %v2307, 0.0
    %v2310 = vsel %vm1831, %v1855, 0
    %v2313 = vsel %vm1831, %v1856, 0
    %v2316 = vsel %vm1831, %v1857, 0
    %v2319 = vsel %vm1831, %v1858, 0
    %2321 = vmatprep.subr.mxu0 0.0
    %2322 = vmatpush1.msra.mxu0 0.0
    %2323 = vmatprep.subr.mxu0 0.0
    %2324 = vmatpush1.msra.mxu0 0.0
    %2325 = vmatprep.subr.mxu0 0.0
    %2326 = vmatpush1.msra.mxu0 0.0
    %2327 = vmatprep.subr.mxu0 0.0
    %2328 = vmatpush1.msra.mxu0 0.0
    %2329 = vmatprep.subr.mxu0 0.0
    %2330 = vmatpush1.msra.mxu0 0.0
    %2331 = vmatprep.subr.mxu0 0.0
    %2332 = vmatpush1.msra.mxu0 0.0
    %2333 = vmatprep.subr.mxu0 0.0
    %2334 = vmatpush1.msra.mxu0 0.0
    %2335 = vmatprep.subr.mxu0 0.0
    %2336 = vmatpush1.msra.mxu0 0.0
    %2337 = vmatprep.subr.mxu0 0.0
    %2338 = vmatpush1.msra.mxu0 0.0
    %2339 = vmatprep.subr.mxu0 0.0
    %2340 = vmatpush1.msra.mxu0 0.0
    %2341 = vmatprep.subr.mxu0 0.0
    %2342 = vmatpush1.msra.mxu0 0.0
    %2343 = vmatprep.subr.mxu0 0.0
    %2344 = vmatpush1.msra.mxu0 0.0
    %2345 = vmatprep.subr.mxu0 0.0
    %2346 = vmatpush1.msra.mxu0 0.0
    %2347 = vmatprep.subr.mxu0 0.0
    %2348 = vmatpush1.msra.mxu0 0.0
    %2349 = vmatprep.subr.mxu0 0.0
    %2350 = vmatpush1.msra.mxu0 0.0
    %2351 = vmatprep.subr.mxu0 0.0
    %2352 = vmatpush1.msra.mxu0 %v2308
    %2353 = vmatprep.subr.mxu0 0.0
    %2354 = vmatpush2.msra.mxu0 0.0
    %2355 = vmatprep.subr.mxu0 0.0
    %2356 = vmatpush2.msra.mxu0 0.0
    %2357 = vmatprep.subr.mxu0 0.0
    %2358 = vmatpush2.msra.mxu0 0.0
    %2359 = vmatprep.subr.mxu0 0.0
    %2360 = vmatpush2.msra.mxu0 0.0
    %2361 = vmatprep.subr.mxu0 0.0
    %2362 = vmatpush2.msra.mxu0 0.0
    %2363 = vmatprep.subr.mxu0 0.0
    %2364 = vmatpush2.msra.mxu0 0.0
    %2365 = vmatprep.subr.mxu0 0.0
    %2366 = vmatpush2.msra.mxu0 0.0
    %2367 = vmatprep.subr.mxu0 0.0
    %2368 = vmatpush2.msra.mxu0 0.0
    %2369 = vmatprep.subr.mxu0 0.0
    %2370 = vmatpush2.msra.mxu0 0.0
    %2371 = vmatprep.subr.mxu0 0.0
    %2372 = vmatpush2.msra.mxu0 0.0
    %2373 = vmatprep.subr.mxu0 0.0
    %2374 = vmatpush2.msra.mxu0 0.0
    %2375 = vmatprep.subr.mxu0 0.0
    %2376 = vmatpush2.msra.mxu0 0.0
    %2377 = vmatprep.subr.mxu0 0.0
    %2378 = vmatpush2.msra.mxu0 0.0
    %2379 = vmatprep.subr.mxu0 0.0
    %2380 = vmatpush2.msra.mxu0 0.0
    %2381 = vmatprep.subr.mxu0 0.0
    %2382 = vmatpush2.msra.mxu0 0.0
    %2383 = vmatprep.subr.mxu0 0.0
    %2384 = vmatpush2.msra.mxu0 0.0
    %2385 = vmatprep.mubr.f32.mxu0 0.0
    %2386 = vmatmul.mubr.f32.gmra.mxu0 %v2310
    %v2387 = vpop.f32.mrf.mxu0
    %v2388 = vadd.f32 0.0, %v2387
    %v2389 = vpop.f32.mrf.mxu0
    %2390 = vmatprep.mubr.f32.mxu0 0.0
    %2391 = vmatmul.mubr.f32.gmra.mxu0 %v2313
    %v2392 = vpop.f32.mrf.mxu0
    %v2393 = vadd.f32 0.0, %v2392
    %v2394 = vpop.f32.mrf.mxu0
    %2395 = vmatprep.mubr.f32.mxu0 0.0
    %2396 = vmatmul.mubr.f32.gmra.mxu0 %v2316
    %v2397 = vpop.f32.mrf.mxu0
    %v2398 = vadd.f32 0.0, %v2397
    %v2399 = vpop.f32.mrf.mxu0
    %2400 = vmatprep.mubr.f32.mxu0 0.0
    %2401 = vmatmul.mubr.f32.gmra.mxu0 %v2319
    %v2402 = vpop.f32.mrf.mxu0
    %v2403 = vadd.f32 0.0, %v2402
    %v2404 = vpop.f32.mrf.mxu0
    %2405 = vdwg.mxu0
    %2407 = vrot.lane.b32.xlu0 %v2393, 16
    %v2408 = vpop.permute.xlu0 %2407
    %2411 = vrot.lane.b32.xlu0 %v2398, 32
    %v2412 = vpop.permute.xlu0 %2411
    %2415 = vrot.lane.b32.xlu0 %v2403, 48
    %v2416 = vpop.permute.xlu0 %2415
    %v2418 = vsel %vm1505, %v2388, %v2408
    %v2419 = vsel %vm444, %v2418, %v2412
    %vm2420 = vcmask 392192
    %v2421 = vsel %vm2420, %v2419, %v2416
    %v2422 = vld [vmem:[%s2 + $0xe0] sm:$0xff]
    %v2423 = vld [vmem:[%s2 + $0xe8] sm:$0xff]
    %v2424 = vld [vmem:[%s2 + $0xa0] sm:$0xff]
    %v2425 = vld [vmem:[%s2 + $0xa8] sm:$0xff]
    %v2426 = vld [vmem:[%s2 + $0xb0] sm:$0xff]
    %v2427 = vld [vmem:[%s2 + $0xb8] sm:$0xff]
    %v2428 = vld [vmem:[%s2 + $0xc0] sm:$0xff]
    %v2429 = vld [vmem:[%s2 + $0xc8] sm:$0xff]
    %v2430 = vld [vmem:[%s2 + $0xd0] sm:$0xff]
    %v2431 = vld [vmem:[%s2 + $0xd8] sm:$0xff]
    %vm2432 = vcmask 523264
    %v2434 = vsel %vm2432, %v2421, 0
    %2436 = vmatprep.subr.mxu0 0.0
    %2437 = vmatpush1.msra.mxu0 0.0
    %2438 = vmatprep.subr.mxu0 0.0
    %2439 = vmatpush1.msra.mxu0 0.0
    %2440 = vmatprep.subr.mxu0 0.0
    %2441 = vmatpush1.msra.mxu0 0.0
    %2442 = vmatprep.subr.mxu0 0.0
    %2443 = vmatpush1.msra.mxu0 0.0
    %2444 = vmatprep.subr.mxu0 0.0
    %2445 = vmatpush1.msra.mxu0 0.0
    %2446 = vmatprep.subr.mxu0 0.0
    %2447 = vmatpush1.msra.mxu0 0.0
    %2448 = vmatprep.subr.mxu0 0.0
    %2449 = vmatpush1.msra.mxu0 0.0
    %2450 = vmatprep.subr.mxu0 0.0
    %2451 = vmatpush1.msra.mxu0 0.0
    %2452 = vmatprep.subr.mxu0 0.0
    %2453 = vmatpush1.msra.mxu0 %v2431
    %2454 = vmatprep.subr.mxu0 0.0
    %2455 = vmatpush1.msra.mxu0 %v2430
    %2456 = vmatprep.subr.mxu0 0.0
    %2457 = vmatpush1.msra.mxu0 %v2429
    %2458 = vmatprep.subr.mxu0 0.0
    %2459 = vmatpush1.msra.mxu0 %v2428
    %2460 = vmatprep.subr.mxu0 0.0
    %2461 = vmatpush1.msra.mxu0 %v2427
    %2462 = vmatprep.subr.mxu0 0.0
    %2463 = vmatpush1.msra.mxu0 %v2426
    %2464 = vmatprep.subr.mxu0 0.0
    %2465 = vmatpush1.msra.mxu0 %v2425
    %2466 = vmatprep.subr.mxu0 0.0
    %2467 = vmatpush1.msra.mxu0 %v2424
    %2468 = vmatprep.subr.mxu0 0.0
    %2469 = vmatpush2.msra.mxu0 0.0
    %2470 = vmatprep.subr.mxu0 0.0
    %2471 = vmatpush2.msra.mxu0 0.0
    %2472 = vmatprep.subr.mxu0 0.0
    %2473 = vmatpush2.msra.mxu0 0.0
    %2474 = vmatprep.subr.mxu0 0.0
    %2475 = vmatpush2.msra.mxu0 0.0
    %2476 = vmatprep.subr.mxu0 0.0
    %2477 = vmatpush2.msra.mxu0 0.0
    %2478 = vmatprep.subr.mxu0 0.0
    %2479 = vmatpush2.msra.mxu0 0.0
    %2480 = vmatprep.subr.mxu0 0.0
    %2481 = vmatpush2.msra.mxu0 0.0
    %2482 = vmatprep.subr.mxu0 0.0
    %2483 = vmatpush2.msra.mxu0 0.0
    %2484 = vmatprep.subr.mxu0 0.0
    %2485 = vmatpush2.msra.mxu0 0.0
    %2486 = vmatprep.subr.mxu0 0.0
    %2487 = vmatpush2.msra.mxu0 0.0
    %2488 = vmatprep.subr.mxu0 0.0
    %2489 = vmatpush2.msra.mxu0 0.0
    %2490 = vmatprep.subr.mxu0 0.0
    %2491 = vmatpush2.msra.mxu0 0.0
    %2492 = vmatprep.subr.mxu0 0.0
    %2493 = vmatpush2.msra.mxu0 0.0
    %2494 = vmatprep.subr.mxu0 0.0
    %2495 = vmatpush2.msra.mxu0 0.0
    %2496 = vmatprep.subr.mxu0 0.0
    %2497 = vmatpush2.msra.mxu0 0.0
    %2498 = vmatprep.subr.mxu0 0.0
    %2499 = vmatpush2.msra.mxu0 0.0
    %2500 = vmatprep.mubr.f32.mxu0 0.0
    %2501 = vmatmul.mubr.f32.gmra.mxu0 %v2434
    %v2502 = vpop.f32.mrf.mxu0
    %v2503 = vadd.f32 0.0, %v2502
    %v2504 = vpop.f32.mrf.mxu0
    %2505 = vdwg.mxu0
    %v2507 = vsel %vm1505, %v2308, 0
    %2509 = vmatprep.subr.mxu0 0.0
    %2510 = vmatpush1.msra.mxu0 0.0
    %2511 = vmatprep.subr.mxu0 0.0
    %2512 = vmatpush1.msra.mxu0 0.0
    %2513 = vmatprep.subr.mxu0 0.0
    %2514 = vmatpush1.msra.mxu0 0.0
    %2515 = vmatprep.subr.mxu0 0.0
    %2516 = vmatpush1.msra.mxu0 0.0
    %2517 = vmatprep.subr.mxu0 0.0
    %2518 = vmatpush1.msra.mxu0 0.0
    %2519 = vmatprep.subr.mxu0 0.0
    %2520 = vmatpush1.msra.mxu0 0.0
    %2521 = vmatprep.subr.mxu0 0.0
    %2522 = vmatpush1.msra.mxu0 0.0
    %2523 = vmatprep.subr.mxu0 0.0
    %2524 = vmatpush1.msra.mxu0 0.0
    %2525 = vmatprep.subr.mxu0 0.0
    %2526 = vmatpush1.msra.mxu0 0.0
    %2527 = vmatprep.subr.mxu0 0.0
    %2528 = vmatpush1.msra.mxu0 0.0
    %2529 = vmatprep.subr.mxu0 0.0
    %2530 = vmatpush1.msra.mxu0 0.0
    %2531 = vmatprep.subr.mxu0 0.0
    %2532 = vmatpush1.msra.mxu0 0.0
    %2533 = vmatprep.subr.mxu0 0.0
    %2534 = vmatpush1.msra.mxu0 0.0
    %2535 = vmatprep.subr.mxu0 0.0
    %2536 = vmatpush1.msra.mxu0 0.0
    %2537 = vmatprep.subr.mxu0 0.0
    %2538 = vmatpush1.msra.mxu0 %v2423
    %2539 = vmatprep.subr.mxu0 0.0
    %2540 = vmatpush1.msra.mxu0 %v2422
    %2541 = vmatprep.subr.mxu0 0.0
    %2542 = vmatpush2.msra.mxu0 0.0
    %2543 = vmatprep.subr.mxu0 0.0
    %2544 = vmatpush2.msra.mxu0 0.0
    %2545 = vmatprep.subr.mxu0 0.0
    %2546 = vmatpush2.msra.mxu0 0.0
    %2547 = vmatprep.subr.mxu0 0.0
    %2548 = vmatpush2.msra.mxu0 0.0
    %2549 = vmatprep.subr.mxu0 0.0
    %2550 = vmatpush2.msra.mxu0 0.0
    %2551 = vmatprep.subr.mxu0 0.0
    %2552 = vmatpush2.msra.mxu0 0.0
    %2553 = vmatprep.subr.mxu0 0.0
    %2554 = vmatpush2.msra.mxu0 0.0
    %2555 = vmatprep.subr.mxu0 0.0
    %2556 = vmatpush2.msra.mxu0 0.0
    %2557 = vmatprep.subr.mxu0 0.0
    %2558 = vmatpush2.msra.mxu0 0.0
    %2559 = vmatprep.subr.mxu0 0.0
    %2560 = vmatpush2.msra.mxu0 0.0
    %2561 = vmatprep.subr.mxu0 0.0
    %2562 = vmatpush2.msra.mxu0 0.0
    %2563 = vmatprep.subr.mxu0 0.0
    %2564 = vmatpush2.msra.mxu0 0.0
    %2565 = vmatprep.subr.mxu0 0.0
    %2566 = vmatpush2.msra.mxu0 0.0
    %2567 = vmatprep.subr.mxu0 0.0
    %2568 = vmatpush2.msra.mxu0 0.0
    %2569 = vmatprep.subr.mxu0 0.0
    %2570 = vmatpush2.msra.mxu0 0.0
    %2571 = vmatprep.subr.mxu0 0.0
    %2572 = vmatpush2.msra.mxu0 0.0
    %2573 = vmatprep.mubr.f32.mxu0 0.0
    %2574 = vmatmul.mubr.f32.gmra.mxu0 %v2507
    %v2575 = vpop.f32.mrf.mxu0
    %v2576 = vadd.f32 %v2503, %v2575
    %v2577 = vpop.f32.mrf.mxu0
    %2578 = vdwg.mxu0
    %v2579 = vld [vmem:[%s3 + $0x4] sm:$0x1]
    %v2580 = vlaneseq
    %v2581 = vshrl.u32 %v2580, 7
    %v2582 = vsub.s32 0, %v2581
    %v2583 = vrot.slane %v2579, %v2582
    %v2584 = vadd.f32 %v2576, %v2583
    %v2585 = vmax.f32 %v2584, 0.0
    %2587 = vrot.lane.b32.xlu0 %v2585, 16
    %v2588 = vpop.permute.xlu0 %2587
    %v2590 = vsel %vm1505, %v1930, %v2588
    %v2592 = vsel %vm1831, %v1859, 0
    %2594 = vmatprep.subr.mxu0 0.0
    %2595 = vmatpush1.msra.mxu0 0.0
    %2596 = vmatprep.subr.mxu0 0.0
    %2597 = vmatpush1.msra.mxu0 0.0
    %2598 = vmatprep.subr.mxu0 0.0
    %2599 = vmatpush1.msra.mxu0 0.0
    %2600 = vmatprep.subr.mxu0 0.0
    %2601 = vmatpush1.msra.mxu0 0.0
    %2602 = vmatprep.subr.mxu0 0.0
    %2603 = vmatpush1.msra.mxu0 0.0
    %2604 = vmatprep.subr.mxu0 0.0
    %2605 = vmatpush1.msra.mxu0 0.0
    %2606 = vmatprep.subr.mxu0 0.0
    %2607 = vmatpush1.msra.mxu0 0.0
    %2608 = vmatprep.subr.mxu0 0.0
    %2609 = vmatpush1.msra.mxu0 0.0
    %2610 = vmatprep.subr.mxu0 0.0
    %2611 = vmatpush1.msra.mxu0 0.0
    %2612 = vmatprep.subr.mxu0 0.0
    %2613 = vmatpush1.msra.mxu0 0.0
    %2614 = vmatprep.subr.mxu0 0.0
    %2615 = vmatpush1.msra.mxu0 0.0
    %2616 = vmatprep.subr.mxu0 0.0
    %2617 = vmatpush1.msra.mxu0 0.0
    %2618 = vmatprep.subr.mxu0 0.0
    %2619 = vmatpush1.msra.mxu0 0.0
    %2620 = vmatprep.subr.mxu0 0.0
    %2621 = vmatpush1.msra.mxu0 0.0
    %2622 = vmatprep.subr.mxu0 0.0
    %2623 = vmatpush1.msra.mxu0 0.0
    %2624 = vmatprep.subr.mxu0 0.0
    %2625 = vmatpush1.msra.mxu0 %v2590
    %2626 = vmatprep.subr.mxu0 0.0
    %2627 = vmatpush2.msra.mxu0 0.0
    %2628 = vmatprep.subr.mxu0 0.0
    %2629 = vmatpush2.msra.mxu0 0.0
    %2630 = vmatprep.subr.mxu0 0.0
    %2631 = vmatpush2.msra.mxu0 0.0
    %2632 = vmatprep.subr.mxu0 0.0
    %2633 = vmatpush2.msra.mxu0 0.0
    %2634 = vmatprep.subr.mxu0 0.0
    %2635 = vmatpush2.msra.mxu0 0.0
    %2636 = vmatprep.subr.mxu0 0.0
    %2637 = vmatpush2.msra.mxu0 0.0
    %2638 = vmatprep.subr.mxu0 0.0
    %2639 = vmatpush2.msra.mxu0 0.0
    %2640 = vmatprep.subr.mxu0 0.0
    %2641 = vmatpush2.msra.mxu0 0.0
    %2642 = vmatprep.subr.mxu0 0.0
    %2643 = vmatpush2.msra.mxu0 0.0
    %2644 = vmatprep.subr.mxu0 0.0
    %2645 = vmatpush2.msra.mxu0 0.0
    %2646 = vmatprep.subr.mxu0 0.0
    %2647 = vmatpush2.msra.mxu0 0.0
    %2648 = vmatprep.subr.mxu0 0.0
    %2649 = vmatpush2.msra.mxu0 0.0
    %2650 = vmatprep.subr.mxu0 0.0
    %2651 = vmatpush2.msra.mxu0 0.0
    %2652 = vmatprep.subr.mxu0 0.0
    %2653 = vmatpush2.msra.mxu0 0.0
    %2654 = vmatprep.subr.mxu0 0.0
    %2655 = vmatpush2.msra.mxu0 0.0
    %2656 = vmatprep.subr.mxu0 0.0
    %2657 = vmatpush2.msra.mxu0 0.0
    %2658 = vmatprep.mubr.f32.mxu0 0.0
    %2659 = vmatmul.mubr.f32.gmra.mxu0 %v2592
    %v2660 = vpop.f32.mrf.mxu0
    %v2661 = vadd.f32 0.0, %v2660
    %v2662 = vpop.f32.mrf.mxu0
    %2663 = vdwg.mxu0
    %v2664 = vld [vmem:[%s5] sm:$0xff]
    %v2665 = vld [vmem:[%s5 + $0x8] sm:$0xff]
    %v2666 = vadd.f32 %v2590, %v2664
    %v2667 = vadd.f32 %v2590, %v2665
    %v2668 = vsel %vm444, %v2666, -inf
    %v2669 = vrot.slane %v2668, 4
    %v2670 = vmax.f32 %v2668, %v2669
    %v2671 = vrot.slane %v2670, 2
    %v2672 = vmax.f32 %v2670, %v2671
    %v2673 = vrot.slane %v2672, 1
    %v2674 = vmax.f32 %v2672, %v2673
    %v2675 = vsel %vm444, %v2667, -inf
    %v2676 = vrot.slane %v2675, 4
    %v2677 = vmax.f32 %v2675, %v2676
    %v2678 = vrot.slane %v2677, 2
    %v2679 = vmax.f32 %v2677, %v2678
    %v2680 = vrot.slane %v2679, 1
    %v2681 = vmax.f32 %v2679, %v2680
    %vm2682 = vcmask 58368
    %v2683 = vsel %vm2682, %v1859, 0.0
    %2684 = vadd.xlane.f32.xlu0 %v2683
    %v2685 = vpop.xlane.xlu0 %2684
    %vm2686 = vcmp.gt.f32.partialorder %v2685, 0.0
    %v2687 = vsel %vm2686, 1, 0
    %vm2688 = vcmp.eq.s32.totalorder %v2687, 1
    %v2691 = vsel %vm1593, %v2681, %v2674
    %v2693 = vsel %vm2688, %v2691, 0.0
    %2695 = vrot.lane.b32.xlu0 %v2693, 32
    %v2696 = vpop.permute.xlu0 %2695
    %v2698 = vsel %vm444, %v2661, %v2696
    %v2699 = vld [vmem:[%s2 + $0xf0] sm:$0xff]
    %v2700 = vld [vmem:[%s2 + $0xf8] sm:$0xff]
    %v2701 = vld [vmem:[%s2 + $0x100] sm:$0xff]
    %v2702 = vld [vmem:[%s2 + $0x108] sm:$0xff]
    %v2703 = vld [vmem:[%s2 + $0x110] sm:$0xff]
    %v2704 = vld [vmem:[%s2 + $0x118] sm:$0xff]
    %v2705 = vld [vmem:[%s2 + $0x120] sm:$0xff]
    %v2706 = vld [vmem:[%s2 + $0x128] sm:$0xff]
    %v2707 = vld [vmem:[%s3 + $0x5] sm:$0x1]
    %v2708 = vlaneseq
    %v2709 = vshrl.u32 %v2708, 7
    %v2710 = vsub.s32 0, %v2709
    %v2711 = vrot.slane %v2707, %v2710
    %v2713 = vsel %vm2432, %v2698, 0
    %2715 = vmatprep.subr.mxu0 0.0
    %2716 = vmatpush1.msra.mxu0 0.0
    %2717 = vmatprep.subr.mxu0 0.0
    %2718 = vmatpush1.msra.mxu0 0.0
    %2719 = vmatprep.subr.mxu0 0.0
    %2720 = vmatpush1.msra.mxu0 0.0
    %2721 = vmatprep.subr.mxu0 0.0
    %2722 = vmatpush1.msra.mxu0 0.0
    %2723 = vmatprep.subr.mxu0 0.0
    %2724 = vmatpush1.msra.mxu0 0.0
    %2725 = vmatprep.subr.mxu0 0.0
    %2726 = vmatpush1.msra.mxu0 0.0
    %2727 = vmatprep.subr.mxu0 0.0
    %2728 = vmatpush1.msra.mxu0 0.0
    %2729 = vmatprep.subr.mxu0 0.0
    %2730 = vmatpush1.msra.mxu0 0.0
    %2731 = vmatprep.subr.mxu0 0.0
    %2732 = vmatpush1.msra.mxu0 %v2706
    %2733 = vmatprep.subr.mxu0 0.0
    %2734 = vmatpush1.msra.mxu0 %v2705
    %2735 = vmatprep.subr.mxu0 0.0
    %2736 = vmatpush1.msra.mxu0 %v2704
    %2737 = vmatprep.subr.mxu0 0.0
    %2738 = vmatpush1.msra.mxu0 %v2703
    %2739 = vmatprep.subr.mxu0 0.0
    %2740 = vmatpush1.msra.mxu0 %v2702
    %2741 = vmatprep.subr.mxu0 0.0
    %2742 = vmatpush1.msra.mxu0 %v2701
    %2743 = vmatprep.subr.mxu0 0.0
    %2744 = vmatpush1.msra.mxu0 %v2700
    %2745 = vmatprep.subr.mxu0 0.0
    %2746 = vmatpush1.msra.mxu0 %v2699
    %2747 = vmatprep.subr.mxu0 0.0
    %2748 = vmatpush2.msra.mxu0 0.0
    %2749 = vmatprep.subr.mxu0 0.0
    %2750 = vmatpush2.msra.mxu0 0.0
    %2751 = vmatprep.subr.mxu0 0.0
    %2752 = vmatpush2.msra.mxu0 0.0
    %2753 = vmatprep.subr.mxu0 0.0
    %2754 = vmatpush2.msra.mxu0 0.0
    %2755 = vmatprep.subr.mxu0 0.0
    %2756 = vmatpush2.msra.mxu0 0.0
    %2757 = vmatprep.subr.mxu0 0.0
    %2758 = vmatpush2.msra.mxu0 0.0
    %2759 = vmatprep.subr.mxu0 0.0
    %2760 = vmatpush2.msra.mxu0 0.0
    %2761 = vmatprep.subr.mxu0 0.0
    %2762 = vmatpush2.msra.mxu0 0.0
    %2763 = vmatprep.subr.mxu0 0.0
    %2764 = vmatpush2.msra.mxu0 0.0
    %2765 = vmatprep.subr.mxu0 0.0
    %2766 = vmatpush2.msra.mxu0 0.0
    %2767 = vmatprep.subr.mxu0 0.0
    %2768 = vmatpush2.msra.mxu0 0.0
    %2769 = vmatprep.subr.mxu0 0.0
    %2770 = vmatpush2.msra.mxu0 0.0
    %2771 = vmatprep.subr.mxu0 0.0
    %2772 = vmatpush2.msra.mxu0 0.0
    %2773 = vmatprep.subr.mxu0 0.0
    %2774 = vmatpush2.msra.mxu0 0.0
    %2775 = vmatprep.subr.mxu0 0.0
    %2776 = vmatpush2.msra.mxu0 0.0
    %2777 = vmatprep.subr.mxu0 0.0
    %2778 = vmatpush2.msra.mxu0 0.0
    %2779 = vmatprep.mubr.f32.mxu0 0.0
    %2780 = vmatmul.mubr.f32.gmra.mxu0 %v2713
    %v2781 = vpop.f32.mrf.mxu0
    %v2782 = vadd.f32 %v2711, %v2781
    %v2783 = vpop.f32.mrf.mxu0
    %2784 = vdwg.mxu0
    %v2785 = vmax.f32 %v2782, 0.0
    %v2786 = vld [vmem:[%s2 + $0x130] sm:$0xff]
    %v2787 = vld [vmem:[%s2 + $0x138] sm:$0xff]
    %v2789 = vsel %vm1505, %v2785, 0
    %2791 = vmatprep.subr.mxu0 0.0
    %2792 = vmatpush1.msra.mxu0 0.0
    %2793 = vmatprep.subr.mxu0 0.0
    %2794 = vmatpush1.msra.mxu0 0.0
    %2795 = vmatprep.subr.mxu0 0.0
    %2796 = vmatpush1.msra.mxu0 0.0
    %2797 = vmatprep.subr.mxu0 0.0
    %2798 = vmatpush1.msra.mxu0 0.0
    %2799 = vmatprep.subr.mxu0 0.0
    %2800 = vmatpush1.msra.mxu0 0.0
    %2801 = vmatprep.subr.mxu0 0.0
    %2802 = vmatpush1.msra.mxu0 0.0
    %2803 = vmatprep.subr.mxu0 0.0
    %2804 = vmatpush1.msra.mxu0 0.0
    %2805 = vmatprep.subr.mxu0 0.0
    %2806 = vmatpush1.msra.mxu0 0.0
    %2807 = vmatprep.subr.mxu0 0.0
    %2808 = vmatpush1.msra.mxu0 0.0
    %2809 = vmatprep.subr.mxu0 0.0
    %2810 = vmatpush1.msra.mxu0 0.0
    %2811 = vmatprep.subr.mxu0 0.0
    %2812 = vmatpush1.msra.mxu0 0.0
    %2813 = vmatprep.subr.mxu0 0.0
    %2814 = vmatpush1.msra.mxu0 0.0
    %2815 = vmatprep.subr.mxu0 0.0
    %2816 = vmatpush1.msra.mxu0 0.0
    %2817 = vmatprep.subr.mxu0 0.0
    %2818 = vmatpush1.msra.mxu0 0.0
    %2819 = vmatprep.subr.mxu0 0.0
    %2820 = vmatpush1.msra.mxu0 %v2787
    %2821 = vmatprep.subr.mxu0 0.0
    %2822 = vmatpush1.msra.mxu0 %v2786
    %2823 = vmatprep.subr.mxu0 0.0
    %2824 = vmatpush2.msra.mxu0 0.0
    %2825 = vmatprep.subr.mxu0 0.0
    %2826 = vmatpush2.msra.mxu0 0.0
    %2827 = vmatprep.subr.mxu0 0.0
    %2828 = vmatpush2.msra.mxu0 0.0
    %2829 = vmatprep.subr.mxu0 0.0
    %2830 = vmatpush2.msra.mxu0 0.0
    %2831 = vmatprep.subr.mxu0 0.0
    %2832 = vmatpush2.msra.mxu0 0.0
    %2833 = vmatprep.subr.mxu0 0.0
    %2834 = vmatpush2.msra.mxu0 0.0
    %2835 = vmatprep.subr.mxu0 0.0
    %2836 = vmatpush2.msra.mxu0 0.0
    %2837 = vmatprep.subr.mxu0 0.0
    %2838 = vmatpush2.msra.mxu0 0.0
    %2839 = vmatprep.subr.mxu0 0.0
    %2840 = vmatpush2.msra.mxu0 0.0
    %2841 = vmatprep.subr.mxu0 0.0
    %2842 = vmatpush2.msra.mxu0 0.0
    %2843 = vmatprep.subr.mxu0 0.0
    %2844 = vmatpush2.msra.mxu0 0.0
    %2845 = vmatprep.subr.mxu0 0.0
    %2846 = vmatpush2.msra.mxu0 0.0
    %2847 = vmatprep.subr.mxu0 0.0
    %2848 = vmatpush2.msra.mxu0 0.0
    %2849 = vmatprep.subr.mxu0 0.0
    %2850 = vmatpush2.msra.mxu0 0.0
    %2851 = vmatprep.subr.mxu0 0.0
    %2852 = vmatpush2.msra.mxu0 0.0
    %2853 = vmatprep.subr.mxu0 0.0
    %2854 = vmatpush2.msra.mxu0 0.0
    %2855 = vmatprep.mubr.f32.mxu0 0.0
    %2856 = vmatmul.mubr.f32.gmra.mxu0 %v2789
    %v2857 = vpop.f32.mrf.mxu0
    %v2858 = vadd.f32 0.0, %v2857
    %v2859 = vpop.f32.mrf.mxu0
    %2860 = vdwg.mxu0
    %v2861 = vld [vmem:[%s3 + $0x6] sm:$0x1]
    %v2862 = vlaneseq
    %v2863 = vshrl.u32 %v2862, 7
    %v2864 = vsub.s32 0, %v2863
    %v2865 = vrot.slane %v2861, %v2864
    %v2866 = vadd.f32 %v2858, %v2865
    %vm2867 = vcmask 9216
    %v2868 = vsel %vm2867, %v2866, -inf
    %2869 = vmax.xlane.f32.xlu0 %v2868
    %v2870 = vpop.xlane.xlu0 %2869
    %v2871 = vsub.f32 %v2866, %v2870
    %v2872 = vmul.f32 %v2871, 1.442695
    %v2873 = vpow.pop %v2872
    %v2874 = vsel %vm2867, %v2873, 0.0
    %2875 = vadd.xlane.f32.xlu0 %v2874
    %v2876 = vpop.xlane.xlu0 %2875
    %v2877 = vlog2.pop %v2876
    %v2878 = vmul.f32 %v2877, 0.6931472
    %v2879 = vadd.f32 %v2878, %v2870
    %v2880 = vsub.f32 %v2866, %v2879
    %2881 = vst.msk [vmem:[#allocation2] sm:$0x3] %vm2867, %v2880
    // Predicated region
    $region26: #{err_miner_forward.1} parent=1 // pred_check
      _
    $region27: #{err_miner_forward.1} parent=1 // pred_check_branch
      %2883 = sbr.rel (0) target = $region29
    $region28: #{err_miner_forward.1} parent=1 // pred_region
      %s2885 = ssub.s32 32, 32
      %2886 = vsyncadd [#allocation3], %s2885
      %s2888 = sshll.u32 [#allocation2], 4
      %s2889 = int_to_ptr.vmem [resolvable:$true] %s2888
      %2891 = dma.vmem_to_hbm [thread:$0]  %s2889, 32, %s6, [#allocation3]
    $region29: #{err_miner_forward.1} parent=1 // pred_fallthru
      _
    // Predicated region
    $region30: #{err_miner_forward.1} parent=1 // pred_check
      _
    $region31: #{err_miner_forward.1} parent=1 // pred_check_branch
      %2893 = sbr.rel (0) target = $region33
    $region32: #{err_miner_forward.1} parent=1 // pred_region
      %2894 = dma.done [#allocation3], 32
    $region33: #{err_miner_forward.1} parent=1 // pred_fallthru
      _
    %2895 = vsyncpa [#allocation3], 1

</llo_original>
